<compile_context>
chip_gen: v7x
topology: tpu7x:2x2x1
jax: 0.10.0
libtpu: 0.0.40
codegen_flags: <defaults>
</compile_context>

<pallas_src>
import jax
import jax.numpy as jnp
from jax import lax
from jax.experimental import pallas as pl
from jax.experimental.pallas import tpu as pltpu

# ----- model hyper-parameters (from the PyTorch spec) -------------------------
VOCAB = 6
N_EMBD = 60
N_HEAD = 6
HEAD_SIZE = N_EMBD // N_HEAD          # 10
HIDDEN = 4 * N_EMBD                   # 240
N_LAYER = 1
BLOCK_SIZE = 128
DROPOUT = 0.0                         # p = 0 -> dropout is the identity
LN_EPS = 1e-5
ATT_SCALE = float(N_EMBD) ** -0.5     # PyTorch code scales by C**-0.5, C = n_embd

# ----- lane-dense padded dims --------------------------------------------------
C_PAD = 128                           # channels 60 -> 128
H_PAD = 256                           # FFN hidden 240 -> 256
HS_PAD = 128                          # per-head 10 -> 128 (lane-aligned slices)
QKV_PAD = N_HEAD * HS_PAD             # 768
V_PAD = 128                           # vocab 6 -> 128 (lane-dense logit store)

MAX_TILE_M = 1024                     # rows per grid step (row-tiled kernels)
TWO_TILE_M = 256                      # above this, force >=2 row tiles (v7x)

_COMPILER_PARAMS = pltpu.CompilerParams(
    dimension_semantics=("parallel",),        # v7x megacore; neutral on v5e/v6e
    vmem_limit_bytes=32 * 1024 * 1024,
)


def _round_up(x, m):
    return (x + m - 1) // m * m


def _row_tiling(m):
    """Balanced row tiles: tail padding <= 7 rows; >= 2 tiles once M > 256."""
    num_tiles = pl.cdiv(m, MAX_TILE_M)
    if m > TWO_TILE_M and num_tiles < 2:
        num_tiles = 2
    tile_m = _round_up(pl.cdiv(m, num_tiles), 8)
    num_tiles = pl.cdiv(m, tile_m)
    return tile_m, num_tiles


# ----- in-kernel helpers --------------------------------------------------------
def _layernorm(x, gamma, beta):
    # x: (rows, C_PAD) f32 with exact zeros in lanes >= N_EMBD.
    s = jnp.sum(x, axis=-1, keepdims=True)
    ss = jnp.sum(x * x, axis=-1, keepdims=True)
    mean = s / N_EMBD
    var = ss / N_EMBD - mean * mean
    inv = lax.rsqrt(var + LN_EPS)
    return (x - mean) * inv * gamma + beta     # padded gamma/beta lanes are 0


# ----- kernels ------------------------------------------------------------------
def _attn_block_kernel(x_ref, g1_ref, b1_ref, wq_ref, wk_ref, wv_ref,
                       wo_ref, bo_ref, o_ref):
    # x_ref/o_ref: (T_pad, C_PAD); wq/wk/wv: (C_PAD, QKV_PAD); wo: (QKV_PAD, C_PAD)
    x = x_ref[...].astype(jnp.float32)
    h = _layernorm(x, g1_ref[...], b1_ref[...])
    hd = h.astype(wq_ref.dtype)
    q = jnp.dot(hd, wq_ref[...], preferred_element_type=jnp.float32)
    k = jnp.dot(hd, wk_ref[...], preferred_element_type=jnp.float32)
    v = jnp.dot(hd, wv_ref[...], preferred_element_type=jnp.float32)

    t = x.shape[0]
    row = lax.broadcasted_iota(jnp.int32, (t, t), 0)
    col = lax.broadcasted_iota(jnp.int32, (t, t), 1)
    causal = col <= row

    proj = jnp.zeros((t, C_PAD), jnp.float32)
    for hh in range(N_HEAD):                      # static 6-way unroll
        c0 = hh * HS_PAD
        qh = q[:, c0:c0 + HS_PAD]
        kh = k[:, c0:c0 + HS_PAD]
        vh = v[:, c0:c0 + HS_PAD]
        wei = lax.dot_general(qh, kh, (((1,), (1,)), ((), ())),
                              preferred_element_type=jnp.float32) * ATT_SCALE
        wei = jnp.where(causal, wei, jnp.float32(-1e30))
        wei = wei - wei.max(axis=-1, keepdims=True)
        p = jnp.exp(wei)
        p = p / p.sum(axis=-1, keepdims=True)     # dropout(p=0) == identity
        oh = jnp.dot(p, vh, preferred_element_type=jnp.float32)
        # "concat heads then proj" folded into per-head 128-row slabs of padded Wo.
        proj = proj + jnp.dot(oh.astype(wo_ref.dtype),
                              wo_ref[c0:c0 + HS_PAD, :],
                              preferred_element_type=jnp.float32)
    proj = proj + bo_ref[...]
    o_ref[...] = (x + proj).astype(o_ref.dtype)


def _ffn_block_kernel(x_ref, g_ref, bln_ref, w1_ref, b1_ref, w2_ref, b2_ref, o_ref):
    x = x_ref[...].astype(jnp.float32)            # (tile_m, C_PAD)
    h = _layernorm(x, g_ref[...], bln_ref[...])
    h1 = jnp.dot(h.astype(w1_ref.dtype), w1_ref[...],
                 preferred_element_type=jnp.float32) + b1_ref[...]
    h1 = jnp.maximum(h1, 0.0)                     # ReLU
    y = jnp.dot(h1.astype(w2_ref.dtype), w2_ref[...],
                preferred_element_type=jnp.float32) + b2_ref[...]
    o_ref[...] = (x + y).astype(o_ref.dtype)      # dropout(p=0) == identity


def _head_kernel(x_ref, g_ref, b_ref, w_ref, bias_ref, o_ref):
    x = x_ref[...].astype(jnp.float32)
    h = _layernorm(x, g_ref[...], b_ref[...])
    logits = jnp.dot(h.astype(w_ref.dtype), w_ref[...],
                     preferred_element_type=jnp.float32) + bias_ref[...]
    o_ref[...] = logits.astype(o_ref.dtype)


# ----- pallas_call wrappers -------------------------------------------------------
def _attention_block(x, blk):
    """x: (B, T_pad, C_PAD). Fused ln1 -> causal MHA -> proj -> residual."""
    B, T_pad, _ = x.shape
    return pl.pallas_call(
        _attn_block_kernel,
        out_shape=jax.ShapeDtypeStruct((B, T_pad, C_PAD), x.dtype),
        grid_spec=pl.GridSpec(
            grid=(B,),
            in_specs=[
                pl.BlockSpec((None, T_pad, C_PAD), lambda b: (b, 0, 0)),  # x
                pl.BlockSpec((1, C_PAD), lambda b: (0, 0)),               # ln1 gamma
                pl.BlockSpec((1, C_PAD), lambda b: (0, 0)),               # ln1 beta
                pl.BlockSpec((C_PAD, QKV_PAD), lambda b: (0, 0)),         # Wq (resident)
                pl.BlockSpec((C_PAD, QKV_PAD), lambda b: (0, 0)),         # Wk
                pl.BlockSpec((C_PAD, QKV_PAD), lambda b: (0, 0)),         # Wv
                pl.BlockSpec((QKV_PAD, C_PAD), lambda b: (0, 0)),         # Wo (proj)
                pl.BlockSpec((1, C_PAD), lambda b: (0, 0)),               # proj bias
            ],
            out_specs=pl.BlockSpec((None, T_pad, C_PAD), lambda b: (b, 0, 0)),
        ),
        compiler_params=_COMPILER_PARAMS,
    )(x, blk['ln1_g'], blk['ln1_b'], blk['wq'], blk['wk'], blk['wv'],
      blk['wo'], blk['bo'])


def _ffn_block(x2d, blk):
    """x2d: (M, C_PAD) rows of the residual stream. Fused ln2 -> MLP -> residual."""
    M = x2d.shape[0]
    tile_m, num_tiles = _row_tiling(M)
    act_bytes = x2d.dtype.itemsize
    w_bytes = sum(int(blk[k].size) * blk[k].dtype.itemsize
                  for k in ('w1', 'w2', 'b1', 'b2', 'ln2_g', 'ln2_b'))
    cost = pl.CostEstimate(
        flops=4 * M * C_PAD * H_PAD,
        transcendentals=M,                        # one rsqrt per row (LayerNorm)
        bytes_accessed=2 * M * C_PAD * act_bytes + w_bytes)
    return pl.pallas_call(
        _ffn_block_kernel,
        out_shape=jax.ShapeDtypeStruct((M, C_PAD), x2d.dtype),
        grid_spec=pl.GridSpec(
            grid=(num_tiles,),
            in_specs=[
                pl.BlockSpec((tile_m, C_PAD), lambda i: (i, 0)),   # x rows: tiled
                pl.BlockSpec((1, C_PAD), lambda i: (0, 0)),        # ln2 gamma
                pl.BlockSpec((1, C_PAD), lambda i: (0, 0)),        # ln2 beta
                pl.BlockSpec((C_PAD, H_PAD), lambda i: (0, 0)),    # W1 (resident)
                pl.BlockSpec((1, H_PAD), lambda i: (0, 0)),        # b1
                pl.BlockSpec((H_PAD, C_PAD), lambda i: (0, 0)),    # W2
                pl.BlockSpec((1, C_PAD), lambda i: (0, 0)),        # b2
            ],
            out_specs=pl.BlockSpec((tile_m, C_PAD), lambda i: (i, 0)),
        ),
        compiler_params=_COMPILER_PARAMS,
        cost_estimate=cost,
    )(x2d, blk['ln2_g'], blk['ln2_b'], blk['w1'], blk['b1'], blk['w2'], blk['b2'])


def _lm_head(x2d, params):
    """x2d: (M, C_PAD). Fused ln_f -> lm_head; f32 lane-dense padded logits."""
    M = x2d.shape[0]
    tile_m, num_tiles = _row_tiling(M)
    return pl.pallas_call(
        _head_kernel,
        out_shape=jax.ShapeDtypeStruct((M, V_PAD), jnp.float32),
        grid_spec=pl.GridSpec(
            grid=(num_tiles,),
            in_specs=[
                pl.BlockSpec((tile_m, C_PAD), lambda i: (i, 0)),
                pl.BlockSpec((1, C_PAD), lambda i: (0, 0)),        # ln_f gamma
                pl.BlockSpec((1, C_PAD), lambda i: (0, 0)),        # ln_f beta
                pl.BlockSpec((C_PAD, V_PAD), lambda i: (0, 0)),    # W_lm (resident)
                pl.BlockSpec((1, V_PAD), lambda i: (0, 0)),        # b_lm
            ],
            out_specs=pl.BlockSpec((tile_m, V_PAD), lambda i: (i, 0)),
        ),
        compiler_params=_COMPILER_PARAMS,
    )(x2d, params['lnf_g'], params['lnf_b'], params['wlm'], params['blm'])


# ----- parameter handling (pad / transpose once at init) ---------------------------
def _pad2(a, shape, dtype):
    return jnp.zeros(shape, dtype).at[:a.shape[0], :a.shape[1]].set(a.astype(dtype))


def _pad_row(v, n):
    return jnp.zeros((1, n), jnp.float32).at[0, :v.shape[0]].set(v.astype(jnp.float32))


def prepare_params(raw, param_dtype=jnp.float32):
    """Pad + transpose PyTorch-layout params once. Padded entries are zero."""
    p = {
        'tok': _pad2(raw['tok_emb'], (VOCAB, C_PAD), param_dtype),
        'pos': _pad2(raw['pos_emb'], (BLOCK_SIZE, C_PAD), param_dtype),
        'lnf_g': _pad_row(raw['lnf_g'], C_PAD),
        'lnf_b': _pad_row(raw['lnf_b'], C_PAD),
        'wlm': _pad2(raw['wlm'].T, (C_PAD, V_PAD), param_dtype),
        'blm': _pad_row(raw['blm'], V_PAD),
        'blocks': [],
    }
    for blk in raw['blocks']:
        wq = jnp.zeros((C_PAD, QKV_PAD), param_dtype)
        wk = jnp.zeros((C_PAD, QKV_PAD), param_dtype)
        wv = jnp.zeros((C_PAD, QKV_PAD), param_dtype)
        wo = jnp.zeros((QKV_PAD, C_PAD), param_dtype)
        for h in range(N_HEAD):
            c0 = h * HS_PAD
            wq = wq.at[:N_EMBD, c0:c0 + HEAD_SIZE].set(blk['wq'][h].T.astype(param_dtype))
            wk = wk.at[:N_EMBD, c0:c0 + HEAD_SIZE].set(blk['wk'][h].T.astype(param_dtype))
            wv = wv.at[:N_EMBD, c0:c0 + HEAD_SIZE].set(blk['wv'][h].T.astype(param_dtype))
            # head h's output occupies cols [h*10,(h+1)*10) of the PyTorch concat;
            # fold that reordering into the padded proj weight.
            wo = wo.at[c0:c0 + HEAD_SIZE, :N_EMBD].set(
                blk['wproj'].T[h * HEAD_SIZE:(h + 1) * HEAD_SIZE, :].astype(param_dtype))
        p['blocks'].append({
            'ln1_g': _pad_row(blk['ln1_g'], C_PAD),
            'ln1_b': _pad_row(blk['ln1_b'], C_PAD),
            'wq': wq, 'wk': wk, 'wv': wv, 'wo': wo,
            'bo': _pad_row(blk['bproj'], C_PAD),
            'ln2_g': _pad_row(blk['ln2_g'], C_PAD),
            'ln2_b': _pad_row(blk['ln2_b'], C_PAD),
            'w1': _pad2(blk['w1'].T, (C_PAD, H_PAD), param_dtype),
            'b1': _pad_row(blk['b1'], H_PAD),
            'w2': _pad2(blk['w2'].T, (H_PAD, C_PAD), param_dtype),
            'b2': _pad_row(blk['b2'], C_PAD),
        })
    return p


# ----- full model forward ------------------------------------------------------------
def _cross_entropy(logits2d, targets1d):
    logits2d = logits2d.astype(jnp.float32)
    lse = jax.nn.logsumexp(logits2d, axis=-1)
    picked = jnp.take_along_axis(logits2d, targets1d[:, None], axis=1)[:, 0]
    return jnp.mean(lse - picked)


def forward(params, idx, targets=None, act_dtype=jnp.float32):
    """Pallas forward of BigramLanguageModel. idx: (B, T) int. Returns (logits, loss)."""
    B, T = idx.shape
    assert T <= BLOCK_SIZE
    T_pad = _round_up(T, 8)
    # Pad ONCE: activations stay in the (.., T_pad, 128) lane-dense layout throughout.
    x = (jnp.take(params['tok'], idx, axis=0).astype(jnp.float32)
         + params['pos'][:T].astype(jnp.float32)[None])
    if T_pad > T:
        x = jnp.pad(x, ((0, 0), (0, T_pad - T), (0, 0)))
    x = x.astype(act_dtype)

    for blk in params['blocks']:
        x = _attention_block(x, blk)
        x = _ffn_block(x.reshape(B * T_pad, C_PAD), blk).reshape(B, T_pad, C_PAD)

    logits_pad = _lm_head(x.reshape(B * T_pad, C_PAD), params)     # (M, V_PAD) f32
    # Un-pad ONCE at the head.
    logits = logits_pad[:, :VOCAB].reshape(B, T_pad, VOCAB)[:, :T]

    loss = None
    if targets is not None:
        loss = _cross_entropy(logits.reshape(B * T, VOCAB), targets.reshape(B * T))
    return logits, loss


# ----- deterministic PyTorch-style init + pure-JAX reference -------------------------
def init_params(key):
    keys = iter(jax.random.split(key, 64))

    def nrm(shape):
        return jax.random.normal(next(keys), shape, jnp.float32)

    def uni(shape, fan_in):
        b = 1.0 / float(fan_in) ** 0.5
        return jax.random.uniform(next(keys), shape, jnp.float32, -b, b)

    raw = {
        'tok_emb': nrm((VOCAB, N_EMBD)),
        'pos_emb': nrm((BLOCK_SIZE, N_EMBD)),
        'blocks': [],
        'lnf_g': 1.0 + 0.05 * nrm((N_EMBD,)),   # randomized affine to exercise LN params
        'lnf_b': 0.05 * nrm((N_EMBD,)),
        'wlm': uni((VOCAB, N_EMBD), N_EMBD),
        'blm': uni((VOCAB,), N_EMBD),
    }
    for _ in range(N_LAYER):
        raw['blocks'].append({
            'wq': uni((N_HEAD, HEAD_SIZE, N_EMBD), N_EMBD),
            'wk': uni((N_HEAD, HEAD_SIZE, N_EMBD), N_EMBD),
            'wv': uni((N_HEAD, HEAD_SIZE, N_EMBD), N_EMBD),
            'wproj': uni((N_EMBD, N_EMBD), N_EMBD),
            'bproj': uni((N_EMBD,), N_EMBD),
            'ln1_g': 1.0 + 0.05 * nrm((N_EMBD,)),
            'ln1_b': 0.05 * nrm((N_EMBD,)),
            'ln2_g': 1.0 + 0.05 * nrm((N_EMBD,)),
            'ln2_b': 0.05 * nrm((N_EMBD,)),
            'w1': uni((HIDDEN, N_EMBD), N_EMBD),
            'b1': uni((HIDDEN,), N_EMBD),
            'w2': uni((N_EMBD, HIDDEN), HIDDEN),
            'b2': uni((N_EMBD,), HIDDEN),
        })
    return raw


def _layernorm_ref(x, g, b):
    mean = x.mean(-1, keepdims=True)
    var = ((x - mean) ** 2).mean(-1, keepdims=True)
    return (x - mean) / jnp.sqrt(var + LN_EPS) * g + b


def reference_forward(raw, idx):
    """Pure-JAX mirror of the PyTorch BigramLanguageModel.forward (f32)."""
    B, T = idx.shape
    x = raw['tok_emb'][idx] + raw['pos_emb'][:T][None]
    tril = jnp.tril(jnp.ones((T, T), bool))
    for blk in raw['blocks']:
        h = _layernorm_ref(x, blk['ln1_g'], blk['ln1_b'])
        heads = []
        for hh in range(N_HEAD):
            q = h @ blk['wq'][hh].T
            k = h @ blk['wk'][hh].T
            v = h @ blk['wv'][hh].T
            wei = jnp.einsum('btd,bsd->bts', q, k) * ATT_SCALE
            wei = jnp.where(tril[None], wei, -jnp.inf)
            wei = jax.nn.softmax(wei, axis=-1)
            heads.append(jnp.einsum('bts,bsd->btd', wei, v))
        sa = jnp.concatenate(heads, -1) @ blk['wproj'].T + blk['bproj']
        x = x + sa
        h2 = _layernorm_ref(x, blk['ln2_g'], blk['ln2_b'])
        ff = jnp.maximum(h2 @ blk['w1'].T + blk['b1'], 0.0) @ blk['w2'].T + blk['b2']
        x = x + ff
    x = _layernorm_ref(x, raw['lnf_g'], raw['lnf_b'])
    return x @ raw['wlm'].T + raw['blm']


if __name__ == "__main__":
    root = jax.random.PRNGKey(0)
    k_param, k_idx1, k_tgt1, k_idx2 = jax.random.split(root, 4)

    raw = init_params(k_param)
    params_f32 = prepare_params(raw, param_dtype=jnp.float32)

    # -- small shape: B=2, T=8 (single row tile, grid over 2 batch elements) --------
    B1, T1 = 2, 8
    idx1 = jax.random.randint(k_idx1, (B1, T1), 0, VOCAB)
    tgt1 = jax.random.randint(k_tgt1, (B1, T1), 0, VOCAB)
    logits1, loss1 = forward(params_f32, idx1, targets=tgt1)
    jax.block_until_ready(logits1)

    ref1 = reference_forward(raw, idx1)
    ref_loss1 = _cross_entropy(ref1.reshape(B1 * T1, VOCAB), tgt1.reshape(-1))
    assert logits1.shape == (B1, T1, VOCAB)
    assert loss1 is not None
    assert jnp.allclose(logits1, ref1, atol=3e-2, rtol=3e-2), "f32 logits mismatch"
    assert jnp.allclose(loss1, ref_loss1, atol=3e-2, rtol=3e-2), "f32 loss mismatch"

    # -- larger shape: B=4, T=128 -> M=512 rows -> two 256-row tiles (v7x: both TCs) --
    B2, T2 = 4, BLOCK_SIZE
    idx2 = jax.random.randint(k_idx2, (B2, T2), 0, VOCAB)
    logits2, _ = forward(params_f32, idx2)
    jax.block_until_ready(logits2)
    ref2 = reference_forward(raw, idx2)
    assert jnp.allclose(logits2, ref2, atol=3e-2, rtol=3e-2), "tiled f32 mismatch"

    # -- bf16 activations + weights (halves dominant HBM bytes; f32 accumulation,
    #    LayerNorm, softmax and biases kept). Reduced-precision path -> loose check.
    params_bf16 = prepare_params(raw, param_dtype=jnp.bfloat16)
    logits3, _ = forward(params_bf16, idx2, act_dtype=jnp.bfloat16)
    jax.block_until_ready(logits3)
    assert jnp.allclose(logits3.astype(jnp.float32), ref2,
                        atol=1.5e-1, rtol=1.5e-1), "bf16 logits mismatch"

    print("KERNEL_OK")
</pallas_src>

<mosaic_0001>
module attributes {stable_mosaic.version = 11 : i64} {
  func.func @_attn_block_kernel(%arg0: i32, %arg1: memref<1x8x128xf32, #tpu.memory_space<vmem>>, %arg2: memref<1x128xf32, #tpu.memory_space<vmem>>, %arg3: memref<1x128xf32, #tpu.memory_space<vmem>>, %arg4: memref<128x768xf32, #tpu.memory_space<vmem>>, %arg5: memref<128x768xf32, #tpu.memory_space<vmem>>, %arg6: memref<128x768xf32, #tpu.memory_space<vmem>>, %arg7: memref<768x128xf32, #tpu.memory_space<vmem>>, %arg8: memref<1x128xf32, #tpu.memory_space<vmem>>, %arg9: memref<1x8x128xf32, #tpu.memory_space<vmem>>) attributes {dimension_semantics = [#tpu.dimension_semantics<parallel>], iteration_bounds = array<i64: 2>, scalar_prefetch = 0 : i64, scratch_operands = 0 : i64, tpu.core_type = #tpu.core_type<tc>, window_params = [{transform_indices = @transform_0, window_bounds = array<i64: 1, 8, 128>}, {pipeline_mode = #tpu.pipeline_mode<synchronous>, transform_indices = @transform_1, window_bounds = array<i64: 1, 128>}, {pipeline_mode = #tpu.pipeline_mode<synchronous>, transform_indices = @transform_2, window_bounds = array<i64: 1, 128>}, {pipeline_mode = #tpu.pipeline_mode<synchronous>, transform_indices = @transform_3, window_bounds = array<i64: 128, 768>}, {pipeline_mode = #tpu.pipeline_mode<synchronous>, transform_indices = @transform_4, window_bounds = array<i64: 128, 768>}, {pipeline_mode = #tpu.pipeline_mode<synchronous>, transform_indices = @transform_5, window_bounds = array<i64: 128, 768>}, {pipeline_mode = #tpu.pipeline_mode<synchronous>, transform_indices = @transform_6, window_bounds = array<i64: 768, 128>}, {pipeline_mode = #tpu.pipeline_mode<synchronous>, transform_indices = @transform_7, window_bounds = array<i64: 1, 128>}, {transform_indices = @transform_8, window_bounds = array<i64: 1, 8, 128>}]} {
    %c0 = arith.constant 0 : index
    %c0_0 = arith.constant 0 : index
    %c0_1 = arith.constant 0 : index
    %0 = vector.load %arg1[%c0, %c0_0, %c0_1] : memref<1x8x128xf32, #tpu.memory_space<vmem>>, vector<1x8x128xf32>
    %1 = vector.shape_cast %0 : vector<1x8x128xf32> to vector<8x128xf32>
    %c0_2 = arith.constant 0 : index
    %c0_3 = arith.constant 0 : index
    %2 = vector.load %arg2[%c0_2, %c0_3] : memref<1x128xf32, #tpu.memory_space<vmem>>, vector<1x128xf32>
    %c0_4 = arith.constant 0 : index
    %c0_5 = arith.constant 0 : index
    %3 = vector.load %arg3[%c0_4, %c0_5] : memref<1x128xf32, #tpu.memory_space<vmem>>, vector<1x128xf32>
    %cst = arith.constant dense<0.000000e+00> : vector<8xf32>
    %4 = vector.multi_reduction <add>, %1, %cst [1] : vector<8x128xf32> to vector<8xf32>
    %5 = vector.shape_cast %4 : vector<8xf32> to vector<8x1xf32>
    %6 = arith.mulf %1, %1 : vector<8x128xf32>
    %cst_6 = arith.constant dense<0.000000e+00> : vector<8xf32>
    %7 = vector.multi_reduction <add>, %6, %cst_6 [1] : vector<8x128xf32> to vector<8xf32>
    %8 = vector.shape_cast %7 : vector<8xf32> to vector<8x1xf32>
    %cst_7 = arith.constant 6.000000e+01 : f32
    %9 = vector.broadcast %cst_7 : f32 to vector<8x1xf32>
    %10 = arith.divf %5, %9 : vector<8x1xf32>
    %cst_8 = arith.constant 6.000000e+01 : f32
    %11 = vector.broadcast %cst_8 : f32 to vector<8x1xf32>
    %12 = arith.divf %8, %11 : vector<8x1xf32>
    %13 = arith.mulf %10, %10 : vector<8x1xf32>
    %14 = arith.subf %12, %13 : vector<8x1xf32>
    %cst_9 = arith.constant 9.99999974E-6 : f32
    %15 = vector.broadcast %cst_9 : f32 to vector<8x1xf32>
    %16 = arith.addf %14, %15 : vector<8x1xf32>
    %17 = math.rsqrt %16 : vector<8x1xf32>
    %18 = vector.broadcast %10 : vector<8x1xf32> to vector<8x128xf32>
    %19 = arith.subf %1, %18 : vector<8x128xf32>
    %20 = vector.broadcast %17 : vector<8x1xf32> to vector<8x128xf32>
    %21 = arith.mulf %19, %20 : vector<8x128xf32>
    %22 = vector.broadcast %2 : vector<1x128xf32> to vector<8x128xf32>
    %23 = arith.mulf %21, %22 : vector<8x128xf32>
    %24 = vector.broadcast %3 : vector<1x128xf32> to vector<8x128xf32>
    %25 = arith.addf %23, %24 : vector<8x128xf32>
    %c0_10 = arith.constant 0 : index
    %c0_11 = arith.constant 0 : index
    %26 = vector.load %arg4[%c0_10, %c0_11] : memref<128x768xf32, #tpu.memory_space<vmem>>, vector<128x768xf32>
    %cst_12 = arith.constant dense<0.000000e+00> : vector<8x768xf32>
    %27 = tpu.matmul %25, %26, %cst_12 {dimension_numbers = #tpu.dot_dimension_numbers<[1], [0], [0], [1], [0, 0, 1, 1], [], []>} : vector<8x128xf32>, vector<128x768xf32>, vector<8x768xf32> -> vector<8x768xf32>
    %c0_13 = arith.constant 0 : index
    %c0_14 = arith.constant 0 : index
    %28 = vector.load %arg5[%c0_13, %c0_14] : memref<128x768xf32, #tpu.memory_space<vmem>>, vector<128x768xf32>
    %cst_15 = arith.constant dense<0.000000e+00> : vector<8x768xf32>
    %29 = tpu.matmul %25, %28, %cst_15 {dimension_numbers = #tpu.dot_dimension_numbers<[1], [0], [0], [1], [0, 0, 1, 1], [], []>} : vector<8x128xf32>, vector<128x768xf32>, vector<8x768xf32> -> vector<8x768xf32>
    %c0_16 = arith.constant 0 : index
    %c0_17 = arith.constant 0 : index
    %30 = vector.load %arg6[%c0_16, %c0_17] : memref<128x768xf32, #tpu.memory_space<vmem>>, vector<128x768xf32>
    %cst_18 = arith.constant dense<0.000000e+00> : vector<8x768xf32>
    %31 = tpu.matmul %25, %30, %cst_18 {dimension_numbers = #tpu.dot_dimension_numbers<[1], [0], [0], [1], [0, 0, 1, 1], [], []>} : vector<8x128xf32>, vector<128x768xf32>, vector<8x768xf32> -> vector<8x768xf32>
    %32 = tpu.iota {dimensions = array<i32: 0>} : vector<8x8xi32>
    %33 = tpu.iota {dimensions = array<i32: 1>} : vector<8x8xi32>
    %34 = arith.cmpi sle, %33, %32 : vector<8x8xi32>
    %cst_19 = arith.constant 0.000000e+00 : f32
    %35 = vector.broadcast %cst_19 : f32 to vector<8x128xf32>
    %36 = vector.extract_strided_slice %27 {offsets = [0, 0], sizes = [8, 128], strides = [1, 1]} : vector<8x768xf32> to vector<8x128xf32>
    %37 = vector.extract_strided_slice %29 {offsets = [0, 0], sizes = [8, 128], strides = [1, 1]} : vector<8x768xf32> to vector<8x128xf32>
    %38 = vector.extract_strided_slice %31 {offsets = [0, 0], sizes = [8, 128], strides = [1, 1]} : vector<8x768xf32> to vector<8x128xf32>
    %cst_20 = arith.constant dense<0.000000e+00> : vector<8x8xf32>
    %39 = tpu.matmul %36, %37, %cst_20 {dimension_numbers = #tpu.dot_dimension_numbers<[1], [1], [0], [0], [0, 0, 1, 0], [], []>} : vector<8x128xf32>, vector<8x128xf32>, vector<8x8xf32> -> vector<8x8xf32>
    %cst_21 = arith.constant 0.129099444 : f32
    %40 = vector.broadcast %cst_21 : f32 to vector<8x8xf32>
    %41 = arith.mulf %39, %40 : vector<8x8xf32>
    %cst_22 = arith.constant -1.000000e+30 : f32
    %42 = vector.broadcast %cst_22 : f32 to vector<8x8xf32>
    %43 = arith.select %34, %41, %42 : vector<8x8xi1>, vector<8x8xf32>
    %cst_23 = arith.constant dense<0xFF800000> : vector<8xf32>
    %44 = vector.multi_reduction <maximumf>, %43, %cst_23 [1] : vector<8x8xf32> to vector<8xf32>
    %45 = vector.shape_cast %44 : vector<8xf32> to vector<8x1xf32>
    %46 = vector.broadcast %45 : vector<8x1xf32> to vector<8x8xf32>
    %47 = arith.subf %43, %46 : vector<8x8xf32>
    %48 = math.exp %47 : vector<8x8xf32>
    %cst_24 = arith.constant dense<0.000000e+00> : vector<8xf32>
    %49 = vector.multi_reduction <add>, %48, %cst_24 [1] : vector<8x8xf32> to vector<8xf32>
    %50 = vector.shape_cast %49 : vector<8xf32> to vector<8x1xf32>
    %51 = vector.broadcast %50 : vector<8x1xf32> to vector<8x8xf32>
    %52 = arith.divf %48, %51 : vector<8x8xf32>
    %cst_25 = arith.constant dense<0.000000e+00> : vector<8x128xf32>
    %53 = tpu.matmul %52, %38, %cst_25 {dimension_numbers = #tpu.dot_dimension_numbers<[1], [0], [0], [1], [0, 0, 1, 1], [], []>} : vector<8x8xf32>, vector<8x128xf32>, vector<8x128xf32> -> vector<8x128xf32>
    %c0_26 = arith.constant 0 : index
    %c0_27 = arith.constant 0 : index
    %54 = vector.load %arg7[%c0_26, %c0_27] : memref<768x128xf32, #tpu.memory_space<vmem>>, vector<128x128xf32>
    %cst_28 = arith.constant dense<0.000000e+00> : vector<8x128xf32>
    %55 = tpu.matmul %53, %54, %cst_28 {dimension_numbers = #tpu.dot_dimension_numbers<[1], [0], [0], [1], [0, 0, 1, 1], [], []>} : vector<8x128xf32>, vector<128x128xf32>, vector<8x128xf32> -> vector<8x128xf32>
    %56 = arith.addf %35, %55 : vector<8x128xf32>
    %57 = vector.extract_strided_slice %27 {offsets = [0, 128], sizes = [8, 128], strides = [1, 1]} : vector<8x768xf32> to vector<8x128xf32>
    %58 = vector.extract_strided_slice %29 {offsets = [0, 128], sizes = [8, 128], strides = [1, 1]} : vector<8x768xf32> to vector<8x128xf32>
    %59 = vector.extract_strided_slice %31 {offsets = [0, 128], sizes = [8, 128], strides = [1, 1]} : vector<8x768xf32> to vector<8x128xf32>
    %cst_29 = arith.constant dense<0.000000e+00> : vector<8x8xf32>
    %60 = tpu.matmul %57, %58, %cst_29 {dimension_numbers = #tpu.dot_dimension_numbers<[1], [1], [0], [0], [0, 0, 1, 0], [], []>} : vector<8x128xf32>, vector<8x128xf32>, vector<8x8xf32> -> vector<8x8xf32>
    %cst_30 = arith.constant 0.129099444 : f32
    %61 = vector.broadcast %cst_30 : f32 to vector<8x8xf32>
    %62 = arith.mulf %60, %61 : vector<8x8xf32>
    %cst_31 = arith.constant -1.000000e+30 : f32
    %63 = vector.broadcast %cst_31 : f32 to vector<8x8xf32>
    %64 = arith.select %34, %62, %63 : vector<8x8xi1>, vector<8x8xf32>
    %cst_32 = arith.constant dense<0xFF800000> : vector<8xf32>
    %65 = vector.multi_reduction <maximumf>, %64, %cst_32 [1] : vector<8x8xf32> to vector<8xf32>
    %66 = vector.shape_cast %65 : vector<8xf32> to vector<8x1xf32>
    %67 = vector.broadcast %66 : vector<8x1xf32> to vector<8x8xf32>
    %68 = arith.subf %64, %67 : vector<8x8xf32>
    %69 = math.exp %68 : vector<8x8xf32>
    %cst_33 = arith.constant dense<0.000000e+00> : vector<8xf32>
    %70 = vector.multi_reduction <add>, %69, %cst_33 [1] : vector<8x8xf32> to vector<8xf32>
    %71 = vector.shape_cast %70 : vector<8xf32> to vector<8x1xf32>
    %72 = vector.broadcast %71 : vector<8x1xf32> to vector<8x8xf32>
    %73 = arith.divf %69, %72 : vector<8x8xf32>
    %cst_34 = arith.constant dense<0.000000e+00> : vector<8x128xf32>
    %74 = tpu.matmul %73, %59, %cst_34 {dimension_numbers = #tpu.dot_dimension_numbers<[1], [0], [0], [1], [0, 0, 1, 1], [], []>} : vector<8x8xf32>, vector<8x128xf32>, vector<8x128xf32> -> vector<8x128xf32>
    %c128 = arith.constant 128 : index
    %c0_35 = arith.constant 0 : index
    %75 = vector.load %arg7[%c128, %c0_35] : memref<768x128xf32, #tpu.memory_space<vmem>>, vector<128x128xf32>
    %cst_36 = arith.constant dense<0.000000e+00> : vector<8x128xf32>
    %76 = tpu.matmul %74, %75, %cst_36 {dimension_numbers = #tpu.dot_dimension_numbers<[1], [0], [0], [1], [0, 0, 1, 1], [], []>} : vector<8x128xf32>, vector<128x128xf32>, vector<8x128xf32> -> vector<8x128xf32>
    %77 = arith.addf %56, %76 : vector<8x128xf32>
    %78 = vector.extract_strided_slice %27 {offsets = [0, 256], sizes = [8, 128], strides = [1, 1]} : vector<8x768xf32> to vector<8x128xf32>
    %79 = vector.extract_strided_slice %29 {offsets = [0, 256], sizes = [8, 128], strides = [1, 1]} : vector<8x768xf32> to vector<8x128xf32>
    %80 = vector.extract_strided_slice %31 {offsets = [0, 256], sizes = [8, 128], strides = [1, 1]} : vector<8x768xf32> to vector<8x128xf32>
    %cst_37 = arith.constant dense<0.000000e+00> : vector<8x8xf32>
    %81 = tpu.matmul %78, %79, %cst_37 {dimension_numbers = #tpu.dot_dimension_numbers<[1], [1], [0], [0], [0, 0, 1, 0], [], []>} : vector<8x128xf32>, vector<8x128xf32>, vector<8x8xf32> -> vector<8x8xf32>
    %cst_38 = arith.constant 0.129099444 : f32
    %82 = vector.broadcast %cst_38 : f32 to vector<8x8xf32>
    %83 = arith.mulf %81, %82 : vector<8x8xf32>
    %cst_39 = arith.constant -1.000000e+30 : f32
    %84 = vector.broadcast %cst_39 : f32 to vector<8x8xf32>
    %85 = arith.select %34, %83, %84 : vector<8x8xi1>, vector<8x8xf32>
    %cst_40 = arith.constant dense<0xFF800000> : vector<8xf32>
    %86 = vector.multi_reduction <maximumf>, %85, %cst_40 [1] : vector<8x8xf32> to vector<8xf32>
    %87 = vector.shape_cast %86 : vector<8xf32> to vector<8x1xf32>
    %88 = vector.broadcast %87 : vector<8x1xf32> to vector<8x8xf32>
    %89 = arith.subf %85, %88 : vector<8x8xf32>
    %90 = math.exp %89 : vector<8x8xf32>
    %cst_41 = arith.constant dense<0.000000e+00> : vector<8xf32>
    %91 = vector.multi_reduction <add>, %90, %cst_41 [1] : vector<8x8xf32> to vector<8xf32>
    %92 = vector.shape_cast %91 : vector<8xf32> to vector<8x1xf32>
    %93 = vector.broadcast %92 : vector<8x1xf32> to vector<8x8xf32>
    %94 = arith.divf %90, %93 : vector<8x8xf32>
    %cst_42 = arith.constant dense<0.000000e+00> : vector<8x128xf32>
    %95 = tpu.matmul %94, %80, %cst_42 {dimension_numbers = #tpu.dot_dimension_numbers<[1], [0], [0], [1], [0, 0, 1, 1], [], []>} : vector<8x8xf32>, vector<8x128xf32>, vector<8x128xf32> -> vector<8x128xf32>
    %c256 = arith.constant 256 : index
    %c0_43 = arith.constant 0 : index
    %96 = vector.load %arg7[%c256, %c0_43] : memref<768x128xf32, #tpu.memory_space<vmem>>, vector<128x128xf32>
    %cst_44 = arith.constant dense<0.000000e+00> : vector<8x128xf32>
    %97 = tpu.matmul %95, %96, %cst_44 {dimension_numbers = #tpu.dot_dimension_numbers<[1], [0], [0], [1], [0, 0, 1, 1], [], []>} : vector<8x128xf32>, vector<128x128xf32>, vector<8x128xf32> -> vector<8x128xf32>
    %98 = arith.addf %77, %97 : vector<8x128xf32>
    %99 = vector.extract_strided_slice %27 {offsets = [0, 384], sizes = [8, 128], strides = [1, 1]} : vector<8x768xf32> to vector<8x128xf32>
    %100 = vector.extract_strided_slice %29 {offsets = [0, 384], sizes = [8, 128], strides = [1, 1]} : vector<8x768xf32> to vector<8x128xf32>
    %101 = vector.extract_strided_slice %31 {offsets = [0, 384], sizes = [8, 128], strides = [1, 1]} : vector<8x768xf32> to vector<8x128xf32>
    %cst_45 = arith.constant dense<0.000000e+00> : vector<8x8xf32>
    %102 = tpu.matmul %99, %100, %cst_45 {dimension_numbers = #tpu.dot_dimension_numbers<[1], [1], [0], [0], [0, 0, 1, 0], [], []>} : vector<8x128xf32>, vector<8x128xf32>, vector<8x8xf32> -> vector<8x8xf32>
    %cst_46 = arith.constant 0.129099444 : f32
    %103 = vector.broadcast %cst_46 : f32 to vector<8x8xf32>
    %104 = arith.mulf %102, %103 : vector<8x8xf32>
    %cst_47 = arith.constant -1.000000e+30 : f32
    %105 = vector.broadcast %cst_47 : f32 to vector<8x8xf32>
    %106 = arith.select %34, %104, %105 : vector<8x8xi1>, vector<8x8xf32>
    %cst_48 = arith.constant dense<0xFF800000> : vector<8xf32>
    %107 = vector.multi_reduction <maximumf>, %106, %cst_48 [1] : vector<8x8xf32> to vector<8xf32>
    %108 = vector.shape_cast %107 : vector<8xf32> to vector<8x1xf32>
    %109 = vector.broadcast %108 : vector<8x1xf32> to vector<8x8xf32>
    %110 = arith.subf %106, %109 : vector<8x8xf32>
    %111 = math.exp %110 : vector<8x8xf32>
    %cst_49 = arith.constant dense<0.000000e+00> : vector<8xf32>
    %112 = vector.multi_reduction <add>, %111, %cst_49 [1] : vector<8x8xf32> to vector<8xf32>
    %113 = vector.shape_cast %112 : vector<8xf32> to vector<8x1xf32>
    %114 = vector.broadcast %113 : vector<8x1xf32> to vector<8x8xf32>
    %115 = arith.divf %111, %114 : vector<8x8xf32>
    %cst_50 = arith.constant dense<0.000000e+00> : vector<8x128xf32>
    %116 = tpu.matmul %115, %101, %cst_50 {dimension_numbers = #tpu.dot_dimension_numbers<[1], [0], [0], [1], [0, 0, 1, 1], [], []>} : vector<8x8xf32>, vector<8x128xf32>, vector<8x128xf32> -> vector<8x128xf32>
    %c384 = arith.constant 384 : index
    %c0_51 = arith.constant 0 : index
    %117 = vector.load %arg7[%c384, %c0_51] : memref<768x128xf32, #tpu.memory_space<vmem>>, vector<128x128xf32>
    %cst_52 = arith.constant dense<0.000000e+00> : vector<8x128xf32>
    %118 = tpu.matmul %116, %117, %cst_52 {dimension_numbers = #tpu.dot_dimension_numbers<[1], [0], [0], [1], [0, 0, 1, 1], [], []>} : vector<8x128xf32>, vector<128x128xf32>, vector<8x128xf32> -> vector<8x128xf32>
    %119 = arith.addf %98, %118 : vector<8x128xf32>
    %120 = vector.extract_strided_slice %27 {offsets = [0, 512], sizes = [8, 128], strides = [1, 1]} : vector<8x768xf32> to vector<8x128xf32>
    %121 = vector.extract_strided_slice %29 {offsets = [0, 512], sizes = [8, 128], strides = [1, 1]} : vector<8x768xf32> to vector<8x128xf32>
    %122 = vector.extract_strided_slice %31 {offsets = [0, 512], sizes = [8, 128], strides = [1, 1]} : vector<8x768xf32> to vector<8x128xf32>
    %cst_53 = arith.constant dense<0.000000e+00> : vector<8x8xf32>
    %123 = tpu.matmul %120, %121, %cst_53 {dimension_numbers = #tpu.dot_dimension_numbers<[1], [1], [0], [0], [0, 0, 1, 0], [], []>} : vector<8x128xf32>, vector<8x128xf32>, vector<8x8xf32> -> vector<8x8xf32>
    %cst_54 = arith.constant 0.129099444 : f32
    %124 = vector.broadcast %cst_54 : f32 to vector<8x8xf32>
    %125 = arith.mulf %123, %124 : vector<8x8xf32>
    %cst_55 = arith.constant -1.000000e+30 : f32
    %126 = vector.broadcast %cst_55 : f32 to vector<8x8xf32>
    %127 = arith.select %34, %125, %126 : vector<8x8xi1>, vector<8x8xf32>
    %cst_56 = arith.constant dense<0xFF800000> : vector<8xf32>
    %128 = vector.multi_reduction <maximumf>, %127, %cst_56 [1] : vector<8x8xf32> to vector<8xf32>
    %129 = vector.shape_cast %128 : vector<8xf32> to vector<8x1xf32>
    %130 = vector.broadcast %129 : vector<8x1xf32> to vector<8x8xf32>
    %131 = arith.subf %127, %130 : vector<8x8xf32>
    %132 = math.exp %131 : vector<8x8xf32>
    %cst_57 = arith.constant dense<0.000000e+00> : vector<8xf32>
    %133 = vector.multi_reduction <add>, %132, %cst_57 [1] : vector<8x8xf32> to vector<8xf32>
    %134 = vector.shape_cast %133 : vector<8xf32> to vector<8x1xf32>
    %135 = vector.broadcast %134 : vector<8x1xf32> to vector<8x8xf32>
    %136 = arith.divf %132, %135 : vector<8x8xf32>
    %cst_58 = arith.constant dense<0.000000e+00> : vector<8x128xf32>
    %137 = tpu.matmul %136, %122, %cst_58 {dimension_numbers = #tpu.dot_dimension_numbers<[1], [0], [0], [1], [0, 0, 1, 1], [], []>} : vector<8x8xf32>, vector<8x128xf32>, vector<8x128xf32> -> vector<8x128xf32>
    %c512 = arith.constant 512 : index
    %c0_59 = arith.constant 0 : index
    %138 = vector.load %arg7[%c512, %c0_59] : memref<768x128xf32, #tpu.memory_space<vmem>>, vector<128x128xf32>
    %cst_60 = arith.constant dense<0.000000e+00> : vector<8x128xf32>
    %139 = tpu.matmul %137, %138, %cst_60 {dimension_numbers = #tpu.dot_dimension_numbers<[1], [0], [0], [1], [0, 0, 1, 1], [], []>} : vector<8x128xf32>, vector<128x128xf32>, vector<8x128xf32> -> vector<8x128xf32>
    %140 = arith.addf %119, %139 : vector<8x128xf32>
    %141 = vector.extract_strided_slice %27 {offsets = [0, 640], sizes = [8, 128], strides = [1, 1]} : vector<8x768xf32> to vector<8x128xf32>
    %142 = vector.extract_strided_slice %29 {offsets = [0, 640], sizes = [8, 128], strides = [1, 1]} : vector<8x768xf32> to vector<8x128xf32>
    %143 = vector.extract_strided_slice %31 {offsets = [0, 640], sizes = [8, 128], strides = [1, 1]} : vector<8x768xf32> to vector<8x128xf32>
    %cst_61 = arith.constant dense<0.000000e+00> : vector<8x8xf32>
    %144 = tpu.matmul %141, %142, %cst_61 {dimension_numbers = #tpu.dot_dimension_numbers<[1], [1], [0], [0], [0, 0, 1, 0], [], []>} : vector<8x128xf32>, vector<8x128xf32>, vector<8x8xf32> -> vector<8x8xf32>
    %cst_62 = arith.constant 0.129099444 : f32
    %145 = vector.broadcast %cst_62 : f32 to vector<8x8xf32>
    %146 = arith.mulf %144, %145 : vector<8x8xf32>
    %cst_63 = arith.constant -1.000000e+30 : f32
    %147 = vector.broadcast %cst_63 : f32 to vector<8x8xf32>
    %148 = arith.select %34, %146, %147 : vector<8x8xi1>, vector<8x8xf32>
    %cst_64 = arith.constant dense<0xFF800000> : vector<8xf32>
    %149 = vector.multi_reduction <maximumf>, %148, %cst_64 [1] : vector<8x8xf32> to vector<8xf32>
    %150 = vector.shape_cast %149 : vector<8xf32> to vector<8x1xf32>
    %151 = vector.broadcast %150 : vector<8x1xf32> to vector<8x8xf32>
    %152 = arith.subf %148, %151 : vector<8x8xf32>
    %153 = math.exp %152 : vector<8x8xf32>
    %cst_65 = arith.constant dense<0.000000e+00> : vector<8xf32>
    %154 = vector.multi_reduction <add>, %153, %cst_65 [1] : vector<8x8xf32> to vector<8xf32>
    %155 = vector.shape_cast %154 : vector<8xf32> to vector<8x1xf32>
    %156 = vector.broadcast %155 : vector<8x1xf32> to vector<8x8xf32>
    %157 = arith.divf %153, %156 : vector<8x8xf32>
    %cst_66 = arith.constant dense<0.000000e+00> : vector<8x128xf32>
    %158 = tpu.matmul %157, %143, %cst_66 {dimension_numbers = #tpu.dot_dimension_numbers<[1], [0], [0], [1], [0, 0, 1, 1], [], []>} : vector<8x8xf32>, vector<8x128xf32>, vector<8x128xf32> -> vector<8x128xf32>
    %c640 = arith.constant 640 : index
    %c0_67 = arith.constant 0 : index
    %159 = vector.load %arg7[%c640, %c0_67] : memref<768x128xf32, #tpu.memory_space<vmem>>, vector<128x128xf32>
    %cst_68 = arith.constant dense<0.000000e+00> : vector<8x128xf32>
    %160 = tpu.matmul %158, %159, %cst_68 {dimension_numbers = #tpu.dot_dimension_numbers<[1], [0], [0], [1], [0, 0, 1, 1], [], []>} : vector<8x128xf32>, vector<128x128xf32>, vector<8x128xf32> -> vector<8x128xf32>
    %161 = arith.addf %140, %160 : vector<8x128xf32>
    %c0_69 = arith.constant 0 : index
    %c0_70 = arith.constant 0 : index
    %162 = vector.load %arg8[%c0_69, %c0_70] : memref<1x128xf32, #tpu.memory_space<vmem>>, vector<1x128xf32>
    %163 = vector.broadcast %162 : vector<1x128xf32> to vector<8x128xf32>
    %164 = arith.addf %161, %163 : vector<8x128xf32>
    %165 = arith.addf %1, %164 : vector<8x128xf32>
    %c0_71 = arith.constant 0 : index
    %c0_72 = arith.constant 0 : index
    %c0_73 = arith.constant 0 : index
    %166 = vector.load %arg9[%c0_71, %c0_72, %c0_73] : memref<1x8x128xf32, #tpu.memory_space<vmem>>, vector<1x8x128xf32>
    %167 = vector.shape_cast %166 : vector<1x8x128xf32> to vector<8x128xf32>
    %168 = vector.shape_cast %165 : vector<8x128xf32> to vector<1x8x128xf32>
    tpu.vector_store %arg9[%c0_71, %c0_72, %c0_73], %168 {strides = array<i32>} : memref<1x8x128xf32, #tpu.memory_space<vmem>>, vector<1x8x128xf32>,
    return
  }
  func.func @transform_0(%arg0: i32) -> (i32, i32, i32) {
    %c0_i32 = arith.constant 0 : i32
    %c0_i32_0 = arith.constant 0 : i32
    %c0_i32_1 = arith.constant 0 : i32
    return %arg0, %c0_i32, %c0_i32_0 : i32, i32, i32
  }
  func.func @transform_1(%arg0: i32) -> (i32, i32) {
    %c0_i32 = arith.constant 0 : i32
    %c0_i32_0 = arith.constant 0 : i32
    %c0_i32_1 = arith.constant 0 : i32
    return %c0_i32, %c0_i32_0 : i32, i32
  }
  func.func @transform_2(%arg0: i32) -> (i32, i32) {
    %c0_i32 = arith.constant 0 : i32
    %c0_i32_0 = arith.constant 0 : i32
    %c0_i32_1 = arith.constant 0 : i32
    return %c0_i32, %c0_i32_0 : i32, i32
  }
  func.func @transform_3(%arg0: i32) -> (i32, i32) {
    %c0_i32 = arith.constant 0 : i32
    %c0_i32_0 = arith.constant 0 : i32
    %c0_i32_1 = arith.constant 0 : i32
    return %c0_i32, %c0_i32_0 : i32, i32
  }
  func.func @transform_4(%arg0: i32) -> (i32, i32) {
    %c0_i32 = arith.constant 0 : i32
    %c0_i32_0 = arith.constant 0 : i32
    %c0_i32_1 = arith.constant 0 : i32
    return %c0_i32, %c0_i32_0 : i32, i32
  }
  func.func @transform_5(%arg0: i32) -> (i32, i32) {
    %c0_i32 = arith.constant 0 : i32
    %c0_i32_0 = arith.constant 0 : i32
    %c0_i32_1 = arith.constant 0 : i32
    return %c0_i32, %c0_i32_0 : i32, i32
  }
  func.func @transform_6(%arg0: i32) -> (i32, i32) {
    %c0_i32 = arith.constant 0 : i32
    %c0_i32_0 = arith.constant 0 : i32
    %c0_i32_1 = arith.constant 0 : i32
    return %c0_i32, %c0_i32_0 : i32, i32
  }
  func.func @transform_7(%arg0: i32) -> (i32, i32) {
    %c0_i32 = arith.constant 0 : i32
    %c0_i32_0 = arith.constant 0 : i32
    %c0_i32_1 = arith.constant 0 : i32
    return %c0_i32, %c0_i32_0 : i32, i32
  }
  func.func @transform_8(%arg0: i32) -> (i32, i32, i32) {
    %c0_i32 = arith.constant 0 : i32
    %c0_i32_0 = arith.constant 0 : i32
    %c0_i32_1 = arith.constant 0 : i32
    return %arg0, %c0_i32, %c0_i32_0 : i32, i32, i32
  }
}

</mosaic_0001>

<llo_original>
// kernel: tpu_custom_call.1
$region0: #{tpu_custom_call.1}
  #allocation0 [shape = 'u32[]', space=smem, size = 0x4, offset = 0x4, fixed_abs, tag = 'smem constant byte address 0x4 - core index']
  #allocation1 [shape = 'u32[144,128]{1,0:T(1,128)}', space=vmem, size = 0x12000, scoped, tag = 'internal scratch']
  %s0 = inlined_call_operand.hbm [shape: f32[2,8,128], index: 0, kind: input, shape index: {}]
  %s1 = inlined_call_operand.vmem [shape: f32[1,128], index: 1, kind: input, shape index: {}]
  %s2 = inlined_call_operand.vmem [shape: f32[1,128], index: 2, kind: input, shape index: {}]
  %s3 = inlined_call_operand.hbm [shape: f32[128,768], index: 3, kind: input, shape index: {}]
  %s4 = inlined_call_operand.hbm [shape: f32[128,768], index: 4, kind: input, shape index: {}]
  %s5 = inlined_call_operand.hbm [shape: f32[128,768], index: 5, kind: input, shape index: {}]
  %s6 = inlined_call_operand.hbm [shape: f32[768,128], index: 6, kind: input, shape index: {}]
  %s7 = inlined_call_operand.vmem [shape: f32[1,128], index: 7, kind: input, shape index: {}]
  %s8 = inlined_call_operand.hbm [shape: f32[2,8,128], index: 8, kind: output, shape index: {}]
  %s9 = sld [smem:[#allocation0]]
  $region85: #{tpu_custom_call.1} parent=0
    _
  %s11 = ssub.s32 1, %s9
  %s12 = scalar_select 0, %s11, %s9
  $region1: #{tpu_custom_call.1} parent=0
    #allocation2 [shape = 'u8[8192]{0}', space=vmem, size = 0x2000, scoped, tag = 'input window, operand 0']
    #allocation3 [shape = 's32[2]{0}', space=sflag, size = 0x8, scoped, tag = 'scoped memory for tpu_custom_call.1']
    #allocation4 [shape = 's32[2]{0}', space=sflag, size = 0x8, scoped, tag = 'scoped memory for tpu_custom_call.1']
    #allocation5 [shape = 'u8[393216]{0}', space=vmem, size = 0x60000, scoped, tag = 'input window, operand 3, single buffered']
    #allocation6 [shape = 's32[1]{0}', space=sflag, size = 0x4, scoped, tag = 'scoped memory for tpu_custom_call.1']
    #allocation7 [shape = 'u8[393216]{0}', space=vmem, size = 0x60000, scoped, tag = 'input window, operand 4, single buffered']
    #allocation8 [shape = 'u8[393216]{0}', space=vmem, size = 0x60000, scoped, tag = 'input window, operand 5, single buffered']
    #allocation9 [shape = 's32[1]{0}', space=sflag, size = 0x4, scoped, tag = 'scoped memory for tpu_custom_call.1']
    #allocation10 [shape = 'u8[393216]{0}', space=vmem, size = 0x60000, scoped, tag = 'input window, operand 6, single buffered']
    #allocation11 [shape = 'u8[8192]{0}', space=vmem, size = 0x2000, scoped, tag = 'output window, operand 0']
    %13 = vsyncpa [#allocation3], 0
    %s14 = scalar_lea.sflag [#allocation3], 1
    %15 = vsyncpa %s14, 0
    %16 = vsyncpa [#allocation6], 0
    %17 = vsyncpa [#allocation9], 0
    %18 = vsyncpa [#allocation4], 0
    %s19 = scalar_lea.sflag [#allocation4], 1
    %20 = vsyncpa %s19, 0
    loop: start=0, step=1, limit=4
    $region2: #{tpu_custom_call.1} parent=1 // loop_pre_header
      _
    $region3: #{tpu_custom_call.1} parent=1 // loop_header
      %s22 = sphi 0, %s26
      %p23 = scmp.ge.s32.totalorder %s22, 4
      %s32 = sphi 0, %s34
      %s35 = sphi 0, %s32
      %s36 = sphi 0, %s35
      %s52 = sphi 0, %s36
      %s56 = sphi 0, %s56
      %s58 = sphi 0, %s56
      %s59 = sphi 0, %s58
      %s73 = sphi 0, %s59
      %s77 = sphi 0, %s77
      %s79 = sphi 0, %s77
      %s80 = sphi 0, %s79
      %s94 = sphi 0, %s80
      %s98 = sphi 0, %s98
      %s100 = sphi 0, %s98
      %s101 = sphi 0, %s100
      %s115 = sphi 0, %s101
      %s119 = sphi 0, %s119
      %s121 = sphi 0, %s119
      %s122 = sphi 0, %s121
      %s136 = sphi 0, %s122
      %s140 = sphi 0, %s140
      %s142 = sphi 0, %s140
      %s143 = sphi 0, %s142
      %s157 = sphi 0, %s143
      %s161 = sphi 0, %s161
      %s163 = sphi 0, %s161
      %s164 = sphi 0, %s163
      %s178 = sphi 0, %s164
      %s182 = sphi 0, %s182
      %s184 = sphi 0, %s182
      %s185 = sphi 0, %s184
      %s199 = sphi 0, %s185
      %s205 = sphi 0, %s207
      %s208 = sphi 0, %s205
      %s209 = sphi 0, %s208
      %s225 = sphi 0, %s209
    $region4: #{tpu_custom_call.1} parent=1 // loop_header_branch
      %25 = sbr.rel (%p23) target = $region8
    $region5: #{tpu_custom_call.1} parent=1 // loop_body
      %s27 = ssub.s32 %s22, 1
      %s28 = ssub.s32 %s22, 2
      %s29 = sadd.s32 %s22, 1
      %s30 = ssub.s32 %s22, %s29
      %p31 = scmp.eq.s32.totalorder %s30, 0
      %s33 = sadd.s32 %s32, 1
      %s34 = scalar_select %p31, %s32, %s33
      %p37 = pneg %p31
      %p38 = scmp.eq.s32.totalorder %s22, 1
      %p39 = por %p37, %p38
      %p40 = scmp.ne.s32.totalorder %s32, %s35
      %p41 = scmp.eq.s32.totalorder %s22, 0
      %p42 = por %p40, %p41
      %p43 = scmp.ne.s32.totalorder %s32, %s35
      %p44 = scmp.eq.s32.totalorder %s27, 1
      %p45 = por %p43, %p44
      %p46 = scmp.ne.s32.totalorder %s35, %s36
      %p47 = scmp.eq.s32.totalorder %s27, 0
      %p48 = por %p46, %p47
      %p49 = scmp.ne.s32.totalorder %s35, %s36
      %p50 = scmp.eq.s32.totalorder %s28, 1
      %p51 = por %p49, %p50
      %p53 = scmp.ne.s32.totalorder %s36, %s52
      %p54 = scmp.eq.s32.totalorder %s28, 0
      %p55 = por %p53, %p54
      %s57 = sadd.s32 %s56, 1
      %p60 = scmp.eq.s32.totalorder %s22, 1
      %p61 = scmp.ne.s32.totalorder %s56, %s58
      %p62 = scmp.eq.s32.totalorder %s22, 0
      %p63 = por %p61, %p62
      %p64 = scmp.ne.s32.totalorder %s56, %s58
      %p65 = scmp.eq.s32.totalorder %s27, 1
      %p66 = por %p64, %p65
      %p67 = scmp.ne.s32.totalorder %s58, %s59
      %p68 = scmp.eq.s32.totalorder %s27, 0
      %p69 = por %p67, %p68
      %p70 = scmp.ne.s32.totalorder %s58, %s59
      %p71 = scmp.eq.s32.totalorder %s28, 1
      %p72 = por %p70, %p71
      %p74 = scmp.ne.s32.totalorder %s59, %s73
      %p75 = scmp.eq.s32.totalorder %s28, 0
      %p76 = por %p74, %p75
      %s78 = sadd.s32 %s77, 1
      %p81 = scmp.eq.s32.totalorder %s22, 1
      %p82 = scmp.ne.s32.totalorder %s77, %s79
      %p83 = scmp.eq.s32.totalorder %s22, 0
      %p84 = por %p82, %p83
      %p85 = scmp.ne.s32.totalorder %s77, %s79
      %p86 = scmp.eq.s32.totalorder %s27, 1
      %p87 = por %p85, %p86
      %p88 = scmp.ne.s32.totalorder %s79, %s80
      %p89 = scmp.eq.s32.totalorder %s27, 0
      %p90 = por %p88, %p89
      %p91 = scmp.ne.s32.totalorder %s79, %s80
      %p92 = scmp.eq.s32.totalorder %s28, 1
      %p93 = por %p91, %p92
      %p95 = scmp.ne.s32.totalorder %s80, %s94
      %p96 = scmp.eq.s32.totalorder %s28, 0
      %p97 = por %p95, %p96
      %s99 = sadd.s32 %s98, 1
      %p102 = scmp.eq.s32.totalorder %s22, 1
      %p103 = scmp.ne.s32.totalorder %s98, %s100
      %p104 = scmp.eq.s32.totalorder %s22, 0
      %p105 = por %p103, %p104
      %p106 = scmp.ne.s32.totalorder %s98, %s100
      %p107 = scmp.eq.s32.totalorder %s27, 1
      %p108 = por %p106, %p107
      %p109 = scmp.ne.s32.totalorder %s100, %s101
      %p110 = scmp.eq.s32.totalorder %s27, 0
      %p111 = por %p109, %p110
      %p112 = scmp.ne.s32.totalorder %s100, %s101
      %p113 = scmp.eq.s32.totalorder %s28, 1
      %p114 = por %p112, %p113
      %p116 = scmp.ne.s32.totalorder %s101, %s115
      %p117 = scmp.eq.s32.totalorder %s28, 0
      %p118 = por %p116, %p117
      %s120 = sadd.s32 %s119, 1
      %p123 = scmp.eq.s32.totalorder %s22, 1
      %p124 = scmp.ne.s32.totalorder %s119, %s121
      %p125 = scmp.eq.s32.totalorder %s22, 0
      %p126 = por %p124, %p125
      %p127 = scmp.ne.s32.totalorder %s119, %s121
      %p128 = scmp.eq.s32.totalorder %s27, 1
      %p129 = por %p127, %p128
      %p130 = scmp.ne.s32.totalorder %s121, %s122
      %p131 = scmp.eq.s32.totalorder %s27, 0
      %p132 = por %p130, %p131
      %p133 = scmp.ne.s32.totalorder %s121, %s122
      %p134 = scmp.eq.s32.totalorder %s28, 1
      %p135 = por %p133, %p134
      %p137 = scmp.ne.s32.totalorder %s122, %s136
      %p138 = scmp.eq.s32.totalorder %s28, 0
      %p139 = por %p137, %p138
      %s141 = sadd.s32 %s140, 1
      %p144 = scmp.eq.s32.totalorder %s22, 1
      %p145 = scmp.ne.s32.totalorder %s140, %s142
      %p146 = scmp.eq.s32.totalorder %s22, 0
      %p147 = por %p145, %p146
      %p148 = scmp.ne.s32.totalorder %s140, %s142
      %p149 = scmp.eq.s32.totalorder %s27, 1
      %p150 = por %p148, %p149
      %p151 = scmp.ne.s32.totalorder %s142, %s143
      %p152 = scmp.eq.s32.totalorder %s27, 0
      %p153 = por %p151, %p152
      %p154 = scmp.ne.s32.totalorder %s142, %s143
      %p155 = scmp.eq.s32.totalorder %s28, 1
      %p156 = por %p154, %p155
      %p158 = scmp.ne.s32.totalorder %s143, %s157
      %p159 = scmp.eq.s32.totalorder %s28, 0
      %p160 = por %p158, %p159
      %s162 = sadd.s32 %s161, 1
      %p165 = scmp.eq.s32.totalorder %s22, 1
      %p166 = scmp.ne.s32.totalorder %s161, %s163
      %p167 = scmp.eq.s32.totalorder %s22, 0
      %p168 = por %p166, %p167
      %p169 = scmp.ne.s32.totalorder %s161, %s163
      %p170 = scmp.eq.s32.totalorder %s27, 1
      %p171 = por %p169, %p170
      %p172 = scmp.ne.s32.totalorder %s163, %s164
      %p173 = scmp.eq.s32.totalorder %s27, 0
      %p174 = por %p172, %p173
      %p175 = scmp.ne.s32.totalorder %s163, %s164
      %p176 = scmp.eq.s32.totalorder %s28, 1
      %p177 = por %p175, %p176
      %p179 = scmp.ne.s32.totalorder %s164, %s178
      %p180 = scmp.eq.s32.totalorder %s28, 0
      %p181 = por %p179, %p180
      %s183 = sadd.s32 %s182, 1
      %p186 = scmp.eq.s32.totalorder %s22, 1
      %p187 = scmp.ne.s32.totalorder %s182, %s184
      %p188 = scmp.eq.s32.totalorder %s22, 0
      %p189 = por %p187, %p188
      %p190 = scmp.ne.s32.totalorder %s182, %s184
      %p191 = scmp.eq.s32.totalorder %s27, 1
      %p192 = por %p190, %p191
      %p193 = scmp.ne.s32.totalorder %s184, %s185
      %p194 = scmp.eq.s32.totalorder %s27, 0
      %p195 = por %p193, %p194
      %p196 = scmp.ne.s32.totalorder %s184, %s185
      %p197 = scmp.eq.s32.totalorder %s28, 1
      %p198 = por %p196, %p197
      %p200 = scmp.ne.s32.totalorder %s185, %s199
      %p201 = scmp.eq.s32.totalorder %s28, 0
      %p202 = por %p200, %p201
      %s203 = ssub.s32 %s22, %s29
      %p204 = scmp.eq.s32.totalorder %s203, 0
      %s206 = sadd.s32 %s205, 1
      %s207 = scalar_select %p204, %s205, %s206
      %p210 = pneg %p204
      %p211 = scmp.eq.s32.totalorder %s22, 1
      %p212 = por %p210, %p211
      %p213 = scmp.ne.s32.totalorder %s205, %s208
      %p214 = scmp.eq.s32.totalorder %s22, 0
      %p215 = por %p213, %p214
      %p216 = scmp.ne.s32.totalorder %s205, %s208
      %p217 = scmp.eq.s32.totalorder %s27, 1
      %p218 = por %p216, %p217
      %p219 = scmp.ne.s32.totalorder %s208, %s209
      %p220 = scmp.eq.s32.totalorder %s27, 0
      %p221 = por %p219, %p220
      %p222 = scmp.ne.s32.totalorder %s208, %s209
      %p223 = scmp.eq.s32.totalorder %s28, 1
      %p224 = por %p222, %p223
      %p226 = scmp.ne.s32.totalorder %s209, %s225
      %p227 = scmp.eq.s32.totalorder %s28, 0
      %p228 = por %p226, %p227
      %p229 = scmp.le.s32.totalorder 1, %s22
      %p230 = scmp.lt.s32.totalorder %s22, 3
      %p231 = pnand %p229, %p230
      %p232 = pneg %p231
      // Predicated region
      $region9: #{tpu_custom_call.1} parent=5 // pred_check
        _
      $region10: #{tpu_custom_call.1} parent=5 // pred_check_branch
        %234 = sbr.rel (%p231) target = $region12
      $region11: #{tpu_custom_call.1} parent=5 // pred_region
        %s235 = ssub.s32 %s22, 1
        // Predicated region
        $region13: #{tpu_custom_call.1} parent=11 // pred_check
          %p236 = pneg %p69
        $region14: #{tpu_custom_call.1} parent=11 // pred_check_branch
          %238 = sbr.rel (%p236) target = $region16
        $region15: #{tpu_custom_call.1} parent=11 // pred_region
          _
        $region16: #{tpu_custom_call.1} parent=11 // pred_fallthru
          _
        // Predicated region
        $region17: #{tpu_custom_call.1} parent=11 // pred_check
          %p239 = pneg %p90
        $region18: #{tpu_custom_call.1} parent=11 // pred_check_branch
          %241 = sbr.rel (%p239) target = $region20
        $region19: #{tpu_custom_call.1} parent=11 // pred_region
          _
        $region20: #{tpu_custom_call.1} parent=11 // pred_fallthru
          _
        // Predicated region
        $region21: #{tpu_custom_call.1} parent=11 // pred_check
          %p242 = pneg %p111
        $region22: #{tpu_custom_call.1} parent=11 // pred_check_branch
          %244 = sbr.rel (%p242) target = $region24
        $region23: #{tpu_custom_call.1} parent=11 // pred_region
          %s246 = ssub.s32 12288, 12288
          %247 = vsyncadd [#allocation6], %s246
          %s248 = sshll.u32 [#allocation5], 4
          %s249 = int_to_ptr.vmem [resolvable:$true] %s248
          %254 = dma.hbm_to_vmem [thread:$0]  %s3, 12288, %s249, [#allocation6], 768, 768, 48
        $region24: #{tpu_custom_call.1} parent=11 // pred_fallthru
          _
        // Predicated region
        $region25: #{tpu_custom_call.1} parent=11 // pred_check
          %p255 = pneg %p132
        $region26: #{tpu_custom_call.1} parent=11 // pred_check_branch
          %257 = sbr.rel (%p255) target = $region28
        $region27: #{tpu_custom_call.1} parent=11 // pred_region
          %s259 = ssub.s32 12288, 12288
          %260 = vsyncadd [#allocation6], %s259
          %s261 = sshll.u32 [#allocation7], 4
          %s262 = int_to_ptr.vmem [resolvable:$true] %s261
          %267 = dma.hbm_to_vmem [thread:$0]  %s4, 12288, %s262, [#allocation6], 768, 768, 48
        $region28: #{tpu_custom_call.1} parent=11 // pred_fallthru
          _
        // Predicated region
        $region29: #{tpu_custom_call.1} parent=11 // pred_check
          %p268 = pneg %p153
        $region30: #{tpu_custom_call.1} parent=11 // pred_check_branch
          %270 = sbr.rel (%p268) target = $region32
        $region31: #{tpu_custom_call.1} parent=11 // pred_region
          %s272 = ssub.s32 12288, 12288
          %273 = vsyncadd [#allocation9], %s272
          %s274 = sshll.u32 [#allocation8], 4
          %s275 = int_to_ptr.vmem [resolvable:$true] %s274
          %280 = dma.hbm_to_vmem [thread:$0]  %s5, 12288, %s275, [#allocation9], 768, 768, 48
        $region32: #{tpu_custom_call.1} parent=11 // pred_fallthru
          _
        // Predicated region
        $region33: #{tpu_custom_call.1} parent=11 // pred_check
          %p281 = pneg %p174
        $region34: #{tpu_custom_call.1} parent=11 // pred_check_branch
          %283 = sbr.rel (%p281) target = $region36
        $region35: #{tpu_custom_call.1} parent=11 // pred_region
          %s285 = ssub.s32 12288, 12288
          %286 = vsyncadd [#allocation9], %s285
          %s287 = sshll.u32 [#allocation10], 4
          %s288 = int_to_ptr.vmem [resolvable:$true] %s287
          %293 = dma.hbm_to_vmem [thread:$0]  %s6, 12288, %s288, [#allocation9], 128, 128, 8
        $region36: #{tpu_custom_call.1} parent=11 // pred_fallthru
          _
        // Predicated region
        $region37: #{tpu_custom_call.1} parent=11 // pred_check
          %p294 = pneg %p195
        $region38: #{tpu_custom_call.1} parent=11 // pred_check_branch
          %296 = sbr.rel (%p294) target = $region40
        $region39: #{tpu_custom_call.1} parent=11 // pred_region
          _
        $region40: #{tpu_custom_call.1} parent=11 // pred_fallthru
          _
      $region12: #{tpu_custom_call.1} parent=5 // pred_fallthru
        _
      %p297 = scmp.lt.s32.totalorder %s22, 2
      // Predicated region
      $region41: #{tpu_custom_call.1} parent=5 // pred_check
        %p298 = pneg %p297
      $region42: #{tpu_custom_call.1} parent=5 // pred_check_branch
        %300 = sbr.rel (%p298) target = $region44
      $region43: #{tpu_custom_call.1} parent=5 // pred_region
        // Predicated region
        $region45: #{tpu_custom_call.1} parent=43 // pred_check
          %p301 = pneg %p42
        $region46: #{tpu_custom_call.1} parent=43 // pred_check_branch
          %303 = sbr.rel (%p301) target = $region48
        $region47: #{tpu_custom_call.1} parent=43 // pred_region
          %s304 = sand.u32 %s32, 1
          %s305 = scalar_lea.sflag [#allocation3], %s304
          %s306 = sand.u32 %s32, 1
          %s307 = smul.addr %s306, 8
          %s308 = scalar_lea.vmem [#allocation2], %s307
          %s310 = ssub.s32 128, 128
          %311 = vsyncadd %s305, %s310
          %s312 = smul.addr %s22, 128
          %s313 = scalar_lea.hbm %s0, %s312
          %s315 = sshll.u32 %s308, 4
          %s316 = int_to_ptr.vmem [resolvable:$true] %s315
          %318 = dma.hbm_to_vmem [thread:$0]  %s313, 128, %s316, %s305
        $region48: #{tpu_custom_call.1} parent=43 // pred_fallthru
          _
      $region44: #{tpu_custom_call.1} parent=5 // pred_fallthru
        _
      %p319 = scmp.le.s32.totalorder 1, %s22
      %p320 = scmp.lt.s32.totalorder %s22, 3
      %p321 = pnand %p319, %p320
      %p322 = pneg %p321
      // Predicated region
      $region49: #{tpu_custom_call.1} parent=5 // pred_check
        _
      $region50: #{tpu_custom_call.1} parent=5 // pred_check_branch
        %324 = sbr.rel (%p321) target = $region52
      $region51: #{tpu_custom_call.1} parent=5 // pred_region
        %s325 = ssub.s32 %s22, 1
        %s326 = sand.u32 %s35, 1
        %s327 = scalar_lea.sflag [#allocation3], %s326
        %s328 = sand.u32 %s35, 1
        %s329 = smul.addr %s328, 8
        %s330 = scalar_lea.vmem [#allocation2], %s329
        // Predicated region
        $region53: #{tpu_custom_call.1} parent=51 // pred_check
          %p331 = pneg %p48
        $region54: #{tpu_custom_call.1} parent=51 // pred_check_branch
          %333 = sbr.rel (%p331) target = $region56
        $region55: #{tpu_custom_call.1} parent=51 // pred_region
          %334 = dma.done %s327, 128
        $region56: #{tpu_custom_call.1} parent=51 // pred_fallthru
          _
        // Predicated region
        $region57: #{tpu_custom_call.1} parent=51 // pred_check
          %p335 = pneg %p111
        $region58: #{tpu_custom_call.1} parent=51 // pred_check_branch
          %337 = sbr.rel (%p335) target = $region60
        $region59: #{tpu_custom_call.1} parent=51 // pred_region
          %338 = dma.done [#allocation6], 12288
        $region60: #{tpu_custom_call.1} parent=51 // pred_fallthru
          _
        // Predicated region
        $region61: #{tpu_custom_call.1} parent=51 // pred_check
          %p339 = pneg %p132
        $region62: #{tpu_custom_call.1} parent=51 // pred_check_branch
          %341 = sbr.rel (%p339) target = $region64
        $region63: #{tpu_custom_call.1} parent=51 // pred_region
          %342 = dma.done [#allocation6], 12288
        $region64: #{tpu_custom_call.1} parent=51 // pred_fallthru
          _
        // Predicated region
        $region65: #{tpu_custom_call.1} parent=51 // pred_check
          %p343 = pneg %p153
        $region66: #{tpu_custom_call.1} parent=51 // pred_check_branch
          %345 = sbr.rel (%p343) target = $region68
        $region67: #{tpu_custom_call.1} parent=51 // pred_region
          %346 = dma.done [#allocation9], 12288
        $region68: #{tpu_custom_call.1} parent=51 // pred_fallthru
          _
        // Predicated region
        $region69: #{tpu_custom_call.1} parent=51 // pred_check
          %p347 = pneg %p174
        $region70: #{tpu_custom_call.1} parent=51 // pred_check_branch
          %349 = sbr.rel (%p347) target = $region72
        $region71: #{tpu_custom_call.1} parent=51 // pred_region
          %350 = dma.done [#allocation9], 12288
        $region72: #{tpu_custom_call.1} parent=51 // pred_fallthru
          _
        %s351 = sand.u32 %s35, 1
        %s352 = scalar_lea.sflag [#allocation3], %s351
        %s353 = sand.u32 %s35, 1
        %s354 = smul.addr %s353, 8
        %s355 = scalar_lea.vmem [#allocation2], %s354
        %p356 = pneg %p48
        %p357 = pneg %p45
        %p358 = pneg %p69
        %p359 = pneg %p66
        %p360 = pneg %p90
        %p361 = pneg %p87
        %p362 = pneg %p111
        %p363 = pneg %p108
        %p364 = pneg %p132
        %p365 = pneg %p129
        %p366 = pneg %p153
        %p367 = pneg %p150
        %p368 = pneg %p174
        %p369 = pneg %p171
        %p370 = pneg %p195
        %p371 = pneg %p192
        %p372 = pneg %p221
        %p373 = pneg %p218
        %s374 = sand.u32 %s208, 1
        %s375 = scalar_lea.sflag [#allocation4], %s374
        %s376 = sand.u32 %s208, 1
        %s377 = smul.addr %s376, 8
        %s378 = scalar_lea.vmem [#allocation11], %s377
        %v379 = vld [vmem:[%s330] sm:$0xff]
        %v380 = vld [vmem:[%s1] sm:$0x1]
        %v381 = vld [vmem:[%s2] sm:$0x1]
        %382 = vadd.xlane.f32.xlu0 %v379
        %v383 = vpop.xlane.xlu0 %382
        %v384 = vmul.f32 %v379, %v379
        %385 = vadd.xlane.f32.xlu0 %v384
        %v386 = vpop.xlane.xlu0 %385
        %v387 = vrcp.pop 60.0
        %v388 = vmul.f32 %v383, %v387
        %v389 = vmul.f32 %v386, %v387
        %v390 = vmul.f32 %v388, %v388
        %v391 = vsub.f32 %v389, %v390
        %v392 = vadd.f32 %v391, 1e-05
        %v393 = vrsqrt.pop %v392
        %v394 = vsub.f32 %v379, %v388
        %v395 = vmul.f32 %v394, %v393
        %v397 = vlaneseq
        %v398 = vshrl.u32 %v397, 7
        %v399 = vsub.s32 0, %v398
        %v400 = vrot.slane %v380, %v399
        %v402 = vmul.f32 %v395, %v400
        %v404 = vlaneseq
        %v405 = vshrl.u32 %v404, 7
        %v406 = vsub.s32 0, %v405
        %v407 = vrot.slane %v381, %v406
        %v409 = vadd.f32 %v402, %v407
        %v410 = vld [vmem:[#allocation5] sm:$0xff]
        %v411 = vld [vmem:[#allocation5 + $0x8] sm:$0xff]
        %v412 = vld [vmem:[#allocation5 + $0x10] sm:$0xff]
        %v413 = vld [vmem:[#allocation5 + $0x18] sm:$0xff]
        %v414 = vld [vmem:[#allocation5 + $0x20] sm:$0xff]
        %v415 = vld [vmem:[#allocation5 + $0x28] sm:$0xff]
        %v416 = vld [vmem:[#allocation5 + $0x30] sm:$0xff]
        %v417 = vld [vmem:[#allocation5 + $0x38] sm:$0xff]
        %v418 = vld [vmem:[#allocation5 + $0x40] sm:$0xff]
        %v419 = vld [vmem:[#allocation5 + $0x48] sm:$0xff]
        %v420 = vld [vmem:[#allocation5 + $0x50] sm:$0xff]
        %v421 = vld [vmem:[#allocation5 + $0x58] sm:$0xff]
        %v422 = vld [vmem:[#allocation5 + $0x60] sm:$0xff]
        %v423 = vld [vmem:[#allocation5 + $0x68] sm:$0xff]
        %v424 = vld [vmem:[#allocation5 + $0x70] sm:$0xff]
        %v425 = vld [vmem:[#allocation5 + $0x78] sm:$0xff]
        %v426 = vld [vmem:[#allocation5 + $0x80] sm:$0xff]
        %v427 = vld [vmem:[#allocation5 + $0x88] sm:$0xff]
        %v428 = vld [vmem:[#allocation5 + $0x90] sm:$0xff]
        %v429 = vld [vmem:[#allocation5 + $0x98] sm:$0xff]
        %v430 = vld [vmem:[#allocation5 + $0xa0] sm:$0xff]
        %v431 = vld [vmem:[#allocation5 + $0xa8] sm:$0xff]
        %v432 = vld [vmem:[#allocation5 + $0xb0] sm:$0xff]
        %v433 = vld [vmem:[#allocation5 + $0xb8] sm:$0xff]
        %v434 = vld [vmem:[#allocation5 + $0xc0] sm:$0xff]
        %v435 = vld [vmem:[#allocation5 + $0xc8] sm:$0xff]
        %v436 = vld [vmem:[#allocation5 + $0xd0] sm:$0xff]
        %v437 = vld [vmem:[#allocation5 + $0xd8] sm:$0xff]
        %v438 = vld [vmem:[#allocation5 + $0xe0] sm:$0xff]
        %v439 = vld [vmem:[#allocation5 + $0xe8] sm:$0xff]
        %v440 = vld [vmem:[#allocation5 + $0xf0] sm:$0xff]
        %v441 = vld [vmem:[#allocation5 + $0xf8] sm:$0xff]
        %v442 = vld [vmem:[#allocation5 + $0x100] sm:$0xff]
        %v443 = vld [vmem:[#allocation5 + $0x108] sm:$0xff]
        %v444 = vld [vmem:[#allocation5 + $0x110] sm:$0xff]
        %v445 = vld [vmem:[#allocation5 + $0x118] sm:$0xff]
        %v446 = vld [vmem:[#allocation5 + $0x120] sm:$0xff]
        %v447 = vld [vmem:[#allocation5 + $0x128] sm:$0xff]
        %v448 = vld [vmem:[#allocation5 + $0x130] sm:$0xff]
        %v449 = vld [vmem:[#allocation5 + $0x138] sm:$0xff]
        %v450 = vld [vmem:[#allocation5 + $0x140] sm:$0xff]
        %v451 = vld [vmem:[#allocation5 + $0x148] sm:$0xff]
        %v452 = vld [vmem:[#allocation5 + $0x150] sm:$0xff]
        %v453 = vld [vmem:[#allocation5 + $0x158] sm:$0xff]
        %v454 = vld [vmem:[#allocation5 + $0x160] sm:$0xff]
        %v455 = vld [vmem:[#allocation5 + $0x168] sm:$0xff]
        %v456 = vld [vmem:[#allocation5 + $0x170] sm:$0xff]
        %v457 = vld [vmem:[#allocation5 + $0x178] sm:$0xff]
        %v458 = vld [vmem:[#allocation5 + $0x180] sm:$0xff]
        %v459 = vld [vmem:[#allocation5 + $0x188] sm:$0xff]
        %v460 = vld [vmem:[#allocation5 + $0x190] sm:$0xff]
        %v461 = vld [vmem:[#allocation5 + $0x198] sm:$0xff]
        %v462 = vld [vmem:[#allocation5 + $0x1a0] sm:$0xff]
        %v463 = vld [vmem:[#allocation5 + $0x1a8] sm:$0xff]
        %v464 = vld [vmem:[#allocation5 + $0x1b0] sm:$0xff]
        %v465 = vld [vmem:[#allocation5 + $0x1b8] sm:$0xff]
        %v466 = vld [vmem:[#allocation5 + $0x1c0] sm:$0xff]
        %v467 = vld [vmem:[#allocation5 + $0x1c8] sm:$0xff]
        %v468 = vld [vmem:[#allocation5 + $0x1d0] sm:$0xff]
        %v469 = vld [vmem:[#allocation5 + $0x1d8] sm:$0xff]
        %v470 = vld [vmem:[#allocation5 + $0x1e0] sm:$0xff]
        %v471 = vld [vmem:[#allocation5 + $0x1e8] sm:$0xff]
        %v472 = vld [vmem:[#allocation5 + $0x1f0] sm:$0xff]
        %v473 = vld [vmem:[#allocation5 + $0x1f8] sm:$0xff]
        %v474 = vld [vmem:[#allocation5 + $0x200] sm:$0xff]
        %v475 = vld [vmem:[#allocation5 + $0x208] sm:$0xff]
        %v476 = vld [vmem:[#allocation5 + $0x210] sm:$0xff]
        %v477 = vld [vmem:[#allocation5 + $0x218] sm:$0xff]
        %v478 = vld [vmem:[#allocation5 + $0x220] sm:$0xff]
        %v479 = vld [vmem:[#allocation5 + $0x228] sm:$0xff]
        %v480 = vld [vmem:[#allocation5 + $0x230] sm:$0xff]
        %v481 = vld [vmem:[#allocation5 + $0x238] sm:$0xff]
        %v482 = vld [vmem:[#allocation5 + $0x240] sm:$0xff]
        %v483 = vld [vmem:[#allocation5 + $0x248] sm:$0xff]
        %v484 = vld [vmem:[#allocation5 + $0x250] sm:$0xff]
        %v485 = vld [vmem:[#allocation5 + $0x258] sm:$0xff]
        %v486 = vld [vmem:[#allocation5 + $0x260] sm:$0xff]
        %v487 = vld [vmem:[#allocation5 + $0x268] sm:$0xff]
        %v488 = vld [vmem:[#allocation5 + $0x270] sm:$0xff]
        %v489 = vld [vmem:[#allocation5 + $0x278] sm:$0xff]
        %v490 = vld [vmem:[#allocation5 + $0x280] sm:$0xff]
        %v491 = vld [vmem:[#allocation5 + $0x288] sm:$0xff]
        %v492 = vld [vmem:[#allocation5 + $0x290] sm:$0xff]
        %v493 = vld [vmem:[#allocation5 + $0x298] sm:$0xff]
        %v494 = vld [vmem:[#allocation5 + $0x2a0] sm:$0xff]
        %v495 = vld [vmem:[#allocation5 + $0x2a8] sm:$0xff]
        %v496 = vld [vmem:[#allocation5 + $0x2b0] sm:$0xff]
        %v497 = vld [vmem:[#allocation5 + $0x2b8] sm:$0xff]
        %v498 = vld [vmem:[#allocation5 + $0x2c0] sm:$0xff]
        %v499 = vld [vmem:[#allocation5 + $0x2c8] sm:$0xff]
        %v500 = vld [vmem:[#allocation5 + $0x2d0] sm:$0xff]
        %v501 = vld [vmem:[#allocation5 + $0x2d8] sm:$0xff]
        %v502 = vld [vmem:[#allocation5 + $0x2e0] sm:$0xff]
        %v503 = vld [vmem:[#allocation5 + $0x2e8] sm:$0xff]
        %v504 = vld [vmem:[#allocation5 + $0x2f0] sm:$0xff]
        %v505 = vld [vmem:[#allocation5 + $0x2f8] sm:$0xff]
        %506 = vmatprep.subr.mxu0 %v411
        %507 = vmatpush1.msra.mxu0 %v410
        %508 = vmatprep.subr.mxu0 %v417
        %509 = vmatpush1.msra.mxu0 %v416
        %510 = vmatprep.subr.mxu0 %v423
        %511 = vmatpush1.msra.mxu0 %v422
        %512 = vmatprep.subr.mxu0 %v429
        %513 = vmatpush1.msra.mxu0 %v428
        %514 = vmatprep.subr.mxu0 %v435
        %515 = vmatpush1.msra.mxu0 %v434
        %516 = vmatprep.subr.mxu0 %v441
        %517 = vmatpush1.msra.mxu0 %v440
        %518 = vmatprep.subr.mxu0 %v447
        %519 = vmatpush1.msra.mxu0 %v446
        %520 = vmatprep.subr.mxu0 %v453
        %521 = vmatpush1.msra.mxu0 %v452
        %522 = vmatprep.subr.mxu0 %v459
        %523 = vmatpush1.msra.mxu0 %v458
        %524 = vmatprep.subr.mxu0 %v465
        %525 = vmatpush1.msra.mxu0 %v464
        %526 = vmatprep.subr.mxu0 %v471
        %527 = vmatpush1.msra.mxu0 %v470
        %528 = vmatprep.subr.mxu0 %v477
        %529 = vmatpush1.msra.mxu0 %v476
        %530 = vmatprep.subr.mxu0 %v483
        %531 = vmatpush1.msra.mxu0 %v482
        %532 = vmatprep.subr.mxu0 %v489
        %533 = vmatpush1.msra.mxu0 %v488
        %534 = vmatprep.subr.mxu0 %v495
        %535 = vmatpush1.msra.mxu0 %v494
        %536 = vmatprep.subr.mxu0 %v501
        %537 = vmatpush1.msra.mxu0 %v500
        %538 = vmatprep.subr.mxu0 0.0
        %539 = vmatpush1.msra.mxu0 0.0
        %540 = vmatprep.subr.mxu0 0.0
        %541 = vmatpush1.msra.mxu0 0.0
        %542 = vmatprep.subr.mxu0 0.0
        %543 = vmatpush1.msra.mxu0 0.0
        %544 = vmatprep.subr.mxu0 0.0
        %545 = vmatpush1.msra.mxu0 0.0
        %546 = vmatprep.subr.mxu0 0.0
        %547 = vmatpush1.msra.mxu0 0.0
        %548 = vmatprep.subr.mxu0 0.0
        %549 = vmatpush1.msra.mxu0 0.0
        %550 = vmatprep.subr.mxu0 0.0
        %551 = vmatpush1.msra.mxu0 0.0
        %552 = vmatprep.subr.mxu0 0.0
        %553 = vmatpush1.msra.mxu0 0.0
        %554 = vmatprep.subr.mxu0 0.0
        %555 = vmatpush1.msra.mxu0 0.0
        %556 = vmatprep.subr.mxu0 0.0
        %557 = vmatpush1.msra.mxu0 0.0
        %558 = vmatprep.subr.mxu0 0.0
        %559 = vmatpush1.msra.mxu0 0.0
        %560 = vmatprep.subr.mxu0 0.0
        %561 = vmatpush1.msra.mxu0 0.0
        %562 = vmatprep.subr.mxu0 0.0
        %563 = vmatpush1.msra.mxu0 0.0
        %564 = vmatprep.subr.mxu0 0.0
        %565 = vmatpush1.msra.mxu0 0.0
        %566 = vmatprep.subr.mxu0 0.0
        %567 = vmatpush1.msra.mxu0 0.0
        %568 = vmatprep.subr.mxu0 0.0
        %569 = vmatpush1.msra.mxu0 0.0
        %570 = vmatprep.mubr.f32.mxu0 0.0
        %571 = vmatmul.mubr.f32.gmra.mrb[0].mxu0 %v409
        %v572 = vpop.f32.mrb[0].mxu0
        %v573 = vadd.f32 0.0, %v572
        %v574 = vpop.f32.mrb[0].mxu0
        %v575 = vadd.f32 0.0, %v574
        %576 = vdwg.mxu0
        %577 = vmatprep.subr.mxu0 %v413
        %578 = vmatpush1.msra.mxu0 %v412
        %579 = vmatprep.subr.mxu0 %v419
        %580 = vmatpush1.msra.mxu0 %v418
        %581 = vmatprep.subr.mxu0 %v425
        %582 = vmatpush1.msra.mxu0 %v424
        %583 = vmatprep.subr.mxu0 %v431
        %584 = vmatpush1.msra.mxu0 %v430
        %585 = vmatprep.subr.mxu0 %v437
        %586 = vmatpush1.msra.mxu0 %v436
        %587 = vmatprep.subr.mxu0 %v443
        %588 = vmatpush1.msra.mxu0 %v442
        %589 = vmatprep.subr.mxu0 %v449
        %590 = vmatpush1.msra.mxu0 %v448
        %591 = vmatprep.subr.mxu0 %v455
        %592 = vmatpush1.msra.mxu0 %v454
        %593 = vmatprep.subr.mxu0 %v461
        %594 = vmatpush1.msra.mxu0 %v460
        %595 = vmatprep.subr.mxu0 %v467
        %596 = vmatpush1.msra.mxu0 %v466
        %597 = vmatprep.subr.mxu0 %v473
        %598 = vmatpush1.msra.mxu0 %v472
        %599 = vmatprep.subr.mxu0 %v479
        %600 = vmatpush1.msra.mxu0 %v478
        %601 = vmatprep.subr.mxu0 %v485
        %602 = vmatpush1.msra.mxu0 %v484
        %603 = vmatprep.subr.mxu0 %v491
        %604 = vmatpush1.msra.mxu0 %v490
        %605 = vmatprep.subr.mxu0 %v497
        %606 = vmatpush1.msra.mxu0 %v496
        %607 = vmatprep.subr.mxu0 %v503
        %608 = vmatpush1.msra.mxu0 %v502
        %609 = vmatprep.subr.mxu0 0.0
        %610 = vmatpush1.msra.mxu0 0.0
        %611 = vmatprep.subr.mxu0 0.0
        %612 = vmatpush1.msra.mxu0 0.0
        %613 = vmatprep.subr.mxu0 0.0
        %614 = vmatpush1.msra.mxu0 0.0
        %615 = vmatprep.subr.mxu0 0.0
        %616 = vmatpush1.msra.mxu0 0.0
        %617 = vmatprep.subr.mxu0 0.0
        %618 = vmatpush1.msra.mxu0 0.0
        %619 = vmatprep.subr.mxu0 0.0
        %620 = vmatpush1.msra.mxu0 0.0
        %621 = vmatprep.subr.mxu0 0.0
        %622 = vmatpush1.msra.mxu0 0.0
        %623 = vmatprep.subr.mxu0 0.0
        %624 = vmatpush1.msra.mxu0 0.0
        %625 = vmatprep.subr.mxu0 0.0
        %626 = vmatpush1.msra.mxu0 0.0
        %627 = vmatprep.subr.mxu0 0.0
        %628 = vmatpush1.msra.mxu0 0.0
        %629 = vmatprep.subr.mxu0 0.0
        %630 = vmatpush1.msra.mxu0 0.0
        %631 = vmatprep.subr.mxu0 0.0
        %632 = vmatpush1.msra.mxu0 0.0
        %633 = vmatprep.subr.mxu0 0.0
        %634 = vmatpush1.msra.mxu0 0.0
        %635 = vmatprep.subr.mxu0 0.0
        %636 = vmatpush1.msra.mxu0 0.0
        %637 = vmatprep.subr.mxu0 0.0
        %638 = vmatpush1.msra.mxu0 0.0
        %639 = vmatprep.subr.mxu0 0.0
        %640 = vmatpush1.msra.mxu0 0.0
        %641 = vmatprep.mubr.f32.mxu0 0.0
        %642 = vmatmul.mubr.f32.gmra.mrb[0].mxu0 %v409
        %v643 = vpop.f32.mrb[0].mxu0
        %v644 = vadd.f32 0.0, %v643
        %v645 = vpop.f32.mrb[0].mxu0
        %v646 = vadd.f32 0.0, %v645
        %647 = vdwg.mxu0
        %648 = vmatprep.subr.mxu0 %v415
        %649 = vmatpush1.msra.mxu0 %v414
        %650 = vmatprep.subr.mxu0 %v421
        %651 = vmatpush1.msra.mxu0 %v420
        %652 = vmatprep.subr.mxu0 %v427
        %653 = vmatpush1.msra.mxu0 %v426
        %654 = vmatprep.subr.mxu0 %v433
        %655 = vmatpush1.msra.mxu0 %v432
        %656 = vmatprep.subr.mxu0 %v439
        %657 = vmatpush1.msra.mxu0 %v438
        %658 = vmatprep.subr.mxu0 %v445
        %659 = vmatpush1.msra.mxu0 %v444
        %660 = vmatprep.subr.mxu0 %v451
        %661 = vmatpush1.msra.mxu0 %v450
        %662 = vmatprep.subr.mxu0 %v457
        %663 = vmatpush1.msra.mxu0 %v456
        %664 = vmatprep.subr.mxu0 %v463
        %665 = vmatpush1.msra.mxu0 %v462
        %666 = vmatprep.subr.mxu0 %v469
        %667 = vmatpush1.msra.mxu0 %v468
        %668 = vmatprep.subr.mxu0 %v475
        %669 = vmatpush1.msra.mxu0 %v474
        %670 = vmatprep.subr.mxu0 %v481
        %671 = vmatpush1.msra.mxu0 %v480
        %672 = vmatprep.subr.mxu0 %v487
        %673 = vmatpush1.msra.mxu0 %v486
        %674 = vmatprep.subr.mxu0 %v493
        %675 = vmatpush1.msra.mxu0 %v492
        %676 = vmatprep.subr.mxu0 %v499
        %677 = vmatpush1.msra.mxu0 %v498
        %678 = vmatprep.subr.mxu0 %v505
        %679 = vmatpush1.msra.mxu0 %v504
        %680 = vmatprep.subr.mxu0 0.0
        %681 = vmatpush1.msra.mxu0 0.0
        %682 = vmatprep.subr.mxu0 0.0
        %683 = vmatpush1.msra.mxu0 0.0
        %684 = vmatprep.subr.mxu0 0.0
        %685 = vmatpush1.msra.mxu0 0.0
        %686 = vmatprep.subr.mxu0 0.0
        %687 = vmatpush1.msra.mxu0 0.0
        %688 = vmatprep.subr.mxu0 0.0
        %689 = vmatpush1.msra.mxu0 0.0
        %690 = vmatprep.subr.mxu0 0.0
        %691 = vmatpush1.msra.mxu0 0.0
        %692 = vmatprep.subr.mxu0 0.0
        %693 = vmatpush1.msra.mxu0 0.0
        %694 = vmatprep.subr.mxu0 0.0
        %695 = vmatpush1.msra.mxu0 0.0
        %696 = vmatprep.subr.mxu0 0.0
        %697 = vmatpush1.msra.mxu0 0.0
        %698 = vmatprep.subr.mxu0 0.0
        %699 = vmatpush1.msra.mxu0 0.0
        %700 = vmatprep.subr.mxu0 0.0
        %701 = vmatpush1.msra.mxu0 0.0
        %702 = vmatprep.subr.mxu0 0.0
        %703 = vmatpush1.msra.mxu0 0.0
        %704 = vmatprep.subr.mxu0 0.0
        %705 = vmatpush1.msra.mxu0 0.0
        %706 = vmatprep.subr.mxu0 0.0
        %707 = vmatpush1.msra.mxu0 0.0
        %708 = vmatprep.subr.mxu0 0.0
        %709 = vmatpush1.msra.mxu0 0.0
        %710 = vmatprep.subr.mxu0 0.0
        %711 = vmatpush1.msra.mxu0 0.0
        %712 = vmatprep.mubr.f32.mxu0 0.0
        %713 = vmatmul.mubr.f32.gmra.mrb[0].mxu0 %v409
        %v714 = vpop.f32.mrb[0].mxu0
        %v715 = vadd.f32 0.0, %v714
        %v716 = vpop.f32.mrb[0].mxu0
        %v717 = vadd.f32 0.0, %v716
        %718 = vdwg.mxu0
        %v719 = vld [vmem:[#allocation7] sm:$0xff]
        %v720 = vld [vmem:[#allocation7 + $0x8] sm:$0xff]
        %v721 = vld [vmem:[#allocation7 + $0x10] sm:$0xff]
        %v722 = vld [vmem:[#allocation7 + $0x18] sm:$0xff]
        %v723 = vld [vmem:[#allocation7 + $0x20] sm:$0xff]
        %v724 = vld [vmem:[#allocation7 + $0x28] sm:$0xff]
        %v725 = vld [vmem:[#allocation7 + $0x30] sm:$0xff]
        %v726 = vld [vmem:[#allocation7 + $0x38] sm:$0xff]
        %v727 = vld [vmem:[#allocation7 + $0x40] sm:$0xff]
        %v728 = vld [vmem:[#allocation7 + $0x48] sm:$0xff]
        %v729 = vld [vmem:[#allocation7 + $0x50] sm:$0xff]
        %v730 = vld [vmem:[#allocation7 + $0x58] sm:$0xff]
        %v731 = vld [vmem:[#allocation7 + $0x60] sm:$0xff]
        %v732 = vld [vmem:[#allocation7 + $0x68] sm:$0xff]
        %v733 = vld [vmem:[#allocation7 + $0x70] sm:$0xff]
        %v734 = vld [vmem:[#allocation7 + $0x78] sm:$0xff]
        %v735 = vld [vmem:[#allocation7 + $0x80] sm:$0xff]
        %v736 = vld [vmem:[#allocation7 + $0x88] sm:$0xff]
        %v737 = vld [vmem:[#allocation7 + $0x90] sm:$0xff]
        %v738 = vld [vmem:[#allocation7 + $0x98] sm:$0xff]
        %v739 = vld [vmem:[#allocation7 + $0xa0] sm:$0xff]
        %v740 = vld [vmem:[#allocation7 + $0xa8] sm:$0xff]
        %v741 = vld [vmem:[#allocation7 + $0xb0] sm:$0xff]
        %v742 = vld [vmem:[#allocation7 + $0xb8] sm:$0xff]
        %v743 = vld [vmem:[#allocation7 + $0xc0] sm:$0xff]
        %v744 = vld [vmem:[#allocation7 + $0xc8] sm:$0xff]
        %v745 = vld [vmem:[#allocation7 + $0xd0] sm:$0xff]
        %v746 = vld [vmem:[#allocation7 + $0xd8] sm:$0xff]
        %v747 = vld [vmem:[#allocation7 + $0xe0] sm:$0xff]
        %v748 = vld [vmem:[#allocation7 + $0xe8] sm:$0xff]
        %v749 = vld [vmem:[#allocation7 + $0xf0] sm:$0xff]
        %v750 = vld [vmem:[#allocation7 + $0xf8] sm:$0xff]
        %v751 = vld [vmem:[#allocation7 + $0x100] sm:$0xff]
        %v752 = vld [vmem:[#allocation7 + $0x108] sm:$0xff]
        %v753 = vld [vmem:[#allocation7 + $0x110] sm:$0xff]
        %v754 = vld [vmem:[#allocation7 + $0x118] sm:$0xff]
        %v755 = vld [vmem:[#allocation7 + $0x120] sm:$0xff]
        %v756 = vld [vmem:[#allocation7 + $0x128] sm:$0xff]
        %v757 = vld [vmem:[#allocation7 + $0x130] sm:$0xff]
        %v758 = vld [vmem:[#allocation7 + $0x138] sm:$0xff]
        %v759 = vld [vmem:[#allocation7 + $0x140] sm:$0xff]
        %v760 = vld [vmem:[#allocation7 + $0x148] sm:$0xff]
        %v761 = vld [vmem:[#allocation7 + $0x150] sm:$0xff]
        %v762 = vld [vmem:[#allocation7 + $0x158] sm:$0xff]
        %v763 = vld [vmem:[#allocation7 + $0x160] sm:$0xff]
        %v764 = vld [vmem:[#allocation7 + $0x168] sm:$0xff]
        %v765 = vld [vmem:[#allocation7 + $0x170] sm:$0xff]
        %v766 = vld [vmem:[#allocation7 + $0x178] sm:$0xff]
        %v767 = vld [vmem:[#allocation7 + $0x180] sm:$0xff]
        %v768 = vld [vmem:[#allocation7 + $0x188] sm:$0xff]
        %v769 = vld [vmem:[#allocation7 + $0x190] sm:$0xff]
        %v770 = vld [vmem:[#allocation7 + $0x198] sm:$0xff]
        %v771 = vld [vmem:[#allocation7 + $0x1a0] sm:$0xff]
        %v772 = vld [vmem:[#allocation7 + $0x1a8] sm:$0xff]
        %v773 = vld [vmem:[#allocation7 + $0x1b0] sm:$0xff]
        %v774 = vld [vmem:[#allocation7 + $0x1b8] sm:$0xff]
        %v775 = vld [vmem:[#allocation7 + $0x1c0] sm:$0xff]
        %v776 = vld [vmem:[#allocation7 + $0x1c8] sm:$0xff]
        %v777 = vld [vmem:[#allocation7 + $0x1d0] sm:$0xff]
        %v778 = vld [vmem:[#allocation7 + $0x1d8] sm:$0xff]
        %v779 = vld [vmem:[#allocation7 + $0x1e0] sm:$0xff]
        %v780 = vld [vmem:[#allocation7 + $0x1e8] sm:$0xff]
        %v781 = vld [vmem:[#allocation7 + $0x1f0] sm:$0xff]
        %v782 = vld [vmem:[#allocation7 + $0x1f8] sm:$0xff]
        %v783 = vld [vmem:[#allocation7 + $0x200] sm:$0xff]
        %v784 = vld [vmem:[#allocation7 + $0x208] sm:$0xff]
        %v785 = vld [vmem:[#allocation7 + $0x210] sm:$0xff]
        %v786 = vld [vmem:[#allocation7 + $0x218] sm:$0xff]
        %v787 = vld [vmem:[#allocation7 + $0x220] sm:$0xff]
        %v788 = vld [vmem:[#allocation7 + $0x228] sm:$0xff]
        %v789 = vld [vmem:[#allocation7 + $0x230] sm:$0xff]
        %v790 = vld [vmem:[#allocation7 + $0x238] sm:$0xff]
        %v791 = vld [vmem:[#allocation7 + $0x240] sm:$0xff]
        %v792 = vld [vmem:[#allocation7 + $0x248] sm:$0xff]
        %v793 = vld [vmem:[#allocation7 + $0x250] sm:$0xff]
        %v794 = vld [vmem:[#allocation7 + $0x258] sm:$0xff]
        %v795 = vld [vmem:[#allocation7 + $0x260] sm:$0xff]
        %v796 = vld [vmem:[#allocation7 + $0x268] sm:$0xff]
        %v797 = vld [vmem:[#allocation7 + $0x270] sm:$0xff]
        %v798 = vld [vmem:[#allocation7 + $0x278] sm:$0xff]
        %v799 = vld [vmem:[#allocation7 + $0x280] sm:$0xff]
        %v800 = vld [vmem:[#allocation7 + $0x288] sm:$0xff]
        %v801 = vld [vmem:[#allocation7 + $0x290] sm:$0xff]
        %v802 = vld [vmem:[#allocation7 + $0x298] sm:$0xff]
        %v803 = vld [vmem:[#allocation7 + $0x2a0] sm:$0xff]
        %v804 = vld [vmem:[#allocation7 + $0x2a8] sm:$0xff]
        %v805 = vld [vmem:[#allocation7 + $0x2b0] sm:$0xff]
        %v806 = vld [vmem:[#allocation7 + $0x2b8] sm:$0xff]
        %v807 = vld [vmem:[#allocation7 + $0x2c0] sm:$0xff]
        %v808 = vld [vmem:[#allocation7 + $0x2c8] sm:$0xff]
        %v809 = vld [vmem:[#allocation7 + $0x2d0] sm:$0xff]
        %v810 = vld [vmem:[#allocation7 + $0x2d8] sm:$0xff]
        %v811 = vld [vmem:[#allocation7 + $0x2e0] sm:$0xff]
        %v812 = vld [vmem:[#allocation7 + $0x2e8] sm:$0xff]
        %v813 = vld [vmem:[#allocation7 + $0x2f0] sm:$0xff]
        %v814 = vld [vmem:[#allocation7 + $0x2f8] sm:$0xff]
        %815 = vmatprep.subr.mxu0 %v720
        %816 = vmatpush1.msra.mxu0 %v719
        %817 = vmatprep.subr.mxu0 %v726
        %818 = vmatpush1.msra.mxu0 %v725
        %819 = vmatprep.subr.mxu0 %v732
        %820 = vmatpush1.msra.mxu0 %v731
        %821 = vmatprep.subr.mxu0 %v738
        %822 = vmatpush1.msra.mxu0 %v737
        %823 = vmatprep.subr.mxu0 %v744
        %824 = vmatpush1.msra.mxu0 %v743
        %825 = vmatprep.subr.mxu0 %v750
        %826 = vmatpush1.msra.mxu0 %v749
        %827 = vmatprep.subr.mxu0 %v756
        %828 = vmatpush1.msra.mxu0 %v755
        %829 = vmatprep.subr.mxu0 %v762
        %830 = vmatpush1.msra.mxu0 %v761
        %831 = vmatprep.subr.mxu0 %v768
        %832 = vmatpush1.msra.mxu0 %v767
        %833 = vmatprep.subr.mxu0 %v774
        %834 = vmatpush1.msra.mxu0 %v773
        %835 = vmatprep.subr.mxu0 %v780
        %836 = vmatpush1.msra.mxu0 %v779
        %837 = vmatprep.subr.mxu0 %v786
        %838 = vmatpush1.msra.mxu0 %v785
        %839 = vmatprep.subr.mxu0 %v792
        %840 = vmatpush1.msra.mxu0 %v791
        %841 = vmatprep.subr.mxu0 %v798
        %842 = vmatpush1.msra.mxu0 %v797
        %843 = vmatprep.subr.mxu0 %v804
        %844 = vmatpush1.msra.mxu0 %v803
        %845 = vmatprep.subr.mxu0 %v810
        %846 = vmatpush1.msra.mxu0 %v809
        %847 = vmatprep.subr.mxu0 0.0
        %848 = vmatpush1.msra.mxu0 0.0
        %849 = vmatprep.subr.mxu0 0.0
        %850 = vmatpush1.msra.mxu0 0.0
        %851 = vmatprep.subr.mxu0 0.0
        %852 = vmatpush1.msra.mxu0 0.0
        %853 = vmatprep.subr.mxu0 0.0
        %854 = vmatpush1.msra.mxu0 0.0
        %855 = vmatprep.subr.mxu0 0.0
        %856 = vmatpush1.msra.mxu0 0.0
        %857 = vmatprep.subr.mxu0 0.0
        %858 = vmatpush1.msra.mxu0 0.0
        %859 = vmatprep.subr.mxu0 0.0
        %860 = vmatpush1.msra.mxu0 0.0
        %861 = vmatprep.subr.mxu0 0.0
        %862 = vmatpush1.msra.mxu0 0.0
        %863 = vmatprep.subr.mxu0 0.0
        %864 = vmatpush1.msra.mxu0 0.0
        %865 = vmatprep.subr.mxu0 0.0
        %866 = vmatpush1.msra.mxu0 0.0
        %867 = vmatprep.subr.mxu0 0.0
        %868 = vmatpush1.msra.mxu0 0.0
        %869 = vmatprep.subr.mxu0 0.0
        %870 = vmatpush1.msra.mxu0 0.0
        %871 = vmatprep.subr.mxu0 0.0
        %872 = vmatpush1.msra.mxu0 0.0
        %873 = vmatprep.subr.mxu0 0.0
        %874 = vmatpush1.msra.mxu0 0.0
        %875 = vmatprep.subr.mxu0 0.0
        %876 = vmatpush1.msra.mxu0 0.0
        %877 = vmatprep.subr.mxu0 0.0
        %878 = vmatpush1.msra.mxu0 0.0
        %879 = vmatprep.mubr.f32.mxu0 0.0
        %880 = vmatmul.mubr.f32.gmra.mrb[0].mxu0 %v409
        %v881 = vpop.f32.mrb[0].mxu0
        %v882 = vadd.f32 0.0, %v881
        %v883 = vpop.f32.mrb[0].mxu0
        %v884 = vadd.f32 0.0, %v883
        %885 = vdwg.mxu0
        %886 = vmatprep.subr.mxu0 %v722
        %887 = vmatpush1.msra.mxu0 %v721
        %888 = vmatprep.subr.mxu0 %v728
        %889 = vmatpush1.msra.mxu0 %v727
        %890 = vmatprep.subr.mxu0 %v734
        %891 = vmatpush1.msra.mxu0 %v733
        %892 = vmatprep.subr.mxu0 %v740
        %893 = vmatpush1.msra.mxu0 %v739
        %894 = vmatprep.subr.mxu0 %v746
        %895 = vmatpush1.msra.mxu0 %v745
        %896 = vmatprep.subr.mxu0 %v752
        %897 = vmatpush1.msra.mxu0 %v751
        %898 = vmatprep.subr.mxu0 %v758
        %899 = vmatpush1.msra.mxu0 %v757
        %900 = vmatprep.subr.mxu0 %v764
        %901 = vmatpush1.msra.mxu0 %v763
        %902 = vmatprep.subr.mxu0 %v770
        %903 = vmatpush1.msra.mxu0 %v769
        %904 = vmatprep.subr.mxu0 %v776
        %905 = vmatpush1.msra.mxu0 %v775
        %906 = vmatprep.subr.mxu0 %v782
        %907 = vmatpush1.msra.mxu0 %v781
        %908 = vmatprep.subr.mxu0 %v788
        %909 = vmatpush1.msra.mxu0 %v787
        %910 = vmatprep.subr.mxu0 %v794
        %911 = vmatpush1.msra.mxu0 %v793
        %912 = vmatprep.subr.mxu0 %v800
        %913 = vmatpush1.msra.mxu0 %v799
        %914 = vmatprep.subr.mxu0 %v806
        %915 = vmatpush1.msra.mxu0 %v805
        %916 = vmatprep.subr.mxu0 %v812
        %917 = vmatpush1.msra.mxu0 %v811
        %918 = vmatprep.subr.mxu0 0.0
        %919 = vmatpush1.msra.mxu0 0.0
        %920 = vmatprep.subr.mxu0 0.0
        %921 = vmatpush1.msra.mxu0 0.0
        %922 = vmatprep.subr.mxu0 0.0
        %923 = vmatpush1.msra.mxu0 0.0
        %924 = vmatprep.subr.mxu0 0.0
        %925 = vmatpush1.msra.mxu0 0.0
        %926 = vmatprep.subr.mxu0 0.0
        %927 = vmatpush1.msra.mxu0 0.0
        %928 = vmatprep.subr.mxu0 0.0
        %929 = vmatpush1.msra.mxu0 0.0
        %930 = vmatprep.subr.mxu0 0.0
        %931 = vmatpush1.msra.mxu0 0.0
        %932 = vmatprep.subr.mxu0 0.0
        %933 = vmatpush1.msra.mxu0 0.0
        %934 = vmatprep.subr.mxu0 0.0
        %935 = vmatpush1.msra.mxu0 0.0
        %936 = vmatprep.subr.mxu0 0.0
        %937 = vmatpush1.msra.mxu0 0.0
        %938 = vmatprep.subr.mxu0 0.0
        %939 = vmatpush1.msra.mxu0 0.0
        %940 = vmatprep.subr.mxu0 0.0
        %941 = vmatpush1.msra.mxu0 0.0
        %942 = vmatprep.subr.mxu0 0.0
        %943 = vmatpush1.msra.mxu0 0.0
        %944 = vmatprep.subr.mxu0 0.0
        %945 = vmatpush1.msra.mxu0 0.0
        %946 = vmatprep.subr.mxu0 0.0
        %947 = vmatpush1.msra.mxu0 0.0
        %948 = vmatprep.subr.mxu0 0.0
        %949 = vmatpush1.msra.mxu0 0.0
        %950 = vmatprep.mubr.f32.mxu0 0.0
        %951 = vmatmul.mubr.f32.gmra.mrb[0].mxu0 %v409
        %v952 = vpop.f32.mrb[0].mxu0
        %v953 = vadd.f32 0.0, %v952
        %v954 = vpop.f32.mrb[0].mxu0
        %v955 = vadd.f32 0.0, %v954
        %956 = vdwg.mxu0
        %957 = vmatprep.subr.mxu0 %v724
        %958 = vmatpush1.msra.mxu0 %v723
        %959 = vmatprep.subr.mxu0 %v730
        %960 = vmatpush1.msra.mxu0 %v729
        %961 = vmatprep.subr.mxu0 %v736
        %962 = vmatpush1.msra.mxu0 %v735
        %963 = vmatprep.subr.mxu0 %v742
        %964 = vmatpush1.msra.mxu0 %v741
        %965 = vmatprep.subr.mxu0 %v748
        %966 = vmatpush1.msra.mxu0 %v747
        %967 = vmatprep.subr.mxu0 %v754
        %968 = vmatpush1.msra.mxu0 %v753
        %969 = vmatprep.subr.mxu0 %v760
        %970 = vmatpush1.msra.mxu0 %v759
        %971 = vmatprep.subr.mxu0 %v766
        %972 = vmatpush1.msra.mxu0 %v765
        %973 = vmatprep.subr.mxu0 %v772
        %974 = vmatpush1.msra.mxu0 %v771
        %975 = vmatprep.subr.mxu0 %v778
        %976 = vmatpush1.msra.mxu0 %v777
        %977 = vmatprep.subr.mxu0 %v784
        %978 = vmatpush1.msra.mxu0 %v783
        %979 = vmatprep.subr.mxu0 %v790
        %980 = vmatpush1.msra.mxu0 %v789
        %981 = vmatprep.subr.mxu0 %v796
        %982 = vmatpush1.msra.mxu0 %v795
        %983 = vmatprep.subr.mxu0 %v802
        %984 = vmatpush1.msra.mxu0 %v801
        %985 = vmatprep.subr.mxu0 %v808
        %986 = vmatpush1.msra.mxu0 %v807
        %987 = vmatprep.subr.mxu0 %v814
        %988 = vmatpush1.msra.mxu0 %v813
        %989 = vmatprep.subr.mxu0 0.0
        %990 = vmatpush1.msra.mxu0 0.0
        %991 = vmatprep.subr.mxu0 0.0
        %992 = vmatpush1.msra.mxu0 0.0
        %993 = vmatprep.subr.mxu0 0.0
        %994 = vmatpush1.msra.mxu0 0.0
        %995 = vmatprep.subr.mxu0 0.0
        %996 = vmatpush1.msra.mxu0 0.0
        %997 = vmatprep.subr.mxu0 0.0
        %998 = vmatpush1.msra.mxu0 0.0
        %999 = vmatprep.subr.mxu0 0.0
        %1000 = vmatpush1.msra.mxu0 0.0
        %1001 = vmatprep.subr.mxu0 0.0
        %1002 = vmatpush1.msra.mxu0 0.0
        %1003 = vmatprep.subr.mxu0 0.0
        %1004 = vmatpush1.msra.mxu0 0.0
        %1005 = vmatprep.subr.mxu0 0.0
        %1006 = vmatpush1.msra.mxu0 0.0
        %1007 = vmatprep.subr.mxu0 0.0
        %1008 = vmatpush1.msra.mxu0 0.0
        %1009 = vmatprep.subr.mxu0 0.0
        %1010 = vmatpush1.msra.mxu0 0.0
        %1011 = vmatprep.subr.mxu0 0.0
        %1012 = vmatpush1.msra.mxu0 0.0
        %1013 = vmatprep.subr.mxu0 0.0
        %1014 = vmatpush1.msra.mxu0 0.0
        %1015 = vmatprep.subr.mxu0 0.0
        %1016 = vmatpush1.msra.mxu0 0.0
        %1017 = vmatprep.subr.mxu0 0.0
        %1018 = vmatpush1.msra.mxu0 0.0
        %1019 = vmatprep.subr.mxu0 0.0
        %1020 = vmatpush1.msra.mxu0 0.0
        %1021 = vmatprep.mubr.f32.mxu0 0.0
        %1022 = vmatmul.mubr.f32.gmra.mrb[0].mxu0 %v409
        %v1023 = vpop.f32.mrb[0].mxu0
        %v1024 = vadd.f32 0.0, %v1023
        %v1025 = vpop.f32.mrb[0].mxu0
        %v1026 = vadd.f32 0.0, %v1025
        %1027 = vdwg.mxu0
        %v1028 = vld [vmem:[#allocation8] sm:$0xff]
        %v1029 = vld [vmem:[#allocation8 + $0x8] sm:$0xff]
        %v1030 = vld [vmem:[#allocation8 + $0x10] sm:$0xff]
        %v1031 = vld [vmem:[#allocation8 + $0x18] sm:$0xff]
        %v1032 = vld [vmem:[#allocation8 + $0x20] sm:$0xff]
        %v1033 = vld [vmem:[#allocation8 + $0x28] sm:$0xff]
        %v1034 = vld [vmem:[#allocation8 + $0x30] sm:$0xff]
        %v1035 = vld [vmem:[#allocation8 + $0x38] sm:$0xff]
        %v1036 = vld [vmem:[#allocation8 + $0x40] sm:$0xff]
        %v1037 = vld [vmem:[#allocation8 + $0x48] sm:$0xff]
        %v1038 = vld [vmem:[#allocation8 + $0x50] sm:$0xff]
        %v1039 = vld [vmem:[#allocation8 + $0x58] sm:$0xff]
        %v1040 = vld [vmem:[#allocation8 + $0x60] sm:$0xff]
        %v1041 = vld [vmem:[#allocation8 + $0x68] sm:$0xff]
        %v1042 = vld [vmem:[#allocation8 + $0x70] sm:$0xff]
        %v1043 = vld [vmem:[#allocation8 + $0x78] sm:$0xff]
        %v1044 = vld [vmem:[#allocation8 + $0x80] sm:$0xff]
        %v1045 = vld [vmem:[#allocation8 + $0x88] sm:$0xff]
        %v1046 = vld [vmem:[#allocation8 + $0x90] sm:$0xff]
        %v1047 = vld [vmem:[#allocation8 + $0x98] sm:$0xff]
        %v1048 = vld [vmem:[#allocation8 + $0xa0] sm:$0xff]
        %v1049 = vld [vmem:[#allocation8 + $0xa8] sm:$0xff]
        %v1050 = vld [vmem:[#allocation8 + $0xb0] sm:$0xff]
        %v1051 = vld [vmem:[#allocation8 + $0xb8] sm:$0xff]
        %v1052 = vld [vmem:[#allocation8 + $0xc0] sm:$0xff]
        %v1053 = vld [vmem:[#allocation8 + $0xc8] sm:$0xff]
        %v1054 = vld [vmem:[#allocation8 + $0xd0] sm:$0xff]
        %v1055 = vld [vmem:[#allocation8 + $0xd8] sm:$0xff]
        %v1056 = vld [vmem:[#allocation8 + $0xe0] sm:$0xff]
        %v1057 = vld [vmem:[#allocation8 + $0xe8] sm:$0xff]
        %v1058 = vld [vmem:[#allocation8 + $0xf0] sm:$0xff]
        %v1059 = vld [vmem:[#allocation8 + $0xf8] sm:$0xff]
        %v1060 = vld [vmem:[#allocation8 + $0x100] sm:$0xff]
        %v1061 = vld [vmem:[#allocation8 + $0x108] sm:$0xff]
        %v1062 = vld [vmem:[#allocation8 + $0x110] sm:$0xff]
        %v1063 = vld [vmem:[#allocation8 + $0x118] sm:$0xff]
        %v1064 = vld [vmem:[#allocation8 + $0x120] sm:$0xff]
        %v1065 = vld [vmem:[#allocation8 + $0x128] sm:$0xff]
        %v1066 = vld [vmem:[#allocation8 + $0x130] sm:$0xff]
        %v1067 = vld [vmem:[#allocation8 + $0x138] sm:$0xff]
        %v1068 = vld [vmem:[#allocation8 + $0x140] sm:$0xff]
        %v1069 = vld [vmem:[#allocation8 + $0x148] sm:$0xff]
        %v1070 = vld [vmem:[#allocation8 + $0x150] sm:$0xff]
        %v1071 = vld [vmem:[#allocation8 + $0x158] sm:$0xff]
        %v1072 = vld [vmem:[#allocation8 + $0x160] sm:$0xff]
        %v1073 = vld [vmem:[#allocation8 + $0x168] sm:$0xff]
        %v1074 = vld [vmem:[#allocation8 + $0x170] sm:$0xff]
        %v1075 = vld [vmem:[#allocation8 + $0x178] sm:$0xff]
        %v1076 = vld [vmem:[#allocation8 + $0x180] sm:$0xff]
        %v1077 = vld [vmem:[#allocation8 + $0x188] sm:$0xff]
        %v1078 = vld [vmem:[#allocation8 + $0x190] sm:$0xff]
        %v1079 = vld [vmem:[#allocation8 + $0x198] sm:$0xff]
        %v1080 = vld [vmem:[#allocation8 + $0x1a0] sm:$0xff]
        %v1081 = vld [vmem:[#allocation8 + $0x1a8] sm:$0xff]
        %v1082 = vld [vmem:[#allocation8 + $0x1b0] sm:$0xff]
        %v1083 = vld [vmem:[#allocation8 + $0x1b8] sm:$0xff]
        %v1084 = vld [vmem:[#allocation8 + $0x1c0] sm:$0xff]
        %v1085 = vld [vmem:[#allocation8 + $0x1c8] sm:$0xff]
        %v1086 = vld [vmem:[#allocation8 + $0x1d0] sm:$0xff]
        %v1087 = vld [vmem:[#allocation8 + $0x1d8] sm:$0xff]
        %v1088 = vld [vmem:[#allocation8 + $0x1e0] sm:$0xff]
        %v1089 = vld [vmem:[#allocation8 + $0x1e8] sm:$0xff]
        %v1090 = vld [vmem:[#allocation8 + $0x1f0] sm:$0xff]
        %v1091 = vld [vmem:[#allocation8 + $0x1f8] sm:$0xff]
        %v1092 = vld [vmem:[#allocation8 + $0x200] sm:$0xff]
        %v1093 = vld [vmem:[#allocation8 + $0x208] sm:$0xff]
        %v1094 = vld [vmem:[#allocation8 + $0x210] sm:$0xff]
        %v1095 = vld [vmem:[#allocation8 + $0x218] sm:$0xff]
        %v1096 = vld [vmem:[#allocation8 + $0x220] sm:$0xff]
        %v1097 = vld [vmem:[#allocation8 + $0x228] sm:$0xff]
        %v1098 = vld [vmem:[#allocation8 + $0x230] sm:$0xff]
        %v1099 = vld [vmem:[#allocation8 + $0x238] sm:$0xff]
        %v1100 = vld [vmem:[#allocation8 + $0x240] sm:$0xff]
        %v1101 = vld [vmem:[#allocation8 + $0x248] sm:$0xff]
        %v1102 = vld [vmem:[#allocation8 + $0x250] sm:$0xff]
        %v1103 = vld [vmem:[#allocation8 + $0x258] sm:$0xff]
        %v1104 = vld [vmem:[#allocation8 + $0x260] sm:$0xff]
        %v1105 = vld [vmem:[#allocation8 + $0x268] sm:$0xff]
        %v1106 = vld [vmem:[#allocation8 + $0x270] sm:$0xff]
        %v1107 = vld [vmem:[#allocation8 + $0x278] sm:$0xff]
        %v1108 = vld [vmem:[#allocation8 + $0x280] sm:$0xff]
        %v1109 = vld [vmem:[#allocation8 + $0x288] sm:$0xff]
        %v1110 = vld [vmem:[#allocation8 + $0x290] sm:$0xff]
        %v1111 = vld [vmem:[#allocation8 + $0x298] sm:$0xff]
        %v1112 = vld [vmem:[#allocation8 + $0x2a0] sm:$0xff]
        %v1113 = vld [vmem:[#allocation8 + $0x2a8] sm:$0xff]
        %v1114 = vld [vmem:[#allocation8 + $0x2b0] sm:$0xff]
        %v1115 = vld [vmem:[#allocation8 + $0x2b8] sm:$0xff]
        %v1116 = vld [vmem:[#allocation8 + $0x2c0] sm:$0xff]
        %v1117 = vld [vmem:[#allocation8 + $0x2c8] sm:$0xff]
        %v1118 = vld [vmem:[#allocation8 + $0x2d0] sm:$0xff]
        %v1119 = vld [vmem:[#allocation8 + $0x2d8] sm:$0xff]
        %v1120 = vld [vmem:[#allocation8 + $0x2e0] sm:$0xff]
        %v1121 = vld [vmem:[#allocation8 + $0x2e8] sm:$0xff]
        %v1122 = vld [vmem:[#allocation8 + $0x2f0] sm:$0xff]
        %v1123 = vld [vmem:[#allocation8 + $0x2f8] sm:$0xff]
        %1124 = vmatprep.subr.mxu0 %v1029
        %1125 = vmatpush1.msra.mxu0 %v1028
        %1126 = vmatprep.subr.mxu0 %v1035
        %1127 = vmatpush1.msra.mxu0 %v1034
        %1128 = vmatprep.subr.mxu0 %v1041
        %1129 = vmatpush1.msra.mxu0 %v1040
        %1130 = vmatprep.subr.mxu0 %v1047
        %1131 = vmatpush1.msra.mxu0 %v1046
        %1132 = vmatprep.subr.mxu0 %v1053
        %1133 = vmatpush1.msra.mxu0 %v1052
        %1134 = vmatprep.subr.mxu0 %v1059
        %1135 = vmatpush1.msra.mxu0 %v1058
        %1136 = vmatprep.subr.mxu0 %v1065
        %1137 = vmatpush1.msra.mxu0 %v1064
        %1138 = vmatprep.subr.mxu0 %v1071
        %1139 = vmatpush1.msra.mxu0 %v1070
        %1140 = vmatprep.subr.mxu0 %v1077
        %1141 = vmatpush1.msra.mxu0 %v1076
        %1142 = vmatprep.subr.mxu0 %v1083
        %1143 = vmatpush1.msra.mxu0 %v1082
        %1144 = vmatprep.subr.mxu0 %v1089
        %1145 = vmatpush1.msra.mxu0 %v1088
        %1146 = vmatprep.subr.mxu0 %v1095
        %1147 = vmatpush1.msra.mxu0 %v1094
        %1148 = vmatprep.subr.mxu0 %v1101
        %1149 = vmatpush1.msra.mxu0 %v1100
        %1150 = vmatprep.subr.mxu0 %v1107
        %1151 = vmatpush1.msra.mxu0 %v1106
        %1152 = vmatprep.subr.mxu0 %v1113
        %1153 = vmatpush1.msra.mxu0 %v1112
        %1154 = vmatprep.subr.mxu0 %v1119
        %1155 = vmatpush1.msra.mxu0 %v1118
        %1156 = vmatprep.subr.mxu0 0.0
        %1157 = vmatpush1.msra.mxu0 0.0
        %1158 = vmatprep.subr.mxu0 0.0
        %1159 = vmatpush1.msra.mxu0 0.0
        %1160 = vmatprep.subr.mxu0 0.0
        %1161 = vmatpush1.msra.mxu0 0.0
        %1162 = vmatprep.subr.mxu0 0.0
        %1163 = vmatpush1.msra.mxu0 0.0
        %1164 = vmatprep.subr.mxu0 0.0
        %1165 = vmatpush1.msra.mxu0 0.0
        %1166 = vmatprep.subr.mxu0 0.0
        %1167 = vmatpush1.msra.mxu0 0.0
        %1168 = vmatprep.subr.mxu0 0.0
        %1169 = vmatpush1.msra.mxu0 0.0
        %1170 = vmatprep.subr.mxu0 0.0
        %1171 = vmatpush1.msra.mxu0 0.0
        %1172 = vmatprep.subr.mxu0 0.0
        %1173 = vmatpush1.msra.mxu0 0.0
        %1174 = vmatprep.subr.mxu0 0.0
        %1175 = vmatpush1.msra.mxu0 0.0
        %1176 = vmatprep.subr.mxu0 0.0
        %1177 = vmatpush1.msra.mxu0 0.0
        %1178 = vmatprep.subr.mxu0 0.0
        %1179 = vmatpush1.msra.mxu0 0.0
        %1180 = vmatprep.subr.mxu0 0.0
        %1181 = vmatpush1.msra.mxu0 0.0
        %1182 = vmatprep.subr.mxu0 0.0
        %1183 = vmatpush1.msra.mxu0 0.0
        %1184 = vmatprep.subr.mxu0 0.0
        %1185 = vmatpush1.msra.mxu0 0.0
        %1186 = vmatprep.subr.mxu0 0.0
        %1187 = vmatpush1.msra.mxu0 0.0
        %1188 = vmatprep.mubr.f32.mxu0 0.0
        %1189 = vmatmul.mubr.f32.gmra.mrb[0].mxu0 %v409
        %v1190 = vpop.f32.mrb[0].mxu0
        %v1191 = vadd.f32 0.0, %v1190
        %v1192 = vpop.f32.mrb[0].mxu0
        %v1193 = vadd.f32 0.0, %v1192
        %1194 = vdwg.mxu0
        %1195 = vmatprep.subr.mxu0 %v1031
        %1196 = vmatpush1.msra.mxu0 %v1030
        %1197 = vmatprep.subr.mxu0 %v1037
        %1198 = vmatpush1.msra.mxu0 %v1036
        %1199 = vmatprep.subr.mxu0 %v1043
        %1200 = vmatpush1.msra.mxu0 %v1042
        %1201 = vmatprep.subr.mxu0 %v1049
        %1202 = vmatpush1.msra.mxu0 %v1048
        %1203 = vmatprep.subr.mxu0 %v1055
        %1204 = vmatpush1.msra.mxu0 %v1054
        %1205 = vmatprep.subr.mxu0 %v1061
        %1206 = vmatpush1.msra.mxu0 %v1060
        %1207 = vmatprep.subr.mxu0 %v1067
        %1208 = vmatpush1.msra.mxu0 %v1066
        %1209 = vmatprep.subr.mxu0 %v1073
        %1210 = vmatpush1.msra.mxu0 %v1072
        %1211 = vmatprep.subr.mxu0 %v1079
        %1212 = vmatpush1.msra.mxu0 %v1078
        %1213 = vmatprep.subr.mxu0 %v1085
        %1214 = vmatpush1.msra.mxu0 %v1084
        %1215 = vmatprep.subr.mxu0 %v1091
        %1216 = vmatpush1.msra.mxu0 %v1090
        %1217 = vmatprep.subr.mxu0 %v1097
        %1218 = vmatpush1.msra.mxu0 %v1096
        %1219 = vmatprep.subr.mxu0 %v1103
        %1220 = vmatpush1.msra.mxu0 %v1102
        %1221 = vmatprep.subr.mxu0 %v1109
        %1222 = vmatpush1.msra.mxu0 %v1108
        %1223 = vmatprep.subr.mxu0 %v1115
        %1224 = vmatpush1.msra.mxu0 %v1114
        %1225 = vmatprep.subr.mxu0 %v1121
        %1226 = vmatpush1.msra.mxu0 %v1120
        %1227 = vmatprep.subr.mxu0 0.0
        %1228 = vmatpush1.msra.mxu0 0.0
        %1229 = vmatprep.subr.mxu0 0.0
        %1230 = vmatpush1.msra.mxu0 0.0
        %1231 = vmatprep.subr.mxu0 0.0
        %1232 = vmatpush1.msra.mxu0 0.0
        %1233 = vmatprep.subr.mxu0 0.0
        %1234 = vmatpush1.msra.mxu0 0.0
        %1235 = vmatprep.subr.mxu0 0.0
        %1236 = vmatpush1.msra.mxu0 0.0
        %1237 = vmatprep.subr.mxu0 0.0
        %1238 = vmatpush1.msra.mxu0 0.0
        %1239 = vmatprep.subr.mxu0 0.0
        %1240 = vmatpush1.msra.mxu0 0.0
        %1241 = vmatprep.subr.mxu0 0.0
        %1242 = vmatpush1.msra.mxu0 0.0
        %1243 = vmatprep.subr.mxu0 0.0
        %1244 = vmatpush1.msra.mxu0 0.0
        %1245 = vmatprep.subr.mxu0 0.0
        %1246 = vmatpush1.msra.mxu0 0.0
        %1247 = vmatprep.subr.mxu0 0.0
        %1248 = vmatpush1.msra.mxu0 0.0
        %1249 = vmatprep.subr.mxu0 0.0
        %1250 = vmatpush1.msra.mxu0 0.0
        %1251 = vmatprep.subr.mxu0 0.0
        %1252 = vmatpush1.msra.mxu0 0.0
        %1253 = vmatprep.subr.mxu0 0.0
        %1254 = vmatpush1.msra.mxu0 0.0
        %1255 = vmatprep.subr.mxu0 0.0
        %1256 = vmatpush1.msra.mxu0 0.0
        %1257 = vmatprep.subr.mxu0 0.0
        %1258 = vmatpush1.msra.mxu0 0.0
        %1259 = vmatprep.mubr.f32.mxu0 0.0
        %1260 = vmatmul.mubr.f32.gmra.mrb[0].mxu0 %v409
        %v1261 = vpop.f32.mrb[0].mxu0
        %v1262 = vadd.f32 0.0, %v1261
        %v1263 = vpop.f32.mrb[0].mxu0
        %v1264 = vadd.f32 0.0, %v1263
        %1265 = vdwg.mxu0
        %1266 = vmatprep.subr.mxu0 %v1033
        %1267 = vmatpush1.msra.mxu0 %v1032
        %1268 = vmatprep.subr.mxu0 %v1039
        %1269 = vmatpush1.msra.mxu0 %v1038
        %1270 = vmatprep.subr.mxu0 %v1045
        %1271 = vmatpush1.msra.mxu0 %v1044
        %1272 = vmatprep.subr.mxu0 %v1051
        %1273 = vmatpush1.msra.mxu0 %v1050
        %1274 = vmatprep.subr.mxu0 %v1057
        %1275 = vmatpush1.msra.mxu0 %v1056
        %1276 = vmatprep.subr.mxu0 %v1063
        %1277 = vmatpush1.msra.mxu0 %v1062
        %1278 = vmatprep.subr.mxu0 %v1069
        %1279 = vmatpush1.msra.mxu0 %v1068
        %1280 = vmatprep.subr.mxu0 %v1075
        %1281 = vmatpush1.msra.mxu0 %v1074
        %1282 = vmatprep.subr.mxu0 %v1081
        %1283 = vmatpush1.msra.mxu0 %v1080
        %1284 = vmatprep.subr.mxu0 %v1087
        %1285 = vmatpush1.msra.mxu0 %v1086
        %1286 = vmatprep.subr.mxu0 %v1093
        %1287 = vmatpush1.msra.mxu0 %v1092
        %1288 = vmatprep.subr.mxu0 %v1099
        %1289 = vmatpush1.msra.mxu0 %v1098
        %1290 = vmatprep.subr.mxu0 %v1105
        %1291 = vmatpush1.msra.mxu0 %v1104
        %1292 = vmatprep.subr.mxu0 %v1111
        %1293 = vmatpush1.msra.mxu0 %v1110
        %1294 = vmatprep.subr.mxu0 %v1117
        %1295 = vmatpush1.msra.mxu0 %v1116
        %1296 = vmatprep.subr.mxu0 %v1123
        %1297 = vmatpush1.msra.mxu0 %v1122
        %1298 = vmatprep.subr.mxu0 0.0
        %1299 = vmatpush1.msra.mxu0 0.0
        %1300 = vmatprep.subr.mxu0 0.0
        %1301 = vmatpush1.msra.mxu0 0.0
        %1302 = vmatprep.subr.mxu0 0.0
        %1303 = vmatpush1.msra.mxu0 0.0
        %1304 = vmatprep.subr.mxu0 0.0
        %1305 = vmatpush1.msra.mxu0 0.0
        %1306 = vmatprep.subr.mxu0 0.0
        %1307 = vmatpush1.msra.mxu0 0.0
        %1308 = vmatprep.subr.mxu0 0.0
        %1309 = vmatpush1.msra.mxu0 0.0
        %1310 = vmatprep.subr.mxu0 0.0
        %1311 = vmatpush1.msra.mxu0 0.0
        %1312 = vmatprep.subr.mxu0 0.0
        %1313 = vmatpush1.msra.mxu0 0.0
        %1314 = vmatprep.subr.mxu0 0.0
        %1315 = vmatpush1.msra.mxu0 0.0
        %1316 = vmatprep.subr.mxu0 0.0
        %1317 = vmatpush1.msra.mxu0 0.0
        %1318 = vmatprep.subr.mxu0 0.0
        %1319 = vmatpush1.msra.mxu0 0.0
        %1320 = vmatprep.subr.mxu0 0.0
        %1321 = vmatpush1.msra.mxu0 0.0
        %1322 = vmatprep.subr.mxu0 0.0
        %1323 = vmatpush1.msra.mxu0 0.0
        %1324 = vmatprep.subr.mxu0 0.0
        %1325 = vmatpush1.msra.mxu0 0.0
        %1326 = vmatprep.subr.mxu0 0.0
        %1327 = vmatpush1.msra.mxu0 0.0
        %1328 = vmatprep.subr.mxu0 0.0
        %1329 = vmatpush1.msra.mxu0 0.0
        %1330 = vmatprep.mubr.f32.mxu0 0.0
        %1331 = vmatmul.mubr.f32.gmra.mrb[0].mxu0 %v409
        %v1332 = vpop.f32.mrb[0].mxu0
        %v1333 = vadd.f32 0.0, %v1332
        %v1334 = vpop.f32.mrb[0].mxu0
        %v1335 = vadd.f32 0.0, %v1334
        %1336 = vdwg.mxu0
        %v1337 = vlaneseq
        %v1338 = vshrl.u32 %v1337, 7
        %v1339 = vlaneseq
        %v1340 = vand.u32 %v1339, 127
        %vm1341 = vcmp.le.s32.totalorder %v1340, %v1338
        %1342 = vmatprep.subr.mxu0 0.0
        %1343 = vmatpush1.xpose.msra.mxu0 %v882
        %1344 = vmatprep.subr.mxu0 0.0
        %1345 = vmatpush1.xpose.msra.mxu0 0.0
        %1346 = vmatprep.subr.mxu0 0.0
        %1347 = vmatpush1.xpose.msra.mxu0 0.0
        %1348 = vmatprep.subr.mxu0 0.0
        %1349 = vmatpush1.xpose.msra.mxu0 0.0
        %1350 = vmatprep.subr.mxu0 0.0
        %1351 = vmatpush1.xpose.msra.mxu0 0.0
        %1352 = vmatprep.subr.mxu0 0.0
        %1353 = vmatpush1.xpose.msra.mxu0 0.0
        %1354 = vmatprep.subr.mxu0 0.0
        %1355 = vmatpush1.xpose.msra.mxu0 0.0
        %1356 = vmatprep.subr.mxu0 0.0
        %1357 = vmatpush1.xpose.msra.mxu0 0.0
        %1358 = vmatprep.subr.mxu0 0.0
        %1359 = vmatpush1.xpose.msra.mxu0 0.0
        %1360 = vmatprep.subr.mxu0 0.0
        %1361 = vmatpush1.xpose.msra.mxu0 0.0
        %1362 = vmatprep.subr.mxu0 0.0
        %1363 = vmatpush1.xpose.msra.mxu0 0.0
        %1364 = vmatprep.subr.mxu0 0.0
        %1365 = vmatpush1.xpose.msra.mxu0 0.0
        %1366 = vmatprep.subr.mxu0 0.0
        %1367 = vmatpush1.xpose.msra.mxu0 0.0
        %1368 = vmatprep.subr.mxu0 0.0
        %1369 = vmatpush1.xpose.msra.mxu0 0.0
        %1370 = vmatprep.subr.mxu0 0.0
        %1371 = vmatpush1.xpose.msra.mxu0 0.0
        %1372 = vmatprep.subr.mxu0 0.0
        %1373 = vmatpush1.xpose.msra.mxu0 0.0
        %1374 = vmatprep.subr.mxu0 0.0
        %1375 = vmatpush1.xpose.msra.mxu0 0.0
        %1376 = vmatprep.subr.mxu0 0.0
        %1377 = vmatpush1.xpose.msra.mxu0 0.0
        %1378 = vmatprep.subr.mxu0 0.0
        %1379 = vmatpush1.xpose.msra.mxu0 0.0
        %1380 = vmatprep.subr.mxu0 0.0
        %1381 = vmatpush1.xpose.msra.mxu0 0.0
        %1382 = vmatprep.subr.mxu0 0.0
        %1383 = vmatpush1.xpose.msra.mxu0 0.0
        %1384 = vmatprep.subr.mxu0 0.0
        %1385 = vmatpush1.xpose.msra.mxu0 0.0
        %1386 = vmatprep.subr.mxu0 0.0
        %1387 = vmatpush1.xpose.msra.mxu0 0.0
        %1388 = vmatprep.subr.mxu0 0.0
        %1389 = vmatpush1.xpose.msra.mxu0 0.0
        %1390 = vmatprep.subr.mxu0 0.0
        %1391 = vmatpush1.xpose.msra.mxu0 0.0
        %1392 = vmatprep.subr.mxu0 0.0
        %1393 = vmatpush1.xpose.msra.mxu0 0.0
        %1394 = vmatprep.subr.mxu0 0.0
        %1395 = vmatpush1.xpose.msra.mxu0 0.0
        %1396 = vmatprep.subr.mxu0 0.0
        %1397 = vmatpush1.xpose.msra.mxu0 0.0
        %1398 = vmatprep.subr.mxu0 0.0
        %1399 = vmatpush1.xpose.msra.mxu0 0.0
        %1400 = vmatprep.subr.mxu0 0.0
        %1401 = vmatpush1.xpose.msra.mxu0 0.0
        %1402 = vmatprep.subr.mxu0 0.0
        %1403 = vmatpush1.xpose.msra.mxu0 0.0
        %1404 = vmatprep.subr.mxu0 0.0
        %1405 = vmatpush1.xpose.msra.mxu0 0.0
        %1406 = vmatprep.mubr.f32.mxu0 0.0
        %1407 = vmatmul.mubr.f32.gmra.mrb[0].mxu0 %v573
        %v1408 = vpop.f32.mrb[0].mxu0
        %v1409 = vadd.f32 0.0, %v1408
        %v1410 = vpop.f32.mrb[0].mxu0
        %1411 = vdwg.mxu0
        %v1412 = vmul.f32 %v1409, 0.12909944
        %v1413 = vsel %vm1341, %v1412, -1e+30
        %vm1414 = vcmask 64512
        %v1415 = vsel %vm1414, %v1413, -inf
        %1416 = vmax.xlane.f32.xlu0 %v1415
        %v1417 = vpop.xlane.xlu0 %1416
        %v1418 = vsub.f32 %v1413, %v1417
        %v1419 = vmul.f32 %v1418, 1.442695
        %v1420 = vpow.pop %v1419
        %v1421 = vsel %vm1414, %v1420, 0.0
        %1422 = vadd.xlane.f32.xlu0 %v1421
        %v1423 = vpop.xlane.xlu0 %1422
        %v1424 = vrcp.pop %v1423
        %v1425 = vmul.f32 %v1420, %v1424
        %v1427 = vsel %vm1414, %v1425, 0
        %1429 = vmatprep.subr.mxu0 0.0
        %1430 = vmatpush1.msra.mxu0 %v1191
        %1431 = vmatprep.subr.mxu0 0.0
        %1432 = vmatpush1.msra.mxu0 0.0
        %1433 = vmatprep.subr.mxu0 0.0
        %1434 = vmatpush1.msra.mxu0 0.0
        %1435 = vmatprep.subr.mxu0 0.0
        %1436 = vmatpush1.msra.mxu0 0.0
        %1437 = vmatprep.subr.mxu0 0.0
        %1438 = vmatpush1.msra.mxu0 0.0
        %1439 = vmatprep.subr.mxu0 0.0
        %1440 = vmatpush1.msra.mxu0 0.0
        %1441 = vmatprep.subr.mxu0 0.0
        %1442 = vmatpush1.msra.mxu0 0.0
        %1443 = vmatprep.subr.mxu0 0.0
        %1444 = vmatpush1.msra.mxu0 0.0
        %1445 = vmatprep.subr.mxu0 0.0
        %1446 = vmatpush1.msra.mxu0 0.0
        %1447 = vmatprep.subr.mxu0 0.0
        %1448 = vmatpush1.msra.mxu0 0.0
        %1449 = vmatprep.subr.mxu0 0.0
        %1450 = vmatpush1.msra.mxu0 0.0
        %1451 = vmatprep.subr.mxu0 0.0
        %1452 = vmatpush1.msra.mxu0 0.0
        %1453 = vmatprep.subr.mxu0 0.0
        %1454 = vmatpush1.msra.mxu0 0.0
        %1455 = vmatprep.subr.mxu0 0.0
        %1456 = vmatpush1.msra.mxu0 0.0
        %1457 = vmatprep.subr.mxu0 0.0
        %1458 = vmatpush1.msra.mxu0 0.0
        %1459 = vmatprep.subr.mxu0 0.0
        %1460 = vmatpush1.msra.mxu0 0.0
        %1461 = vmatprep.subr.mxu0 0.0
        %1462 = vmatpush1.msra.mxu0 0.0
        %1463 = vmatprep.subr.mxu0 0.0
        %1464 = vmatpush1.msra.mxu0 0.0
        %1465 = vmatprep.subr.mxu0 0.0
        %1466 = vmatpush1.msra.mxu0 0.0
        %1467 = vmatprep.subr.mxu0 0.0
        %1468 = vmatpush1.msra.mxu0 0.0
        %1469 = vmatprep.subr.mxu0 0.0
        %1470 = vmatpush1.msra.mxu0 0.0
        %1471 = vmatprep.subr.mxu0 0.0
        %1472 = vmatpush1.msra.mxu0 0.0
        %1473 = vmatprep.subr.mxu0 0.0
        %1474 = vmatpush1.msra.mxu0 0.0
        %1475 = vmatprep.subr.mxu0 0.0
        %1476 = vmatpush1.msra.mxu0 0.0
        %1477 = vmatprep.subr.mxu0 0.0
        %1478 = vmatpush1.msra.mxu0 0.0
        %1479 = vmatprep.subr.mxu0 0.0
        %1480 = vmatpush1.msra.mxu0 0.0
        %1481 = vmatprep.subr.mxu0 0.0
        %1482 = vmatpush1.msra.mxu0 0.0
        %1483 = vmatprep.subr.mxu0 0.0
        %1484 = vmatpush1.msra.mxu0 0.0
        %1485 = vmatprep.subr.mxu0 0.0
        %1486 = vmatpush1.msra.mxu0 0.0
        %1487 = vmatprep.subr.mxu0 0.0
        %1488 = vmatpush1.msra.mxu0 0.0
        %1489 = vmatprep.subr.mxu0 0.0
        %1490 = vmatpush1.msra.mxu0 0.0
        %1491 = vmatprep.subr.mxu0 0.0
        %1492 = vmatpush1.msra.mxu0 0.0
        %1493 = vmatprep.mubr.f32.mxu0 0.0
        %1494 = vmatmul.mubr.f32.gmra.mrb[0].mxu0 %v1427
        %v1495 = vpop.f32.mrb[0].mxu0
        %v1496 = vadd.f32 0.0, %v1495
        %v1497 = vpop.f32.mrb[0].mxu0
        %1498 = vdwg.mxu0
        %v1499 = vld [vmem:[#allocation10] sm:$0xff]
        %v1500 = vld [vmem:[#allocation10 + $0x8] sm:$0xff]
        %v1501 = vld [vmem:[#allocation10 + $0x10] sm:$0xff]
        %v1502 = vld [vmem:[#allocation10 + $0x18] sm:$0xff]
        %v1503 = vld [vmem:[#allocation10 + $0x20] sm:$0xff]
        %v1504 = vld [vmem:[#allocation10 + $0x28] sm:$0xff]
        %v1505 = vld [vmem:[#allocation10 + $0x30] sm:$0xff]
        %v1506 = vld [vmem:[#allocation10 + $0x38] sm:$0xff]
        %v1507 = vld [vmem:[#allocation10 + $0x40] sm:$0xff]
        %v1508 = vld [vmem:[#allocation10 + $0x48] sm:$0xff]
        %v1509 = vld [vmem:[#allocation10 + $0x50] sm:$0xff]
        %v1510 = vld [vmem:[#allocation10 + $0x58] sm:$0xff]
        %v1511 = vld [vmem:[#allocation10 + $0x60] sm:$0xff]
        %v1512 = vld [vmem:[#allocation10 + $0x68] sm:$0xff]
        %v1513 = vld [vmem:[#allocation10 + $0x70] sm:$0xff]
        %v1514 = vld [vmem:[#allocation10 + $0x78] sm:$0xff]
        %1515 = vmatprep.subr.mxu0 0.0
        %1516 = vmatpush1.xpose.msra.mxu0 %v884
        %1517 = vmatprep.subr.mxu0 0.0
        %1518 = vmatpush1.xpose.msra.mxu0 0.0
        %1519 = vmatprep.subr.mxu0 0.0
        %1520 = vmatpush1.xpose.msra.mxu0 0.0
        %1521 = vmatprep.subr.mxu0 0.0
        %1522 = vmatpush1.xpose.msra.mxu0 0.0
        %1523 = vmatprep.subr.mxu0 0.0
        %1524 = vmatpush1.xpose.msra.mxu0 0.0
        %1525 = vmatprep.subr.mxu0 0.0
        %1526 = vmatpush1.xpose.msra.mxu0 0.0
        %1527 = vmatprep.subr.mxu0 0.0
        %1528 = vmatpush1.xpose.msra.mxu0 0.0
        %1529 = vmatprep.subr.mxu0 0.0
        %1530 = vmatpush1.xpose.msra.mxu0 0.0
        %1531 = vmatprep.subr.mxu0 0.0
        %1532 = vmatpush1.xpose.msra.mxu0 0.0
        %1533 = vmatprep.subr.mxu0 0.0
        %1534 = vmatpush1.xpose.msra.mxu0 0.0
        %1535 = vmatprep.subr.mxu0 0.0
        %1536 = vmatpush1.xpose.msra.mxu0 0.0
        %1537 = vmatprep.subr.mxu0 0.0
        %1538 = vmatpush1.xpose.msra.mxu0 0.0
        %1539 = vmatprep.subr.mxu0 0.0
        %1540 = vmatpush1.xpose.msra.mxu0 0.0
        %1541 = vmatprep.subr.mxu0 0.0
        %1542 = vmatpush1.xpose.msra.mxu0 0.0
        %1543 = vmatprep.subr.mxu0 0.0
        %1544 = vmatpush1.xpose.msra.mxu0 0.0
        %1545 = vmatprep.subr.mxu0 0.0
        %1546 = vmatpush1.xpose.msra.mxu0 0.0
        %1547 = vmatprep.subr.mxu0 0.0
        %1548 = vmatpush1.xpose.msra.mxu0 0.0
        %1549 = vmatprep.subr.mxu0 0.0
        %1550 = vmatpush1.xpose.msra.mxu0 0.0
        %1551 = vmatprep.subr.mxu0 0.0
        %1552 = vmatpush1.xpose.msra.mxu0 0.0
        %1553 = vmatprep.subr.mxu0 0.0
        %1554 = vmatpush1.xpose.msra.mxu0 0.0
        %1555 = vmatprep.subr.mxu0 0.0
        %1556 = vmatpush1.xpose.msra.mxu0 0.0
        %1557 = vmatprep.subr.mxu0 0.0
        %1558 = vmatpush1.xpose.msra.mxu0 0.0
        %1559 = vmatprep.subr.mxu0 0.0
        %1560 = vmatpush1.xpose.msra.mxu0 0.0
        %1561 = vmatprep.subr.mxu0 0.0
        %1562 = vmatpush1.xpose.msra.mxu0 0.0
        %1563 = vmatprep.subr.mxu0 0.0
        %1564 = vmatpush1.xpose.msra.mxu0 0.0
        %1565 = vmatprep.subr.mxu0 0.0
        %1566 = vmatpush1.xpose.msra.mxu0 0.0
        %1567 = vmatprep.subr.mxu0 0.0
        %1568 = vmatpush1.xpose.msra.mxu0 0.0
        %1569 = vmatprep.subr.mxu0 0.0
        %1570 = vmatpush1.xpose.msra.mxu0 0.0
        %1571 = vmatprep.subr.mxu0 0.0
        %1572 = vmatpush1.xpose.msra.mxu0 0.0
        %1573 = vmatprep.subr.mxu0 0.0
        %1574 = vmatpush1.xpose.msra.mxu0 0.0
        %1575 = vmatprep.subr.mxu0 0.0
        %1576 = vmatpush1.xpose.msra.mxu0 0.0
        %1577 = vmatprep.subr.mxu0 0.0
        %1578 = vmatpush1.xpose.msra.mxu0 0.0
        %1579 = vmatprep.mubr.f32.mxu0 0.0
        %1580 = vmatmul.mubr.f32.gmra.mrb[0].mxu0 %v575
        %v1581 = vpop.f32.mrb[0].mxu0
        %v1582 = vadd.f32 0.0, %v1581
        %v1583 = vpop.f32.mrb[0].mxu0
        %1584 = vdwg.mxu0
        %v1585 = vmul.f32 %v1582, 0.12909944
        %v1586 = vsel %vm1341, %v1585, -1e+30
        %v1587 = vsel %vm1414, %v1586, -inf
        %1588 = vmax.xlane.f32.xlu0 %v1587
        %v1589 = vpop.xlane.xlu0 %1588
        %v1590 = vsub.f32 %v1586, %v1589
        %v1591 = vmul.f32 %v1590, 1.442695
        %v1592 = vpow.pop %v1591
        %v1593 = vsel %vm1414, %v1592, 0.0
        %1594 = vadd.xlane.f32.xlu0 %v1593
        %v1595 = vpop.xlane.xlu0 %1594
        %v1596 = vrcp.pop %v1595
        %v1597 = vmul.f32 %v1592, %v1596
        %v1599 = vsel %vm1414, %v1597, 0
        %1601 = vmatprep.subr.mxu0 0.0
        %1602 = vmatpush1.msra.mxu0 %v1193
        %1603 = vmatprep.subr.mxu0 0.0
        %1604 = vmatpush1.msra.mxu0 0.0
        %1605 = vmatprep.subr.mxu0 0.0
        %1606 = vmatpush1.msra.mxu0 0.0
        %1607 = vmatprep.subr.mxu0 0.0
        %1608 = vmatpush1.msra.mxu0 0.0
        %1609 = vmatprep.subr.mxu0 0.0
        %1610 = vmatpush1.msra.mxu0 0.0
        %1611 = vmatprep.subr.mxu0 0.0
        %1612 = vmatpush1.msra.mxu0 0.0
        %1613 = vmatprep.subr.mxu0 0.0
        %1614 = vmatpush1.msra.mxu0 0.0
        %1615 = vmatprep.subr.mxu0 0.0
        %1616 = vmatpush1.msra.mxu0 0.0
        %1617 = vmatprep.subr.mxu0 0.0
        %1618 = vmatpush1.msra.mxu0 0.0
        %1619 = vmatprep.subr.mxu0 0.0
        %1620 = vmatpush1.msra.mxu0 0.0
        %1621 = vmatprep.subr.mxu0 0.0
        %1622 = vmatpush1.msra.mxu0 0.0
        %1623 = vmatprep.subr.mxu0 0.0
        %1624 = vmatpush1.msra.mxu0 0.0
        %1625 = vmatprep.subr.mxu0 0.0
        %1626 = vmatpush1.msra.mxu0 0.0
        %1627 = vmatprep.subr.mxu0 0.0
        %1628 = vmatpush1.msra.mxu0 0.0
        %1629 = vmatprep.subr.mxu0 0.0
        %1630 = vmatpush1.msra.mxu0 0.0
        %1631 = vmatprep.subr.mxu0 0.0
        %1632 = vmatpush1.msra.mxu0 0.0
        %1633 = vmatprep.subr.mxu0 0.0
        %1634 = vmatpush1.msra.mxu0 0.0
        %1635 = vmatprep.subr.mxu0 0.0
        %1636 = vmatpush1.msra.mxu0 0.0
        %1637 = vmatprep.subr.mxu0 0.0
        %1638 = vmatpush1.msra.mxu0 0.0
        %1639 = vmatprep.subr.mxu0 0.0
        %1640 = vmatpush1.msra.mxu0 0.0
        %1641 = vmatprep.subr.mxu0 0.0
        %1642 = vmatpush1.msra.mxu0 0.0
        %1643 = vmatprep.subr.mxu0 0.0
        %1644 = vmatpush1.msra.mxu0 0.0
        %1645 = vmatprep.subr.mxu0 0.0
        %1646 = vmatpush1.msra.mxu0 0.0
        %1647 = vmatprep.subr.mxu0 0.0
        %1648 = vmatpush1.msra.mxu0 0.0
        %1649 = vmatprep.subr.mxu0 0.0
        %1650 = vmatpush1.msra.mxu0 0.0
        %1651 = vmatprep.subr.mxu0 0.0
        %1652 = vmatpush1.msra.mxu0 0.0
        %1653 = vmatprep.subr.mxu0 0.0
        %1654 = vmatpush1.msra.mxu0 0.0
        %1655 = vmatprep.subr.mxu0 0.0
        %1656 = vmatpush1.msra.mxu0 0.0
        %1657 = vmatprep.subr.mxu0 0.0
        %1658 = vmatpush1.msra.mxu0 0.0
        %1659 = vmatprep.subr.mxu0 0.0
        %1660 = vmatpush1.msra.mxu0 0.0
        %1661 = vmatprep.subr.mxu0 0.0
        %1662 = vmatpush1.msra.mxu0 0.0
        %1663 = vmatprep.subr.mxu0 0.0
        %1664 = vmatpush1.msra.mxu0 0.0
        %1665 = vmatprep.mubr.f32.mxu0 0.0
        %1666 = vmatmul.mubr.f32.gmra.mrb[0].mxu0 %v1599
        %v1667 = vpop.f32.mrb[0].mxu0
        %v1668 = vadd.f32 0.0, %v1667
        %v1669 = vpop.f32.mrb[0].mxu0
        %1670 = vdwg.mxu0
        %v1671 = vld [vmem:[#allocation10 + $0x80] sm:$0xff]
        %v1672 = vld [vmem:[#allocation10 + $0x88] sm:$0xff]
        %v1673 = vld [vmem:[#allocation10 + $0x90] sm:$0xff]
        %v1674 = vld [vmem:[#allocation10 + $0x98] sm:$0xff]
        %v1675 = vld [vmem:[#allocation10 + $0xa0] sm:$0xff]
        %v1676 = vld [vmem:[#allocation10 + $0xa8] sm:$0xff]
        %v1677 = vld [vmem:[#allocation10 + $0xb0] sm:$0xff]
        %v1678 = vld [vmem:[#allocation10 + $0xb8] sm:$0xff]
        %v1679 = vld [vmem:[#allocation10 + $0xc0] sm:$0xff]
        %v1680 = vld [vmem:[#allocation10 + $0xc8] sm:$0xff]
        %v1681 = vld [vmem:[#allocation10 + $0xd0] sm:$0xff]
        %v1682 = vld [vmem:[#allocation10 + $0xd8] sm:$0xff]
        %v1683 = vld [vmem:[#allocation10 + $0xe0] sm:$0xff]
        %v1684 = vld [vmem:[#allocation10 + $0xe8] sm:$0xff]
        %v1685 = vld [vmem:[#allocation10 + $0xf0] sm:$0xff]
        %v1686 = vld [vmem:[#allocation10 + $0xf8] sm:$0xff]
        %1687 = vmatprep.subr.mxu0 0.0
        %1688 = vmatpush1.msra.mxu0 %v1671
        %1689 = vmatprep.subr.mxu0 0.0
        %1690 = vmatpush1.msra.mxu0 %v1672
        %1691 = vmatprep.subr.mxu0 0.0
        %1692 = vmatpush1.msra.mxu0 %v1673
        %1693 = vmatprep.subr.mxu0 0.0
        %1694 = vmatpush1.msra.mxu0 %v1674
        %1695 = vmatprep.subr.mxu0 0.0
        %1696 = vmatpush1.msra.mxu0 %v1675
        %1697 = vmatprep.subr.mxu0 0.0
        %1698 = vmatpush1.msra.mxu0 %v1676
        %1699 = vmatprep.subr.mxu0 0.0
        %1700 = vmatpush1.msra.mxu0 %v1677
        %1701 = vmatprep.subr.mxu0 0.0
        %1702 = vmatpush1.msra.mxu0 %v1678
        %1703 = vmatprep.subr.mxu0 0.0
        %1704 = vmatpush1.msra.mxu0 %v1679
        %1705 = vmatprep.subr.mxu0 0.0
        %1706 = vmatpush1.msra.mxu0 %v1680
        %1707 = vmatprep.subr.mxu0 0.0
        %1708 = vmatpush1.msra.mxu0 %v1681
        %1709 = vmatprep.subr.mxu0 0.0
        %1710 = vmatpush1.msra.mxu0 %v1682
        %1711 = vmatprep.subr.mxu0 0.0
        %1712 = vmatpush1.msra.mxu0 %v1683
        %1713 = vmatprep.subr.mxu0 0.0
        %1714 = vmatpush1.msra.mxu0 %v1684
        %1715 = vmatprep.subr.mxu0 0.0
        %1716 = vmatpush1.msra.mxu0 %v1685
        %1717 = vmatprep.subr.mxu0 0.0
        %1718 = vmatpush1.msra.mxu0 %v1686
        %1719 = vmatprep.subr.mxu0 0.0
        %1720 = vmatpush1.msra.mxu0 0.0
        %1721 = vmatprep.subr.mxu0 0.0
        %1722 = vmatpush1.msra.mxu0 0.0
        %1723 = vmatprep.subr.mxu0 0.0
        %1724 = vmatpush1.msra.mxu0 0.0
        %1725 = vmatprep.subr.mxu0 0.0
        %1726 = vmatpush1.msra.mxu0 0.0
        %1727 = vmatprep.subr.mxu0 0.0
        %1728 = vmatpush1.msra.mxu0 0.0
        %1729 = vmatprep.subr.mxu0 0.0
        %1730 = vmatpush1.msra.mxu0 0.0
        %1731 = vmatprep.subr.mxu0 0.0
        %1732 = vmatpush1.msra.mxu0 0.0
        %1733 = vmatprep.subr.mxu0 0.0
        %1734 = vmatpush1.msra.mxu0 0.0
        %1735 = vmatprep.subr.mxu0 0.0
        %1736 = vmatpush1.msra.mxu0 0.0
        %1737 = vmatprep.subr.mxu0 0.0
        %1738 = vmatpush1.msra.mxu0 0.0
        %1739 = vmatprep.subr.mxu0 0.0
        %1740 = vmatpush1.msra.mxu0 0.0
        %1741 = vmatprep.subr.mxu0 0.0
        %1742 = vmatpush1.msra.mxu0 0.0
        %1743 = vmatprep.subr.mxu0 0.0
        %1744 = vmatpush1.msra.mxu0 0.0
        %1745 = vmatprep.subr.mxu0 0.0
        %1746 = vmatpush1.msra.mxu0 0.0
        %1747 = vmatprep.subr.mxu0 0.0
        %1748 = vmatpush1.msra.mxu0 0.0
        %1749 = vmatprep.subr.mxu0 0.0
        %1750 = vmatpush1.msra.mxu0 0.0
        %1751 = vmatprep.mubr.f32.mxu0 0.0
        %1752 = vmatmul.mubr.f32.gmra.mrb[0].mxu0 %v1668
        %v1753 = vpop.f32.mrb[0].mxu0
        %v1754 = vadd.f32 0.0, %v1753
        %v1755 = vpop.f32.mrb[0].mxu0
        %1756 = vdwg.mxu0
        %1757 = vmatprep.subr.mxu0 0.0
        %1758 = vmatpush1.msra.mxu0 %v1499
        %1759 = vmatprep.subr.mxu0 0.0
        %1760 = vmatpush1.msra.mxu0 %v1500
        %1761 = vmatprep.subr.mxu0 0.0
        %1762 = vmatpush1.msra.mxu0 %v1501
        %1763 = vmatprep.subr.mxu0 0.0
        %1764 = vmatpush1.msra.mxu0 %v1502
        %1765 = vmatprep.subr.mxu0 0.0
        %1766 = vmatpush1.msra.mxu0 %v1503
        %1767 = vmatprep.subr.mxu0 0.0
        %1768 = vmatpush1.msra.mxu0 %v1504
        %1769 = vmatprep.subr.mxu0 0.0
        %1770 = vmatpush1.msra.mxu0 %v1505
        %1771 = vmatprep.subr.mxu0 0.0
        %1772 = vmatpush1.msra.mxu0 %v1506
        %1773 = vmatprep.subr.mxu0 0.0
        %1774 = vmatpush1.msra.mxu0 %v1507
        %1775 = vmatprep.subr.mxu0 0.0
        %1776 = vmatpush1.msra.mxu0 %v1508
        %1777 = vmatprep.subr.mxu0 0.0
        %1778 = vmatpush1.msra.mxu0 %v1509
        %1779 = vmatprep.subr.mxu0 0.0
        %1780 = vmatpush1.msra.mxu0 %v1510
        %1781 = vmatprep.subr.mxu0 0.0
        %1782 = vmatpush1.msra.mxu0 %v1511
        %1783 = vmatprep.subr.mxu0 0.0
        %1784 = vmatpush1.msra.mxu0 %v1512
        %1785 = vmatprep.subr.mxu0 0.0
        %1786 = vmatpush1.msra.mxu0 %v1513
        %1787 = vmatprep.subr.mxu0 0.0
        %1788 = vmatpush1.msra.mxu0 %v1514
        %1789 = vmatprep.subr.mxu0 0.0
        %1790 = vmatpush1.msra.mxu0 0.0
        %1791 = vmatprep.subr.mxu0 0.0
        %1792 = vmatpush1.msra.mxu0 0.0
        %1793 = vmatprep.subr.mxu0 0.0
        %1794 = vmatpush1.msra.mxu0 0.0
        %1795 = vmatprep.subr.mxu0 0.0
        %1796 = vmatpush1.msra.mxu0 0.0
        %1797 = vmatprep.subr.mxu0 0.0
        %1798 = vmatpush1.msra.mxu0 0.0
        %1799 = vmatprep.subr.mxu0 0.0
        %1800 = vmatpush1.msra.mxu0 0.0
        %1801 = vmatprep.subr.mxu0 0.0
        %1802 = vmatpush1.msra.mxu0 0.0
        %1803 = vmatprep.subr.mxu0 0.0
        %1804 = vmatpush1.msra.mxu0 0.0
        %1805 = vmatprep.subr.mxu0 0.0
        %1806 = vmatpush1.msra.mxu0 0.0
        %1807 = vmatprep.subr.mxu0 0.0
        %1808 = vmatpush1.msra.mxu0 0.0
        %1809 = vmatprep.subr.mxu0 0.0
        %1810 = vmatpush1.msra.mxu0 0.0
        %1811 = vmatprep.subr.mxu0 0.0
        %1812 = vmatpush1.msra.mxu0 0.0
        %1813 = vmatprep.subr.mxu0 0.0
        %1814 = vmatpush1.msra.mxu0 0.0
        %1815 = vmatprep.subr.mxu0 0.0
        %1816 = vmatpush1.msra.mxu0 0.0
        %1817 = vmatprep.subr.mxu0 0.0
        %1818 = vmatpush1.msra.mxu0 0.0
        %1819 = vmatprep.subr.mxu0 0.0
        %1820 = vmatpush1.msra.mxu0 0.0
        %1821 = vmatprep.mubr.f32.mxu0 0.0
        %1822 = vmatmul.mubr.f32.gmra.mrb[0].mxu0 %v1496
        %v1823 = vpop.f32.mrb[0].mxu0
        %v1824 = vadd.f32 %v1754, %v1823
        %v1825 = vpop.f32.mrb[0].mxu0
        %1826 = vdwg.mxu0
        %1827 = vmatprep.subr.mxu0 0.0
        %1828 = vmatpush1.xpose.msra.mxu0 %v953
        %1829 = vmatprep.subr.mxu0 0.0
        %1830 = vmatpush1.xpose.msra.mxu0 0.0
        %1831 = vmatprep.subr.mxu0 0.0
        %1832 = vmatpush1.xpose.msra.mxu0 0.0
        %1833 = vmatprep.subr.mxu0 0.0
        %1834 = vmatpush1.xpose.msra.mxu0 0.0
        %1835 = vmatprep.subr.mxu0 0.0
        %1836 = vmatpush1.xpose.msra.mxu0 0.0
        %1837 = vmatprep.subr.mxu0 0.0
        %1838 = vmatpush1.xpose.msra.mxu0 0.0
        %1839 = vmatprep.subr.mxu0 0.0
        %1840 = vmatpush1.xpose.msra.mxu0 0.0
        %1841 = vmatprep.subr.mxu0 0.0
        %1842 = vmatpush1.xpose.msra.mxu0 0.0
        %1843 = vmatprep.subr.mxu0 0.0
        %1844 = vmatpush1.xpose.msra.mxu0 0.0
        %1845 = vmatprep.subr.mxu0 0.0
        %1846 = vmatpush1.xpose.msra.mxu0 0.0
        %1847 = vmatprep.subr.mxu0 0.0
        %1848 = vmatpush1.xpose.msra.mxu0 0.0
        %1849 = vmatprep.subr.mxu0 0.0
        %1850 = vmatpush1.xpose.msra.mxu0 0.0
        %1851 = vmatprep.subr.mxu0 0.0
        %1852 = vmatpush1.xpose.msra.mxu0 0.0
        %1853 = vmatprep.subr.mxu0 0.0
        %1854 = vmatpush1.xpose.msra.mxu0 0.0
        %1855 = vmatprep.subr.mxu0 0.0
        %1856 = vmatpush1.xpose.msra.mxu0 0.0
        %1857 = vmatprep.subr.mxu0 0.0
        %1858 = vmatpush1.xpose.msra.mxu0 0.0
        %1859 = vmatprep.subr.mxu0 0.0
        %1860 = vmatpush1.xpose.msra.mxu0 0.0
        %1861 = vmatprep.subr.mxu0 0.0
        %1862 = vmatpush1.xpose.msra.mxu0 0.0
        %1863 = vmatprep.subr.mxu0 0.0
        %1864 = vmatpush1.xpose.msra.mxu0 0.0
        %1865 = vmatprep.subr.mxu0 0.0
        %1866 = vmatpush1.xpose.msra.mxu0 0.0
        %1867 = vmatprep.subr.mxu0 0.0
        %1868 = vmatpush1.xpose.msra.mxu0 0.0
        %1869 = vmatprep.subr.mxu0 0.0
        %1870 = vmatpush1.xpose.msra.mxu0 0.0
        %1871 = vmatprep.subr.mxu0 0.0
        %1872 = vmatpush1.xpose.msra.mxu0 0.0
        %1873 = vmatprep.subr.mxu0 0.0
        %1874 = vmatpush1.xpose.msra.mxu0 0.0
        %1875 = vmatprep.subr.mxu0 0.0
        %1876 = vmatpush1.xpose.msra.mxu0 0.0
        %1877 = vmatprep.subr.mxu0 0.0
        %1878 = vmatpush1.xpose.msra.mxu0 0.0
        %1879 = vmatprep.subr.mxu0 0.0
        %1880 = vmatpush1.xpose.msra.mxu0 0.0
        %1881 = vmatprep.subr.mxu0 0.0
        %1882 = vmatpush1.xpose.msra.mxu0 0.0
        %1883 = vmatprep.subr.mxu0 0.0
        %1884 = vmatpush1.xpose.msra.mxu0 0.0
        %1885 = vmatprep.subr.mxu0 0.0
        %1886 = vmatpush1.xpose.msra.mxu0 0.0
        %1887 = vmatprep.subr.mxu0 0.0
        %1888 = vmatpush1.xpose.msra.mxu0 0.0
        %1889 = vmatprep.subr.mxu0 0.0
        %1890 = vmatpush1.xpose.msra.mxu0 0.0
        %1891 = vmatprep.mubr.f32.mxu0 0.0
        %1892 = vmatmul.mubr.f32.gmra.mrb[0].mxu0 %v644
        %v1893 = vpop.f32.mrb[0].mxu0
        %v1894 = vadd.f32 0.0, %v1893
        %v1895 = vpop.f32.mrb[0].mxu0
        %1896 = vdwg.mxu0
        %v1897 = vmul.f32 %v1894, 0.12909944
        %v1898 = vsel %vm1341, %v1897, -1e+30
        %v1899 = vsel %vm1414, %v1898, -inf
        %1900 = vmax.xlane.f32.xlu0 %v1899
        %v1901 = vpop.xlane.xlu0 %1900
        %v1902 = vsub.f32 %v1898, %v1901
        %v1903 = vmul.f32 %v1902, 1.442695
        %v1904 = vpow.pop %v1903
        %v1905 = vsel %vm1414, %v1904, 0.0
        %1906 = vadd.xlane.f32.xlu0 %v1905
        %v1907 = vpop.xlane.xlu0 %1906
        %v1908 = vrcp.pop %v1907
        %v1909 = vmul.f32 %v1904, %v1908
        %v1911 = vsel %vm1414, %v1909, 0
        %1913 = vmatprep.subr.mxu0 0.0
        %1914 = vmatpush1.msra.mxu0 %v1262
        %1915 = vmatprep.subr.mxu0 0.0
        %1916 = vmatpush1.msra.mxu0 0.0
        %1917 = vmatprep.subr.mxu0 0.0
        %1918 = vmatpush1.msra.mxu0 0.0
        %1919 = vmatprep.subr.mxu0 0.0
        %1920 = vmatpush1.msra.mxu0 0.0
        %1921 = vmatprep.subr.mxu0 0.0
        %1922 = vmatpush1.msra.mxu0 0.0
        %1923 = vmatprep.subr.mxu0 0.0
        %1924 = vmatpush1.msra.mxu0 0.0
        %1925 = vmatprep.subr.mxu0 0.0
        %1926 = vmatpush1.msra.mxu0 0.0
        %1927 = vmatprep.subr.mxu0 0.0
        %1928 = vmatpush1.msra.mxu0 0.0
        %1929 = vmatprep.subr.mxu0 0.0
        %1930 = vmatpush1.msra.mxu0 0.0
        %1931 = vmatprep.subr.mxu0 0.0
        %1932 = vmatpush1.msra.mxu0 0.0
        %1933 = vmatprep.subr.mxu0 0.0
        %1934 = vmatpush1.msra.mxu0 0.0
        %1935 = vmatprep.subr.mxu0 0.0
        %1936 = vmatpush1.msra.mxu0 0.0
        %1937 = vmatprep.subr.mxu0 0.0
        %1938 = vmatpush1.msra.mxu0 0.0
        %1939 = vmatprep.subr.mxu0 0.0
        %1940 = vmatpush1.msra.mxu0 0.0
        %1941 = vmatprep.subr.mxu0 0.0
        %1942 = vmatpush1.msra.mxu0 0.0
        %1943 = vmatprep.subr.mxu0 0.0
        %1944 = vmatpush1.msra.mxu0 0.0
        %1945 = vmatprep.subr.mxu0 0.0
        %1946 = vmatpush1.msra.mxu0 0.0
        %1947 = vmatprep.subr.mxu0 0.0
        %1948 = vmatpush1.msra.mxu0 0.0
        %1949 = vmatprep.subr.mxu0 0.0
        %1950 = vmatpush1.msra.mxu0 0.0
        %1951 = vmatprep.subr.mxu0 0.0
        %1952 = vmatpush1.msra.mxu0 0.0
        %1953 = vmatprep.subr.mxu0 0.0
        %1954 = vmatpush1.msra.mxu0 0.0
        %1955 = vmatprep.subr.mxu0 0.0
        %1956 = vmatpush1.msra.mxu0 0.0
        %1957 = vmatprep.subr.mxu0 0.0
        %1958 = vmatpush1.msra.mxu0 0.0
        %1959 = vmatprep.subr.mxu0 0.0
        %1960 = vmatpush1.msra.mxu0 0.0
        %1961 = vmatprep.subr.mxu0 0.0
        %1962 = vmatpush1.msra.mxu0 0.0
        %1963 = vmatprep.subr.mxu0 0.0
        %1964 = vmatpush1.msra.mxu0 0.0
        %1965 = vmatprep.subr.mxu0 0.0
        %1966 = vmatpush1.msra.mxu0 0.0
        %1967 = vmatprep.subr.mxu0 0.0
        %1968 = vmatpush1.msra.mxu0 0.0
        %1969 = vmatprep.subr.mxu0 0.0
        %1970 = vmatpush1.msra.mxu0 0.0
        %1971 = vmatprep.subr.mxu0 0.0
        %1972 = vmatpush1.msra.mxu0 0.0
        %1973 = vmatprep.subr.mxu0 0.0
        %1974 = vmatpush1.msra.mxu0 0.0
        %1975 = vmatprep.subr.mxu0 0.0
        %1976 = vmatpush1.msra.mxu0 0.0
        %1977 = vmatprep.mubr.f32.mxu0 0.0
        %1978 = vmatmul.mubr.f32.gmra.mrb[0].mxu0 %v1911
        %v1979 = vpop.f32.mrb[0].mxu0
        %v1980 = vadd.f32 0.0, %v1979
        %v1981 = vpop.f32.mrb[0].mxu0
        %1982 = vdwg.mxu0
        %v1983 = vld [vmem:[#allocation10 + $0x100] sm:$0xff]
        %v1984 = vld [vmem:[#allocation10 + $0x108] sm:$0xff]
        %v1985 = vld [vmem:[#allocation10 + $0x110] sm:$0xff]
        %v1986 = vld [vmem:[#allocation10 + $0x118] sm:$0xff]
        %v1987 = vld [vmem:[#allocation10 + $0x120] sm:$0xff]
        %v1988 = vld [vmem:[#allocation10 + $0x128] sm:$0xff]
        %v1989 = vld [vmem:[#allocation10 + $0x130] sm:$0xff]
        %v1990 = vld [vmem:[#allocation10 + $0x138] sm:$0xff]
        %v1991 = vld [vmem:[#allocation10 + $0x140] sm:$0xff]
        %v1992 = vld [vmem:[#allocation10 + $0x148] sm:$0xff]
        %v1993 = vld [vmem:[#allocation10 + $0x150] sm:$0xff]
        %v1994 = vld [vmem:[#allocation10 + $0x158] sm:$0xff]
        %v1995 = vld [vmem:[#allocation10 + $0x160] sm:$0xff]
        %v1996 = vld [vmem:[#allocation10 + $0x168] sm:$0xff]
        %v1997 = vld [vmem:[#allocation10 + $0x170] sm:$0xff]
        %v1998 = vld [vmem:[#allocation10 + $0x178] sm:$0xff]
        %1999 = vmatprep.subr.mxu0 0.0
        %2000 = vmatpush1.msra.mxu0 %v1983
        %2001 = vmatprep.subr.mxu0 0.0
        %2002 = vmatpush1.msra.mxu0 %v1984
        %2003 = vmatprep.subr.mxu0 0.0
        %2004 = vmatpush1.msra.mxu0 %v1985
        %2005 = vmatprep.subr.mxu0 0.0
        %2006 = vmatpush1.msra.mxu0 %v1986
        %2007 = vmatprep.subr.mxu0 0.0
        %2008 = vmatpush1.msra.mxu0 %v1987
        %2009 = vmatprep.subr.mxu0 0.0
        %2010 = vmatpush1.msra.mxu0 %v1988
        %2011 = vmatprep.subr.mxu0 0.0
        %2012 = vmatpush1.msra.mxu0 %v1989
        %2013 = vmatprep.subr.mxu0 0.0
        %2014 = vmatpush1.msra.mxu0 %v1990
        %2015 = vmatprep.subr.mxu0 0.0
        %2016 = vmatpush1.msra.mxu0 %v1991
        %2017 = vmatprep.subr.mxu0 0.0
        %2018 = vmatpush1.msra.mxu0 %v1992
        %2019 = vmatprep.subr.mxu0 0.0
        %2020 = vmatpush1.msra.mxu0 %v1993
        %2021 = vmatprep.subr.mxu0 0.0
        %2022 = vmatpush1.msra.mxu0 %v1994
        %2023 = vmatprep.subr.mxu0 0.0
        %2024 = vmatpush1.msra.mxu0 %v1995
        %2025 = vmatprep.subr.mxu0 0.0
        %2026 = vmatpush1.msra.mxu0 %v1996
        %2027 = vmatprep.subr.mxu0 0.0
        %2028 = vmatpush1.msra.mxu0 %v1997
        %2029 = vmatprep.subr.mxu0 0.0
        %2030 = vmatpush1.msra.mxu0 %v1998
        %2031 = vmatprep.subr.mxu0 0.0
        %2032 = vmatpush1.msra.mxu0 0.0
        %2033 = vmatprep.subr.mxu0 0.0
        %2034 = vmatpush1.msra.mxu0 0.0
        %2035 = vmatprep.subr.mxu0 0.0
        %2036 = vmatpush1.msra.mxu0 0.0
        %2037 = vmatprep.subr.mxu0 0.0
        %2038 = vmatpush1.msra.mxu0 0.0
        %2039 = vmatprep.subr.mxu0 0.0
        %2040 = vmatpush1.msra.mxu0 0.0
        %2041 = vmatprep.subr.mxu0 0.0
        %2042 = vmatpush1.msra.mxu0 0.0
        %2043 = vmatprep.subr.mxu0 0.0
        %2044 = vmatpush1.msra.mxu0 0.0
        %2045 = vmatprep.subr.mxu0 0.0
        %2046 = vmatpush1.msra.mxu0 0.0
        %2047 = vmatprep.subr.mxu0 0.0
        %2048 = vmatpush1.msra.mxu0 0.0
        %2049 = vmatprep.subr.mxu0 0.0
        %2050 = vmatpush1.msra.mxu0 0.0
        %2051 = vmatprep.subr.mxu0 0.0
        %2052 = vmatpush1.msra.mxu0 0.0
        %2053 = vmatprep.subr.mxu0 0.0
        %2054 = vmatpush1.msra.mxu0 0.0
        %2055 = vmatprep.subr.mxu0 0.0
        %2056 = vmatpush1.msra.mxu0 0.0
        %2057 = vmatprep.subr.mxu0 0.0
        %2058 = vmatpush1.msra.mxu0 0.0
        %2059 = vmatprep.subr.mxu0 0.0
        %2060 = vmatpush1.msra.mxu0 0.0
        %2061 = vmatprep.subr.mxu0 0.0
        %2062 = vmatpush1.msra.mxu0 0.0
        %2063 = vmatprep.mubr.f32.mxu0 0.0
        %2064 = vmatmul.mubr.f32.gmra.mrb[0].mxu0 %v1980
        %v2065 = vpop.f32.mrb[0].mxu0
        %v2066 = vadd.f32 0.0, %v2065
        %v2067 = vpop.f32.mrb[0].mxu0
        %2068 = vdwg.mxu0
        %v2069 = vadd.f32 %v1824, %v2066
        %2070 = vmatprep.subr.mxu0 0.0
        %2071 = vmatpush1.xpose.msra.mxu0 %v955
        %2072 = vmatprep.subr.mxu0 0.0
        %2073 = vmatpush1.xpose.msra.mxu0 0.0
        %2074 = vmatprep.subr.mxu0 0.0
        %2075 = vmatpush1.xpose.msra.mxu0 0.0
        %2076 = vmatprep.subr.mxu0 0.0
        %2077 = vmatpush1.xpose.msra.mxu0 0.0
        %2078 = vmatprep.subr.mxu0 0.0
        %2079 = vmatpush1.xpose.msra.mxu0 0.0
        %2080 = vmatprep.subr.mxu0 0.0
        %2081 = vmatpush1.xpose.msra.mxu0 0.0
        %2082 = vmatprep.subr.mxu0 0.0
        %2083 = vmatpush1.xpose.msra.mxu0 0.0
        %2084 = vmatprep.subr.mxu0 0.0
        %2085 = vmatpush1.xpose.msra.mxu0 0.0
        %2086 = vmatprep.subr.mxu0 0.0
        %2087 = vmatpush1.xpose.msra.mxu0 0.0
        %2088 = vmatprep.subr.mxu0 0.0
        %2089 = vmatpush1.xpose.msra.mxu0 0.0
        %2090 = vmatprep.subr.mxu0 0.0
        %2091 = vmatpush1.xpose.msra.mxu0 0.0
        %2092 = vmatprep.subr.mxu0 0.0
        %2093 = vmatpush1.xpose.msra.mxu0 0.0
        %2094 = vmatprep.subr.mxu0 0.0
        %2095 = vmatpush1.xpose.msra.mxu0 0.0
        %2096 = vmatprep.subr.mxu0 0.0
        %2097 = vmatpush1.xpose.msra.mxu0 0.0
        %2098 = vmatprep.subr.mxu0 0.0
        %2099 = vmatpush1.xpose.msra.mxu0 0.0
        %2100 = vmatprep.subr.mxu0 0.0
        %2101 = vmatpush1.xpose.msra.mxu0 0.0
        %2102 = vmatprep.subr.mxu0 0.0
        %2103 = vmatpush1.xpose.msra.mxu0 0.0
        %2104 = vmatprep.subr.mxu0 0.0
        %2105 = vmatpush1.xpose.msra.mxu0 0.0
        %2106 = vmatprep.subr.mxu0 0.0
        %2107 = vmatpush1.xpose.msra.mxu0 0.0
        %2108 = vmatprep.subr.mxu0 0.0
        %2109 = vmatpush1.xpose.msra.mxu0 0.0
        %2110 = vmatprep.subr.mxu0 0.0
        %2111 = vmatpush1.xpose.msra.mxu0 0.0
        %2112 = vmatprep.subr.mxu0 0.0
        %2113 = vmatpush1.xpose.msra.mxu0 0.0
        %2114 = vmatprep.subr.mxu0 0.0
        %2115 = vmatpush1.xpose.msra.mxu0 0.0
        %2116 = vmatprep.subr.mxu0 0.0
        %2117 = vmatpush1.xpose.msra.mxu0 0.0
        %2118 = vmatprep.subr.mxu0 0.0
        %2119 = vmatpush1.xpose.msra.mxu0 0.0
        %2120 = vmatprep.subr.mxu0 0.0
        %2121 = vmatpush1.xpose.msra.mxu0 0.0
        %2122 = vmatprep.subr.mxu0 0.0
        %2123 = vmatpush1.xpose.msra.mxu0 0.0
        %2124 = vmatprep.subr.mxu0 0.0
        %2125 = vmatpush1.xpose.msra.mxu0 0.0
        %2126 = vmatprep.subr.mxu0 0.0
        %2127 = vmatpush1.xpose.msra.mxu0 0.0
        %2128 = vmatprep.subr.mxu0 0.0
        %2129 = vmatpush1.xpose.msra.mxu0 0.0
        %2130 = vmatprep.subr.mxu0 0.0
        %2131 = vmatpush1.xpose.msra.mxu0 0.0
        %2132 = vmatprep.subr.mxu0 0.0
        %2133 = vmatpush1.xpose.msra.mxu0 0.0
        %2134 = vmatprep.mubr.f32.mxu0 0.0
        %2135 = vmatmul.mubr.f32.gmra.mrb[0].mxu0 %v646
        %v2136 = vpop.f32.mrb[0].mxu0
        %v2137 = vadd.f32 0.0, %v2136
        %v2138 = vpop.f32.mrb[0].mxu0
        %2139 = vdwg.mxu0
        %v2140 = vmul.f32 %v2137, 0.12909944
        %v2141 = vsel %vm1341, %v2140, -1e+30
        %v2142 = vsel %vm1414, %v2141, -inf
        %2143 = vmax.xlane.f32.xlu0 %v2142
        %v2144 = vpop.xlane.xlu0 %2143
        %v2145 = vsub.f32 %v2141, %v2144
        %v2146 = vmul.f32 %v2145, 1.442695
        %v2147 = vpow.pop %v2146
        %v2148 = vsel %vm1414, %v2147, 0.0
        %2149 = vadd.xlane.f32.xlu0 %v2148
        %v2150 = vpop.xlane.xlu0 %2149
        %v2151 = vrcp.pop %v2150
        %v2152 = vmul.f32 %v2147, %v2151
        %v2154 = vsel %vm1414, %v2152, 0
        %2156 = vmatprep.subr.mxu0 0.0
        %2157 = vmatpush1.msra.mxu0 %v1264
        %2158 = vmatprep.subr.mxu0 0.0
        %2159 = vmatpush1.msra.mxu0 0.0
        %2160 = vmatprep.subr.mxu0 0.0
        %2161 = vmatpush1.msra.mxu0 0.0
        %2162 = vmatprep.subr.mxu0 0.0
        %2163 = vmatpush1.msra.mxu0 0.0
        %2164 = vmatprep.subr.mxu0 0.0
        %2165 = vmatpush1.msra.mxu0 0.0
        %2166 = vmatprep.subr.mxu0 0.0
        %2167 = vmatpush1.msra.mxu0 0.0
        %2168 = vmatprep.subr.mxu0 0.0
        %2169 = vmatpush1.msra.mxu0 0.0
        %2170 = vmatprep.subr.mxu0 0.0
        %2171 = vmatpush1.msra.mxu0 0.0
        %2172 = vmatprep.subr.mxu0 0.0
        %2173 = vmatpush1.msra.mxu0 0.0
        %2174 = vmatprep.subr.mxu0 0.0
        %2175 = vmatpush1.msra.mxu0 0.0
        %2176 = vmatprep.subr.mxu0 0.0
        %2177 = vmatpush1.msra.mxu0 0.0
        %2178 = vmatprep.subr.mxu0 0.0
        %2179 = vmatpush1.msra.mxu0 0.0
        %2180 = vmatprep.subr.mxu0 0.0
        %2181 = vmatpush1.msra.mxu0 0.0
        %2182 = vmatprep.subr.mxu0 0.0
        %2183 = vmatpush1.msra.mxu0 0.0
        %2184 = vmatprep.subr.mxu0 0.0
        %2185 = vmatpush1.msra.mxu0 0.0
        %2186 = vmatprep.subr.mxu0 0.0
        %2187 = vmatpush1.msra.mxu0 0.0
        %2188 = vmatprep.subr.mxu0 0.0
        %2189 = vmatpush1.msra.mxu0 0.0
        %2190 = vmatprep.subr.mxu0 0.0
        %2191 = vmatpush1.msra.mxu0 0.0
        %2192 = vmatprep.subr.mxu0 0.0
        %2193 = vmatpush1.msra.mxu0 0.0
        %2194 = vmatprep.subr.mxu0 0.0
        %2195 = vmatpush1.msra.mxu0 0.0
        %2196 = vmatprep.subr.mxu0 0.0
        %2197 = vmatpush1.msra.mxu0 0.0
        %2198 = vmatprep.subr.mxu0 0.0
        %2199 = vmatpush1.msra.mxu0 0.0
        %2200 = vmatprep.subr.mxu0 0.0
        %2201 = vmatpush1.msra.mxu0 0.0
        %2202 = vmatprep.subr.mxu0 0.0
        %2203 = vmatpush1.msra.mxu0 0.0
        %2204 = vmatprep.subr.mxu0 0.0
        %2205 = vmatpush1.msra.mxu0 0.0
        %2206 = vmatprep.subr.mxu0 0.0
        %2207 = vmatpush1.msra.mxu0 0.0
        %2208 = vmatprep.subr.mxu0 0.0
        %2209 = vmatpush1.msra.mxu0 0.0
        %2210 = vmatprep.subr.mxu0 0.0
        %2211 = vmatpush1.msra.mxu0 0.0
        %2212 = vmatprep.subr.mxu0 0.0
        %2213 = vmatpush1.msra.mxu0 0.0
        %2214 = vmatprep.subr.mxu0 0.0
        %2215 = vmatpush1.msra.mxu0 0.0
        %2216 = vmatprep.subr.mxu0 0.0
        %2217 = vmatpush1.msra.mxu0 0.0
        %2218 = vmatprep.subr.mxu0 0.0
        %2219 = vmatpush1.msra.mxu0 0.0
        %2220 = vmatprep.mubr.f32.mxu0 0.0
        %2221 = vmatmul.mubr.f32.gmra.mrb[0].mxu0 %v2154
        %v2222 = vpop.f32.mrb[0].mxu0
        %v2223 = vadd.f32 0.0, %v2222
        %v2224 = vpop.f32.mrb[0].mxu0
        %2225 = vdwg.mxu0
        %v2226 = vld [vmem:[#allocation10 + $0x180] sm:$0xff]
        %v2227 = vld [vmem:[#allocation10 + $0x188] sm:$0xff]
        %v2228 = vld [vmem:[#allocation10 + $0x190] sm:$0xff]
        %v2229 = vld [vmem:[#allocation10 + $0x198] sm:$0xff]
        %v2230 = vld [vmem:[#allocation10 + $0x1a0] sm:$0xff]
        %v2231 = vld [vmem:[#allocation10 + $0x1a8] sm:$0xff]
        %v2232 = vld [vmem:[#allocation10 + $0x1b0] sm:$0xff]
        %v2233 = vld [vmem:[#allocation10 + $0x1b8] sm:$0xff]
        %v2234 = vld [vmem:[#allocation10 + $0x1c0] sm:$0xff]
        %v2235 = vld [vmem:[#allocation10 + $0x1c8] sm:$0xff]
        %v2236 = vld [vmem:[#allocation10 + $0x1d0] sm:$0xff]
        %v2237 = vld [vmem:[#allocation10 + $0x1d8] sm:$0xff]
        %v2238 = vld [vmem:[#allocation10 + $0x1e0] sm:$0xff]
        %v2239 = vld [vmem:[#allocation10 + $0x1e8] sm:$0xff]
        %v2240 = vld [vmem:[#allocation10 + $0x1f0] sm:$0xff]
        %v2241 = vld [vmem:[#allocation10 + $0x1f8] sm:$0xff]
        %2242 = vmatprep.subr.mxu0 0.0
        %2243 = vmatpush1.msra.mxu0 %v2226
        %2244 = vmatprep.subr.mxu0 0.0
        %2245 = vmatpush1.msra.mxu0 %v2227
        %2246 = vmatprep.subr.mxu0 0.0
        %2247 = vmatpush1.msra.mxu0 %v2228
        %2248 = vmatprep.subr.mxu0 0.0
        %2249 = vmatpush1.msra.mxu0 %v2229
        %2250 = vmatprep.subr.mxu0 0.0
        %2251 = vmatpush1.msra.mxu0 %v2230
        %2252 = vmatprep.subr.mxu0 0.0
        %2253 = vmatpush1.msra.mxu0 %v2231
        %2254 = vmatprep.subr.mxu0 0.0
        %2255 = vmatpush1.msra.mxu0 %v2232
        %2256 = vmatprep.subr.mxu0 0.0
        %2257 = vmatpush1.msra.mxu0 %v2233
        %2258 = vmatprep.subr.mxu0 0.0
        %2259 = vmatpush1.msra.mxu0 %v2234
        %2260 = vmatprep.subr.mxu0 0.0
        %2261 = vmatpush1.msra.mxu0 %v2235
        %2262 = vmatprep.subr.mxu0 0.0
        %2263 = vmatpush1.msra.mxu0 %v2236
        %2264 = vmatprep.subr.mxu0 0.0
        %2265 = vmatpush1.msra.mxu0 %v2237
        %2266 = vmatprep.subr.mxu0 0.0
        %2267 = vmatpush1.msra.mxu0 %v2238
        %2268 = vmatprep.subr.mxu0 0.0
        %2269 = vmatpush1.msra.mxu0 %v2239
        %2270 = vmatprep.subr.mxu0 0.0
        %2271 = vmatpush1.msra.mxu0 %v2240
        %2272 = vmatprep.subr.mxu0 0.0
        %2273 = vmatpush1.msra.mxu0 %v2241
        %2274 = vmatprep.subr.mxu0 0.0
        %2275 = vmatpush1.msra.mxu0 0.0
        %2276 = vmatprep.subr.mxu0 0.0
        %2277 = vmatpush1.msra.mxu0 0.0
        %2278 = vmatprep.subr.mxu0 0.0
        %2279 = vmatpush1.msra.mxu0 0.0
        %2280 = vmatprep.subr.mxu0 0.0
        %2281 = vmatpush1.msra.mxu0 0.0
        %2282 = vmatprep.subr.mxu0 0.0
        %2283 = vmatpush1.msra.mxu0 0.0
        %2284 = vmatprep.subr.mxu0 0.0
        %2285 = vmatpush1.msra.mxu0 0.0
        %2286 = vmatprep.subr.mxu0 0.0
        %2287 = vmatpush1.msra.mxu0 0.0
        %2288 = vmatprep.subr.mxu0 0.0
        %2289 = vmatpush1.msra.mxu0 0.0
        %2290 = vmatprep.subr.mxu0 0.0
        %2291 = vmatpush1.msra.mxu0 0.0
        %2292 = vmatprep.subr.mxu0 0.0
        %2293 = vmatpush1.msra.mxu0 0.0
        %2294 = vmatprep.subr.mxu0 0.0
        %2295 = vmatpush1.msra.mxu0 0.0
        %2296 = vmatprep.subr.mxu0 0.0
        %2297 = vmatpush1.msra.mxu0 0.0
        %2298 = vmatprep.subr.mxu0 0.0
        %2299 = vmatpush1.msra.mxu0 0.0
        %2300 = vmatprep.subr.mxu0 0.0
        %2301 = vmatpush1.msra.mxu0 0.0
        %2302 = vmatprep.subr.mxu0 0.0
        %2303 = vmatpush1.msra.mxu0 0.0
        %2304 = vmatprep.subr.mxu0 0.0
        %2305 = vmatpush1.msra.mxu0 0.0
        %2306 = vmatprep.mubr.f32.mxu0 0.0
        %2307 = vmatmul.mubr.f32.gmra.mrb[0].mxu0 %v2223
        %v2308 = vpop.f32.mrb[0].mxu0
        %v2309 = vadd.f32 0.0, %v2308
        %v2310 = vpop.f32.mrb[0].mxu0
        %2311 = vdwg.mxu0
        %v2312 = vadd.f32 %v2069, %v2309
        %2313 = vmatprep.subr.mxu0 0.0
        %2314 = vmatpush1.xpose.msra.mxu0 %v1024
        %2315 = vmatprep.subr.mxu0 0.0
        %2316 = vmatpush1.xpose.msra.mxu0 0.0
        %2317 = vmatprep.subr.mxu0 0.0
        %2318 = vmatpush1.xpose.msra.mxu0 0.0
        %2319 = vmatprep.subr.mxu0 0.0
        %2320 = vmatpush1.xpose.msra.mxu0 0.0
        %2321 = vmatprep.subr.mxu0 0.0
        %2322 = vmatpush1.xpose.msra.mxu0 0.0
        %2323 = vmatprep.subr.mxu0 0.0
        %2324 = vmatpush1.xpose.msra.mxu0 0.0
        %2325 = vmatprep.subr.mxu0 0.0
        %2326 = vmatpush1.xpose.msra.mxu0 0.0
        %2327 = vmatprep.subr.mxu0 0.0
        %2328 = vmatpush1.xpose.msra.mxu0 0.0
        %2329 = vmatprep.subr.mxu0 0.0
        %2330 = vmatpush1.xpose.msra.mxu0 0.0
        %2331 = vmatprep.subr.mxu0 0.0
        %2332 = vmatpush1.xpose.msra.mxu0 0.0
        %2333 = vmatprep.subr.mxu0 0.0
        %2334 = vmatpush1.xpose.msra.mxu0 0.0
        %2335 = vmatprep.subr.mxu0 0.0
        %2336 = vmatpush1.xpose.msra.mxu0 0.0
        %2337 = vmatprep.subr.mxu0 0.0
        %2338 = vmatpush1.xpose.msra.mxu0 0.0
        %2339 = vmatprep.subr.mxu0 0.0
        %2340 = vmatpush1.xpose.msra.mxu0 0.0
        %2341 = vmatprep.subr.mxu0 0.0
        %2342 = vmatpush1.xpose.msra.mxu0 0.0
        %2343 = vmatprep.subr.mxu0 0.0
        %2344 = vmatpush1.xpose.msra.mxu0 0.0
        %2345 = vmatprep.subr.mxu0 0.0
        %2346 = vmatpush1.xpose.msra.mxu0 0.0
        %2347 = vmatprep.subr.mxu0 0.0
        %2348 = vmatpush1.xpose.msra.mxu0 0.0
        %2349 = vmatprep.subr.mxu0 0.0
        %2350 = vmatpush1.xpose.msra.mxu0 0.0
        %2351 = vmatprep.subr.mxu0 0.0
        %2352 = vmatpush1.xpose.msra.mxu0 0.0
        %2353 = vmatprep.subr.mxu0 0.0
        %2354 = vmatpush1.xpose.msra.mxu0 0.0
        %2355 = vmatprep.subr.mxu0 0.0
        %2356 = vmatpush1.xpose.msra.mxu0 0.0
        %2357 = vmatprep.subr.mxu0 0.0
        %2358 = vmatpush1.xpose.msra.mxu0 0.0
        %2359 = vmatprep.subr.mxu0 0.0
        %2360 = vmatpush1.xpose.msra.mxu0 0.0
        %2361 = vmatprep.subr.mxu0 0.0
        %2362 = vmatpush1.xpose.msra.mxu0 0.0
        %2363 = vmatprep.subr.mxu0 0.0
        %2364 = vmatpush1.xpose.msra.mxu0 0.0
        %2365 = vmatprep.subr.mxu0 0.0
        %2366 = vmatpush1.xpose.msra.mxu0 0.0
        %2367 = vmatprep.subr.mxu0 0.0
        %2368 = vmatpush1.xpose.msra.mxu0 0.0
        %2369 = vmatprep.subr.mxu0 0.0
        %2370 = vmatpush1.xpose.msra.mxu0 0.0
        %2371 = vmatprep.subr.mxu0 0.0
        %2372 = vmatpush1.xpose.msra.mxu0 0.0
        %2373 = vmatprep.subr.mxu0 0.0
        %2374 = vmatpush1.xpose.msra.mxu0 0.0
        %2375 = vmatprep.subr.mxu0 0.0
        %2376 = vmatpush1.xpose.msra.mxu0 0.0
        %2377 = vmatprep.mubr.f32.mxu0 0.0
        %2378 = vmatmul.mubr.f32.gmra.mrb[0].mxu0 %v715
        %v2379 = vpop.f32.mrb[0].mxu0
        %v2380 = vadd.f32 0.0, %v2379
        %v2381 = vpop.f32.mrb[0].mxu0
        %2382 = vdwg.mxu0
        %v2383 = vmul.f32 %v2380, 0.12909944
        %v2384 = vsel %vm1341, %v2383, -1e+30
        %v2385 = vsel %vm1414, %v2384, -inf
        %2386 = vmax.xlane.f32.xlu0 %v2385
        %v2387 = vpop.xlane.xlu0 %2386
        %v2388 = vsub.f32 %v2384, %v2387
        %v2389 = vmul.f32 %v2388, 1.442695
        %v2390 = vpow.pop %v2389
        %v2391 = vsel %vm1414, %v2390, 0.0
        %2392 = vadd.xlane.f32.xlu0 %v2391
        %v2393 = vpop.xlane.xlu0 %2392
        %v2394 = vrcp.pop %v2393
        %v2395 = vmul.f32 %v2390, %v2394
        %v2397 = vsel %vm1414, %v2395, 0
        %2399 = vmatprep.subr.mxu0 0.0
        %2400 = vmatpush1.msra.mxu0 %v1333
        %2401 = vmatprep.subr.mxu0 0.0
        %2402 = vmatpush1.msra.mxu0 0.0
        %2403 = vmatprep.subr.mxu0 0.0
        %2404 = vmatpush1.msra.mxu0 0.0
        %2405 = vmatprep.subr.mxu0 0.0
        %2406 = vmatpush1.msra.mxu0 0.0
        %2407 = vmatprep.subr.mxu0 0.0
        %2408 = vmatpush1.msra.mxu0 0.0
        %2409 = vmatprep.subr.mxu0 0.0
        %2410 = vmatpush1.msra.mxu0 0.0
        %2411 = vmatprep.subr.mxu0 0.0
        %2412 = vmatpush1.msra.mxu0 0.0
        %2413 = vmatprep.subr.mxu0 0.0
        %2414 = vmatpush1.msra.mxu0 0.0
        %2415 = vmatprep.subr.mxu0 0.0
        %2416 = vmatpush1.msra.mxu0 0.0
        %2417 = vmatprep.subr.mxu0 0.0
        %2418 = vmatpush1.msra.mxu0 0.0
        %2419 = vmatprep.subr.mxu0 0.0
        %2420 = vmatpush1.msra.mxu0 0.0
        %2421 = vmatprep.subr.mxu0 0.0
        %2422 = vmatpush1.msra.mxu0 0.0
        %2423 = vmatprep.subr.mxu0 0.0
        %2424 = vmatpush1.msra.mxu0 0.0
        %2425 = vmatprep.subr.mxu0 0.0
        %2426 = vmatpush1.msra.mxu0 0.0
        %2427 = vmatprep.subr.mxu0 0.0
        %2428 = vmatpush1.msra.mxu0 0.0
        %2429 = vmatprep.subr.mxu0 0.0
        %2430 = vmatpush1.msra.mxu0 0.0
        %2431 = vmatprep.subr.mxu0 0.0
        %2432 = vmatpush1.msra.mxu0 0.0
        %2433 = vmatprep.subr.mxu0 0.0
        %2434 = vmatpush1.msra.mxu0 0.0
        %2435 = vmatprep.subr.mxu0 0.0
        %2436 = vmatpush1.msra.mxu0 0.0
        %2437 = vmatprep.subr.mxu0 0.0
        %2438 = vmatpush1.msra.mxu0 0.0
        %2439 = vmatprep.subr.mxu0 0.0
        %2440 = vmatpush1.msra.mxu0 0.0
        %2441 = vmatprep.subr.mxu0 0.0
        %2442 = vmatpush1.msra.mxu0 0.0
        %2443 = vmatprep.subr.mxu0 0.0
        %2444 = vmatpush1.msra.mxu0 0.0
        %2445 = vmatprep.subr.mxu0 0.0
        %2446 = vmatpush1.msra.mxu0 0.0
        %2447 = vmatprep.subr.mxu0 0.0
        %2448 = vmatpush1.msra.mxu0 0.0
        %2449 = vmatprep.subr.mxu0 0.0
        %2450 = vmatpush1.msra.mxu0 0.0
        %2451 = vmatprep.subr.mxu0 0.0
        %2452 = vmatpush1.msra.mxu0 0.0
        %2453 = vmatprep.subr.mxu0 0.0
        %2454 = vmatpush1.msra.mxu0 0.0
        %2455 = vmatprep.subr.mxu0 0.0
        %2456 = vmatpush1.msra.mxu0 0.0
        %2457 = vmatprep.subr.mxu0 0.0
        %2458 = vmatpush1.msra.mxu0 0.0
        %2459 = vmatprep.subr.mxu0 0.0
        %2460 = vmatpush1.msra.mxu0 0.0
        %2461 = vmatprep.subr.mxu0 0.0
        %2462 = vmatpush1.msra.mxu0 0.0
        %2463 = vmatprep.mubr.f32.mxu0 0.0
        %2464 = vmatmul.mubr.f32.gmra.mrb[0].mxu0 %v2397
        %v2465 = vpop.f32.mrb[0].mxu0
        %v2466 = vadd.f32 0.0, %v2465
        %v2467 = vpop.f32.mrb[0].mxu0
        %2468 = vdwg.mxu0
        %v2469 = vld [vmem:[#allocation10 + $0x200] sm:$0xff]
        %v2470 = vld [vmem:[#allocation10 + $0x208] sm:$0xff]
        %v2471 = vld [vmem:[#allocation10 + $0x210] sm:$0xff]
        %v2472 = vld [vmem:[#allocation10 + $0x218] sm:$0xff]
        %v2473 = vld [vmem:[#allocation10 + $0x220] sm:$0xff]
        %v2474 = vld [vmem:[#allocation10 + $0x228] sm:$0xff]
        %v2475 = vld [vmem:[#allocation10 + $0x230] sm:$0xff]
        %v2476 = vld [vmem:[#allocation10 + $0x238] sm:$0xff]
        %v2477 = vld [vmem:[#allocation10 + $0x240] sm:$0xff]
        %v2478 = vld [vmem:[#allocation10 + $0x248] sm:$0xff]
        %v2479 = vld [vmem:[#allocation10 + $0x250] sm:$0xff]
        %v2480 = vld [vmem:[#allocation10 + $0x258] sm:$0xff]
        %v2481 = vld [vmem:[#allocation10 + $0x260] sm:$0xff]
        %v2482 = vld [vmem:[#allocation10 + $0x268] sm:$0xff]
        %v2483 = vld [vmem:[#allocation10 + $0x270] sm:$0xff]
        %v2484 = vld [vmem:[#allocation10 + $0x278] sm:$0xff]
        %2485 = vmatprep.subr.mxu0 0.0
        %2486 = vmatpush1.msra.mxu0 %v2469
        %2487 = vmatprep.subr.mxu0 0.0
        %2488 = vmatpush1.msra.mxu0 %v2470
        %2489 = vmatprep.subr.mxu0 0.0
        %2490 = vmatpush1.msra.mxu0 %v2471
        %2491 = vmatprep.subr.mxu0 0.0
        %2492 = vmatpush1.msra.mxu0 %v2472
        %2493 = vmatprep.subr.mxu0 0.0
        %2494 = vmatpush1.msra.mxu0 %v2473
        %2495 = vmatprep.subr.mxu0 0.0
        %2496 = vmatpush1.msra.mxu0 %v2474
        %2497 = vmatprep.subr.mxu0 0.0
        %2498 = vmatpush1.msra.mxu0 %v2475
        %2499 = vmatprep.subr.mxu0 0.0
        %2500 = vmatpush1.msra.mxu0 %v2476
        %2501 = vmatprep.subr.mxu0 0.0
        %2502 = vmatpush1.msra.mxu0 %v2477
        %2503 = vmatprep.subr.mxu0 0.0
        %2504 = vmatpush1.msra.mxu0 %v2478
        %2505 = vmatprep.subr.mxu0 0.0
        %2506 = vmatpush1.msra.mxu0 %v2479
        %2507 = vmatprep.subr.mxu0 0.0
        %2508 = vmatpush1.msra.mxu0 %v2480
        %2509 = vmatprep.subr.mxu0 0.0
        %2510 = vmatpush1.msra.mxu0 %v2481
        %2511 = vmatprep.subr.mxu0 0.0
        %2512 = vmatpush1.msra.mxu0 %v2482
        %2513 = vmatprep.subr.mxu0 0.0
        %2514 = vmatpush1.msra.mxu0 %v2483
        %2515 = vmatprep.subr.mxu0 0.0
        %2516 = vmatpush1.msra.mxu0 %v2484
        %2517 = vmatprep.subr.mxu0 0.0
        %2518 = vmatpush1.msra.mxu0 0.0
        %2519 = vmatprep.subr.mxu0 0.0
        %2520 = vmatpush1.msra.mxu0 0.0
        %2521 = vmatprep.subr.mxu0 0.0
        %2522 = vmatpush1.msra.mxu0 0.0
        %2523 = vmatprep.subr.mxu0 0.0
        %2524 = vmatpush1.msra.mxu0 0.0
        %2525 = vmatprep.subr.mxu0 0.0
        %2526 = vmatpush1.msra.mxu0 0.0
        %2527 = vmatprep.subr.mxu0 0.0
        %2528 = vmatpush1.msra.mxu0 0.0
        %2529 = vmatprep.subr.mxu0 0.0
        %2530 = vmatpush1.msra.mxu0 0.0
        %2531 = vmatprep.subr.mxu0 0.0
        %2532 = vmatpush1.msra.mxu0 0.0
        %2533 = vmatprep.subr.mxu0 0.0
        %2534 = vmatpush1.msra.mxu0 0.0
        %2535 = vmatprep.subr.mxu0 0.0
        %2536 = vmatpush1.msra.mxu0 0.0
        %2537 = vmatprep.subr.mxu0 0.0
        %2538 = vmatpush1.msra.mxu0 0.0
        %2539 = vmatprep.subr.mxu0 0.0
        %2540 = vmatpush1.msra.mxu0 0.0
        %2541 = vmatprep.subr.mxu0 0.0
        %2542 = vmatpush1.msra.mxu0 0.0
        %2543 = vmatprep.subr.mxu0 0.0
        %2544 = vmatpush1.msra.mxu0 0.0
        %2545 = vmatprep.subr.mxu0 0.0
        %2546 = vmatpush1.msra.mxu0 0.0
        %2547 = vmatprep.subr.mxu0 0.0
        %2548 = vmatpush1.msra.mxu0 0.0
        %2549 = vmatprep.mubr.f32.mxu0 0.0
        %2550 = vmatmul.mubr.f32.gmra.mrb[0].mxu0 %v2466
        %v2551 = vpop.f32.mrb[0].mxu0
        %v2552 = vadd.f32 0.0, %v2551
        %v2553 = vpop.f32.mrb[0].mxu0
        %2554 = vdwg.mxu0
        %v2555 = vadd.f32 %v2312, %v2552
        %2556 = vmatprep.subr.mxu0 0.0
        %2557 = vmatpush1.xpose.msra.mxu0 %v1026
        %2558 = vmatprep.subr.mxu0 0.0
        %2559 = vmatpush1.xpose.msra.mxu0 0.0
        %2560 = vmatprep.subr.mxu0 0.0
        %2561 = vmatpush1.xpose.msra.mxu0 0.0
        %2562 = vmatprep.subr.mxu0 0.0
        %2563 = vmatpush1.xpose.msra.mxu0 0.0
        %2564 = vmatprep.subr.mxu0 0.0
        %2565 = vmatpush1.xpose.msra.mxu0 0.0
        %2566 = vmatprep.subr.mxu0 0.0
        %2567 = vmatpush1.xpose.msra.mxu0 0.0
        %2568 = vmatprep.subr.mxu0 0.0
        %2569 = vmatpush1.xpose.msra.mxu0 0.0
        %2570 = vmatprep.subr.mxu0 0.0
        %2571 = vmatpush1.xpose.msra.mxu0 0.0
        %2572 = vmatprep.subr.mxu0 0.0
        %2573 = vmatpush1.xpose.msra.mxu0 0.0
        %2574 = vmatprep.subr.mxu0 0.0
        %2575 = vmatpush1.xpose.msra.mxu0 0.0
        %2576 = vmatprep.subr.mxu0 0.0
        %2577 = vmatpush1.xpose.msra.mxu0 0.0
        %2578 = vmatprep.subr.mxu0 0.0
        %2579 = vmatpush1.xpose.msra.mxu0 0.0
        %2580 = vmatprep.subr.mxu0 0.0
        %2581 = vmatpush1.xpose.msra.mxu0 0.0
        %2582 = vmatprep.subr.mxu0 0.0
        %2583 = vmatpush1.xpose.msra.mxu0 0.0
        %2584 = vmatprep.subr.mxu0 0.0
        %2585 = vmatpush1.xpose.msra.mxu0 0.0
        %2586 = vmatprep.subr.mxu0 0.0
        %2587 = vmatpush1.xpose.msra.mxu0 0.0
        %2588 = vmatprep.subr.mxu0 0.0
        %2589 = vmatpush1.xpose.msra.mxu0 0.0
        %2590 = vmatprep.subr.mxu0 0.0
        %2591 = vmatpush1.xpose.msra.mxu0 0.0
        %2592 = vmatprep.subr.mxu0 0.0
        %2593 = vmatpush1.xpose.msra.mxu0 0.0
        %2594 = vmatprep.subr.mxu0 0.0
        %2595 = vmatpush1.xpose.msra.mxu0 0.0
        %2596 = vmatprep.subr.mxu0 0.0
        %2597 = vmatpush1.xpose.msra.mxu0 0.0
        %2598 = vmatprep.subr.mxu0 0.0
        %2599 = vmatpush1.xpose.msra.mxu0 0.0
        %2600 = vmatprep.subr.mxu0 0.0
        %2601 = vmatpush1.xpose.msra.mxu0 0.0
        %2602 = vmatprep.subr.mxu0 0.0
        %2603 = vmatpush1.xpose.msra.mxu0 0.0
        %2604 = vmatprep.subr.mxu0 0.0
        %2605 = vmatpush1.xpose.msra.mxu0 0.0
        %2606 = vmatprep.subr.mxu0 0.0
        %2607 = vmatpush1.xpose.msra.mxu0 0.0
        %2608 = vmatprep.subr.mxu0 0.0
        %2609 = vmatpush1.xpose.msra.mxu0 0.0
        %2610 = vmatprep.subr.mxu0 0.0
        %2611 = vmatpush1.xpose.msra.mxu0 0.0
        %2612 = vmatprep.subr.mxu0 0.0
        %2613 = vmatpush1.xpose.msra.mxu0 0.0
        %2614 = vmatprep.subr.mxu0 0.0
        %2615 = vmatpush1.xpose.msra.mxu0 0.0
        %2616 = vmatprep.subr.mxu0 0.0
        %2617 = vmatpush1.xpose.msra.mxu0 0.0
        %2618 = vmatprep.subr.mxu0 0.0
        %2619 = vmatpush1.xpose.msra.mxu0 0.0
        %2620 = vmatprep.mubr.f32.mxu0 0.0
        %2621 = vmatmul.mubr.f32.gmra.mrb[0].mxu0 %v717
        %v2622 = vpop.f32.mrb[0].mxu0
        %v2623 = vadd.f32 0.0, %v2622
        %v2624 = vpop.f32.mrb[0].mxu0
        %2625 = vdwg.mxu0
        %v2626 = vmul.f32 %v2623, 0.12909944
        %v2627 = vsel %vm1341, %v2626, -1e+30
        %v2628 = vsel %vm1414, %v2627, -inf
        %2629 = vmax.xlane.f32.xlu0 %v2628
        %v2630 = vpop.xlane.xlu0 %2629
        %v2631 = vsub.f32 %v2627, %v2630
        %v2632 = vmul.f32 %v2631, 1.442695
        %v2633 = vpow.pop %v2632
        %v2634 = vsel %vm1414, %v2633, 0.0
        %2635 = vadd.xlane.f32.xlu0 %v2634
        %v2636 = vpop.xlane.xlu0 %2635
        %v2637 = vrcp.pop %v2636
        %v2638 = vmul.f32 %v2633, %v2637
        %v2640 = vsel %vm1414, %v2638, 0
        %2642 = vmatprep.subr.mxu0 0.0
        %2643 = vmatpush1.msra.mxu0 %v1335
        %2644 = vmatprep.subr.mxu0 0.0
        %2645 = vmatpush1.msra.mxu0 0.0
        %2646 = vmatprep.subr.mxu0 0.0
        %2647 = vmatpush1.msra.mxu0 0.0
        %2648 = vmatprep.subr.mxu0 0.0
        %2649 = vmatpush1.msra.mxu0 0.0
        %2650 = vmatprep.subr.mxu0 0.0
        %2651 = vmatpush1.msra.mxu0 0.0
        %2652 = vmatprep.subr.mxu0 0.0
        %2653 = vmatpush1.msra.mxu0 0.0
        %2654 = vmatprep.subr.mxu0 0.0
        %2655 = vmatpush1.msra.mxu0 0.0
        %2656 = vmatprep.subr.mxu0 0.0
        %2657 = vmatpush1.msra.mxu0 0.0
        %2658 = vmatprep.subr.mxu0 0.0
        %2659 = vmatpush1.msra.mxu0 0.0
        %2660 = vmatprep.subr.mxu0 0.0
        %2661 = vmatpush1.msra.mxu0 0.0
        %2662 = vmatprep.subr.mxu0 0.0
        %2663 = vmatpush1.msra.mxu0 0.0
        %2664 = vmatprep.subr.mxu0 0.0
        %2665 = vmatpush1.msra.mxu0 0.0
        %2666 = vmatprep.subr.mxu0 0.0
        %2667 = vmatpush1.msra.mxu0 0.0
        %2668 = vmatprep.subr.mxu0 0.0
        %2669 = vmatpush1.msra.mxu0 0.0
        %2670 = vmatprep.subr.mxu0 0.0
        %2671 = vmatpush1.msra.mxu0 0.0
        %2672 = vmatprep.subr.mxu0 0.0
        %2673 = vmatpush1.msra.mxu0 0.0
        %2674 = vmatprep.subr.mxu0 0.0
        %2675 = vmatpush1.msra.mxu0 0.0
        %2676 = vmatprep.subr.mxu0 0.0
        %2677 = vmatpush1.msra.mxu0 0.0
        %2678 = vmatprep.subr.mxu0 0.0
        %2679 = vmatpush1.msra.mxu0 0.0
        %2680 = vmatprep.subr.mxu0 0.0
        %2681 = vmatpush1.msra.mxu0 0.0
        %2682 = vmatprep.subr.mxu0 0.0
        %2683 = vmatpush1.msra.mxu0 0.0
        %2684 = vmatprep.subr.mxu0 0.0
        %2685 = vmatpush1.msra.mxu0 0.0
        %2686 = vmatprep.subr.mxu0 0.0
        %2687 = vmatpush1.msra.mxu0 0.0
        %2688 = vmatprep.subr.mxu0 0.0
        %2689 = vmatpush1.msra.mxu0 0.0
        %2690 = vmatprep.subr.mxu0 0.0
        %2691 = vmatpush1.msra.mxu0 0.0
        %2692 = vmatprep.subr.mxu0 0.0
        %2693 = vmatpush1.msra.mxu0 0.0
        %2694 = vmatprep.subr.mxu0 0.0
        %2695 = vmatpush1.msra.mxu0 0.0
        %2696 = vmatprep.subr.mxu0 0.0
        %2697 = vmatpush1.msra.mxu0 0.0
        %2698 = vmatprep.subr.mxu0 0.0
        %2699 = vmatpush1.msra.mxu0 0.0
        %2700 = vmatprep.subr.mxu0 0.0
        %2701 = vmatpush1.msra.mxu0 0.0
        %2702 = vmatprep.subr.mxu0 0.0
        %2703 = vmatpush1.msra.mxu0 0.0
        %2704 = vmatprep.subr.mxu0 0.0
        %2705 = vmatpush1.msra.mxu0 0.0
        %2706 = vmatprep.mubr.f32.mxu0 0.0
        %2707 = vmatmul.mubr.f32.gmra.mrb[0].mxu0 %v2640
        %v2708 = vpop.f32.mrb[0].mxu0
        %v2709 = vadd.f32 0.0, %v2708
        %v2710 = vpop.f32.mrb[0].mxu0
        %2711 = vdwg.mxu0
        %v2712 = vld [vmem:[#allocation10 + $0x280] sm:$0xff]
        %v2713 = vld [vmem:[#allocation10 + $0x288] sm:$0xff]
        %v2714 = vld [vmem:[#allocation10 + $0x290] sm:$0xff]
        %v2715 = vld [vmem:[#allocation10 + $0x298] sm:$0xff]
        %v2716 = vld [vmem:[#allocation10 + $0x2a0] sm:$0xff]
        %v2717 = vld [vmem:[#allocation10 + $0x2a8] sm:$0xff]
        %v2718 = vld [vmem:[#allocation10 + $0x2b0] sm:$0xff]
        %v2719 = vld [vmem:[#allocation10 + $0x2b8] sm:$0xff]
        %v2720 = vld [vmem:[#allocation10 + $0x2c0] sm:$0xff]
        %v2721 = vld [vmem:[#allocation10 + $0x2c8] sm:$0xff]
        %v2722 = vld [vmem:[#allocation10 + $0x2d0] sm:$0xff]
        %v2723 = vld [vmem:[#allocation10 + $0x2d8] sm:$0xff]
        %v2724 = vld [vmem:[#allocation10 + $0x2e0] sm:$0xff]
        %v2725 = vld [vmem:[#allocation10 + $0x2e8] sm:$0xff]
        %v2726 = vld [vmem:[#allocation10 + $0x2f0] sm:$0xff]
        %v2727 = vld [vmem:[#allocation10 + $0x2f8] sm:$0xff]
        %2728 = vmatprep.subr.mxu0 0.0
        %2729 = vmatpush1.msra.mxu0 %v2712
        %2730 = vmatprep.subr.mxu0 0.0
        %2731 = vmatpush1.msra.mxu0 %v2713
        %2732 = vmatprep.subr.mxu0 0.0
        %2733 = vmatpush1.msra.mxu0 %v2714
        %2734 = vmatprep.subr.mxu0 0.0
        %2735 = vmatpush1.msra.mxu0 %v2715
        %2736 = vmatprep.subr.mxu0 0.0
        %2737 = vmatpush1.msra.mxu0 %v2716
        %2738 = vmatprep.subr.mxu0 0.0
        %2739 = vmatpush1.msra.mxu0 %v2717
        %2740 = vmatprep.subr.mxu0 0.0
        %2741 = vmatpush1.msra.mxu0 %v2718
        %2742 = vmatprep.subr.mxu0 0.0
        %2743 = vmatpush1.msra.mxu0 %v2719
        %2744 = vmatprep.subr.mxu0 0.0
        %2745 = vmatpush1.msra.mxu0 %v2720
        %2746 = vmatprep.subr.mxu0 0.0
        %2747 = vmatpush1.msra.mxu0 %v2721
        %2748 = vmatprep.subr.mxu0 0.0
        %2749 = vmatpush1.msra.mxu0 %v2722
        %2750 = vmatprep.subr.mxu0 0.0
        %2751 = vmatpush1.msra.mxu0 %v2723
        %2752 = vmatprep.subr.mxu0 0.0
        %2753 = vmatpush1.msra.mxu0 %v2724
        %2754 = vmatprep.subr.mxu0 0.0
        %2755 = vmatpush1.msra.mxu0 %v2725
        %2756 = vmatprep.subr.mxu0 0.0
        %2757 = vmatpush1.msra.mxu0 %v2726
        %2758 = vmatprep.subr.mxu0 0.0
        %2759 = vmatpush1.msra.mxu0 %v2727
        %2760 = vmatprep.subr.mxu0 0.0
        %2761 = vmatpush1.msra.mxu0 0.0
        %2762 = vmatprep.subr.mxu0 0.0
        %2763 = vmatpush1.msra.mxu0 0.0
        %2764 = vmatprep.subr.mxu0 0.0
        %2765 = vmatpush1.msra.mxu0 0.0
        %2766 = vmatprep.subr.mxu0 0.0
        %2767 = vmatpush1.msra.mxu0 0.0
        %2768 = vmatprep.subr.mxu0 0.0
        %2769 = vmatpush1.msra.mxu0 0.0
        %2770 = vmatprep.subr.mxu0 0.0
        %2771 = vmatpush1.msra.mxu0 0.0
        %2772 = vmatprep.subr.mxu0 0.0
        %2773 = vmatpush1.msra.mxu0 0.0
        %2774 = vmatprep.subr.mxu0 0.0
        %2775 = vmatpush1.msra.mxu0 0.0
        %2776 = vmatprep.subr.mxu0 0.0
        %2777 = vmatpush1.msra.mxu0 0.0
        %2778 = vmatprep.subr.mxu0 0.0
        %2779 = vmatpush1.msra.mxu0 0.0
        %2780 = vmatprep.subr.mxu0 0.0
        %2781 = vmatpush1.msra.mxu0 0.0
        %2782 = vmatprep.subr.mxu0 0.0
        %2783 = vmatpush1.msra.mxu0 0.0
        %2784 = vmatprep.subr.mxu0 0.0
        %2785 = vmatpush1.msra.mxu0 0.0
        %2786 = vmatprep.subr.mxu0 0.0
        %2787 = vmatpush1.msra.mxu0 0.0
        %2788 = vmatprep.subr.mxu0 0.0
        %2789 = vmatpush1.msra.mxu0 0.0
        %2790 = vmatprep.subr.mxu0 0.0
        %2791 = vmatpush1.msra.mxu0 0.0
        %2792 = vmatprep.mubr.f32.mxu0 0.0
        %2793 = vmatmul.mubr.f32.gmra.mrb[0].mxu0 %v2709
        %v2794 = vpop.f32.mrb[0].mxu0
        %v2795 = vadd.f32 0.0, %v2794
        %v2796 = vpop.f32.mrb[0].mxu0
        %2797 = vdwg.mxu0
        %v2798 = vadd.f32 %v2555, %v2795
        %v2799 = vld [vmem:[%s7] sm:$0x1]
        %v2801 = vlaneseq
        %v2802 = vshrl.u32 %v2801, 7
        %v2803 = vsub.s32 0, %v2802
        %v2804 = vrot.slane %v2799, %v2803
        %v2806 = vadd.f32 %v2798, %v2804
        %v2807 = vadd.f32 %v379, %v2806
        %2808 = vst [vmem:[%s378] sm:$0xff] %v2807
        %s2809 = sand.u32 %s208, 1
        %s2810 = scalar_lea.sflag [#allocation4], %s2809
        %s2811 = sand.u32 %s208, 1
        %s2812 = smul.addr %s2811, 8
        %s2813 = scalar_lea.vmem [#allocation11], %s2812
        // Predicated region
        $region73: #{tpu_custom_call.1} parent=51 // pred_check
          %p2814 = pneg %p218
        $region74: #{tpu_custom_call.1} parent=51 // pred_check_branch
          %2816 = sbr.rel (%p2814) target = $region76
        $region75: #{tpu_custom_call.1} parent=51 // pred_region
          %s2818 = ssub.s32 128, 128
          %2819 = vsyncadd %s2810, %s2818
          %s2820 = smul.addr %s27, 128
          %s2821 = scalar_lea.hbm %s8, %s2820
          %s2823 = sshll.u32 %s2813, 4
          %s2824 = int_to_ptr.vmem [resolvable:$true] %s2823
          %2826 = dma.vmem_to_hbm [thread:$0]  %s2824, 128, %s2821, %s2810
        $region76: #{tpu_custom_call.1} parent=51 // pred_fallthru
          _
      $region52: #{tpu_custom_call.1} parent=5 // pred_fallthru
        _
      %p2827 = scmp.le.s32.totalorder 2, %s22
      // Predicated region
      $region77: #{tpu_custom_call.1} parent=5 // pred_check
        %p2828 = pneg %p2827
      $region78: #{tpu_custom_call.1} parent=5 // pred_check_branch
        %2830 = sbr.rel (%p2828) target = $region80
      $region79: #{tpu_custom_call.1} parent=5 // pred_region
        %s2831 = ssub.s32 %s22, 2
        // Predicated region
        $region81: #{tpu_custom_call.1} parent=79 // pred_check
          %p2832 = pneg %p224
        $region82: #{tpu_custom_call.1} parent=79 // pred_check_branch
          %2834 = sbr.rel (%p2832) target = $region84
        $region83: #{tpu_custom_call.1} parent=79 // pred_region
          %s2835 = sand.u32 %s209, 1
          %s2836 = scalar_lea.sflag [#allocation4], %s2835
          %s2837 = sand.u32 %s209, 1
          %s2838 = smul.addr %s2837, 8
          %s2839 = scalar_lea.vmem [#allocation11], %s2838
          %2840 = dma.done %s2836, 128
        $region84: #{tpu_custom_call.1} parent=79 // pred_fallthru
          _
      $region80: #{tpu_custom_call.1} parent=5 // pred_fallthru
        _
    $region6: #{tpu_custom_call.1} parent=1 // loop_footer
      %s26 = sadd.s32 1, %s22
    $region7: #{tpu_custom_call.1} parent=1 // loop_footer_branch
      %21 = sbr.rel target = $region3
    $region8: #{tpu_custom_call.1} parent=1 // loop_exit
      _
    %2841 = vsyncpa [#allocation3], 1
    %s2842 = scalar_lea.sflag [#allocation3], 1
    %2843 = vsyncpa %s2842, 1
    %2844 = vsyncpa [#allocation6], 1
    %2845 = vsyncpa [#allocation9], 1
    %2846 = vsyncpa [#allocation4], 1
    %s2847 = scalar_lea.sflag [#allocation4], 1
    %2848 = vsyncpa %s2847, 1

</llo_original>
